<compile_context>
chip_gen: v7x
topology: tpu7x:2x2x1
jax: 0.10.0
libtpu: 0.0.40
codegen_flags: <defaults>
</compile_context>

<pallas_src>
import functools
import jax
import jax.numpy as jnp
from jax.experimental import pallas as pl
from jax.experimental.pallas import tpu as pltpu

# ---- small synthetic "bert-base-cased" config -------------------------------
VOCAB = 100
HIDDEN = 32
N_LAYERS = 2
N_HEADS = 4
HEAD_DIM = HIDDEN // N_HEADS
INTERMEDIATE = 64
MAX_POS = 16
TYPE_VOCAB = 2
NUM_LABELS = 5
LN_EPS = 1e-12
ATTN_SCALE = 1.0 / float(HEAD_DIM) ** 0.5


def _vmem_limit_bytes():
    """Generation-aware VMEM budget: ~3/4 of physical VMEM, capped at 100 MiB.
    v7x -> ~48 MiB, v5e/v6e -> ~96 MiB."""
    try:
        cap = pltpu.get_tpu_info().vmem_capacity_bytes
    except Exception:  # pragma: no cover - conservative fallback
        cap = 64 * 1024 * 1024
    return max(32 * 1024 * 1024, min(int(cap) * 3 // 4, 100 * 1024 * 1024))


def _gelu_tanh(x):
    # TODO(synk): HF BERT uses exact (erf) GELU; tanh approximation used here.
    c = jnp.float32(0.7978845608028654)  # sqrt(2/pi)
    return 0.5 * x * (1.0 + jnp.tanh(c * (x + 0.044715 * x * x * x)))


def _layernorm(x, gamma, beta):
    mu = jnp.mean(x, axis=-1, keepdims=True)
    xc = x - mu
    var = jnp.mean(xc * xc, axis=-1, keepdims=True)
    return xc * jax.lax.rsqrt(var + LN_EPS) * gamma + beta


# ---------------------------- fused encoder kernel ---------------------------
def _encoder_kernel(emb_ref, mask_ref, eg_ref, eb_ref,
                    wqkv_ref, bqkv_ref, wao_ref, bao_ref, ag_ref, ab_ref,
                    wi_ref, bi_ref, wo_ref, bo_ref, og_ref, ob_ref,
                    out_ref):
    """One grid step = (batch element b, layer l).

    The hidden state lives in the VMEM-resident output block across the layer
    axis (output index_map ignores l), so layers chain without HBM traffic.
    """
    l = pl.program_id(1)

    @pl.when(l == 0)
    def _():
        # embedding LayerNorm folded into the first layer step (no extra launch)
        e = emb_ref[0].astype(jnp.float32)
        out_ref[0] = _layernorm(e, eg_ref[...], eb_ref[...]).astype(out_ref.dtype)

    x = out_ref[0].astype(jnp.float32)        # (S, H) residual stream
    x16 = x.astype(jnp.bfloat16)
    addm = mask_ref[0]                        # (1, S) additive mask (hoisted)

    # ---- multi-head self-attention -----------------------------------------
    # Heads indexed on a LEADING weight dim (free static views, no lane slicing);
    # output projection accumulated per head (no lane-dim concat).
    y = jnp.zeros(x.shape, jnp.float32)
    for h in range(N_HEADS):
        q = jnp.dot(x16, wqkv_ref[0, h],
                    preferred_element_type=jnp.float32) + bqkv_ref[0, h]
        k = jnp.dot(x16, wqkv_ref[0, N_HEADS + h],
                    preferred_element_type=jnp.float32) + bqkv_ref[0, N_HEADS + h]
        v = jnp.dot(x16, wqkv_ref[0, 2 * N_HEADS + h],
                    preferred_element_type=jnp.float32) + bqkv_ref[0, 2 * N_HEADS + h]
        q = q * ATTN_SCALE                                      # fold scale into Q
        s = jax.lax.dot_general(q.astype(jnp.bfloat16), k.astype(jnp.bfloat16),
                                (((1,), (1,)), ((), ())),
                                preferred_element_type=jnp.float32)   # (S, S)
        s = s + addm
        s = s - jnp.max(s, axis=-1, keepdims=True)
        p = jnp.exp(s)
        p = p / jnp.sum(p, axis=-1, keepdims=True)              # exact softmax
        ctx = jnp.dot(p.astype(jnp.bfloat16), v.astype(jnp.bfloat16),
                      preferred_element_type=jnp.float32)       # (S, HEAD_DIM)
        y = y + jnp.dot(ctx.astype(jnp.bfloat16), wao_ref[0, h],
                        preferred_element_type=jnp.float32)     # accumulate O-proj
    y = y + bao_ref[0]
    attn = _layernorm(y + x, ag_ref[0], ab_ref[0])              # residual LN #1

    # ---- feed-forward --------------------------------------------------------
    # TODO(synk): add flash-style KV / token tiling before scaling S to large
    # sequence lengths (untiled (S,S) scores are fine at this toy size).
    a16 = attn.astype(jnp.bfloat16)
    inter = jnp.dot(a16, wi_ref[0],
                    preferred_element_type=jnp.float32) + bi_ref[0]
    inter = _gelu_tanh(inter)
    ffn = jnp.dot(inter.astype(jnp.bfloat16), wo_ref[0],
                  preferred_element_type=jnp.float32) + bo_ref[0]
    out_ref[0] = _layernorm(ffn + attn, og_ref[0], ob_ref[0]).astype(out_ref.dtype)


def bert_encoder(emb, addmask, p):
    """emb:(B,S,H) f32, addmask:(B,1,S) f32, stacked per-layer params -> (B,S,H) f32."""
    B, S, H = emb.shape

    def spec_b(shape):   # indexed by batch, resident across layers
        return pl.BlockSpec(shape, lambda b, l, _n=len(shape): (b,) + (0,) * (_n - 1))

    def spec_l(shape):   # indexed by layer (stacked weights)
        return pl.BlockSpec(shape, lambda b, l, _n=len(shape): (l,) + (0,) * (_n - 1))

    def spec_fix(shape):  # shared (embedding LN) params
        return pl.BlockSpec(shape, lambda b, l, _n=len(shape): (0,) * _n)

    return pl.pallas_call(
        _encoder_kernel,
        out_shape=jax.ShapeDtypeStruct((B, S, H), jnp.float32),
        grid=(B, N_LAYERS),
        in_specs=[
            spec_b((1, S, H)),                        # embeddings (read at l==0)
            spec_b((1, 1, S)),                        # additive attention mask
            spec_fix((1, H)), spec_fix((1, H)),       # embedding LN gamma/beta
            spec_l((1, 3 * N_HEADS, H, HEAD_DIM)),    # per-head Q/K/V weights
            spec_l((1, 3 * N_HEADS, 1, HEAD_DIM)),    # per-head Q/K/V biases
            spec_l((1, N_HEADS, HEAD_DIM, H)),        # per-head output-proj weights
            spec_l((1, 1, H)),                        # output-proj bias
            spec_l((1, 1, H)), spec_l((1, 1, H)),     # attention LN gamma/beta
            spec_l((1, H, INTERMEDIATE)),             # FFN Wi
            spec_l((1, 1, INTERMEDIATE)),             # FFN bi
            spec_l((1, INTERMEDIATE, H)),             # FFN Wo
            spec_l((1, 1, H)),                        # FFN bo
            spec_l((1, 1, H)), spec_l((1, 1, H)),     # output LN gamma/beta
        ],
        out_specs=spec_b((1, S, H)),                  # resident across the layer axis
        compiler_params=pltpu.CompilerParams(
            dimension_semantics=("parallel", "arbitrary"),
            vmem_limit_bytes=_vmem_limit_bytes(),
        ),
    )(emb, addmask, p["emb_ln_g"], p["emb_ln_b"],
      p["wqkv"], p["bqkv"], p["wao"], p["bao"], p["a_ln_g"], p["a_ln_b"],
      p["wi"], p["bi"], p["wo"], p["bo"], p["o_ln_g"], p["o_ln_b"])


# ---------------------------- parameters --------------------------------------
def init_params(key):
    def w(k, shape, scale=0.02):
        return scale * jax.random.normal(k, shape, dtype=jnp.float32)

    keys = jax.random.split(key, 4 + N_LAYERS)
    params = {
        "word_emb": w(keys[0], (VOCAB, HIDDEN)),
        "pos_emb": w(keys[1], (MAX_POS, HIDDEN)),
        "type_emb": w(keys[2], (TYPE_VOCAB, HIDDEN)),
        "emb_ln_g": jnp.ones((1, HIDDEN), jnp.float32),
        "emb_ln_b": jnp.zeros((1, HIDDEN), jnp.float32),
        "cls_w": w(keys[3], (HIDDEN, NUM_LABELS)),
        "cls_b": jnp.zeros((1, NUM_LABELS), jnp.float32),
    }

    def per_head_cols(wfull):  # (H, H) column-split -> (N_HEADS, H, HEAD_DIM)
        return wfull.reshape(HIDDEN, N_HEADS, HEAD_DIM).transpose(1, 0, 2)

    wqkv, bqkv, wao, bao, a_g, a_b = [], [], [], [], [], []
    wi, bi, wo, bo, o_g, o_b = [], [], [], [], [], []
    for li in range(N_LAYERS):
        lk = jax.random.split(keys[4 + li], 6)
        wq = per_head_cols(w(lk[0], (HIDDEN, HIDDEN)))
        wk = per_head_cols(w(lk[1], (HIDDEN, HIDDEN)))
        wv = per_head_cols(w(lk[2], (HIDDEN, HIDDEN)))
        wqkv.append(jnp.concatenate([wq, wk, wv], axis=0).astype(jnp.bfloat16))
        bqkv.append(jnp.zeros((3 * N_HEADS, 1, HEAD_DIM), jnp.float32))
        # output dense: row-split per head so y = sum_h ctx_h @ Wo[h]
        wao.append(w(lk[3], (HIDDEN, HIDDEN)).reshape(N_HEADS, HEAD_DIM, HIDDEN)
                   .astype(jnp.bfloat16))
        bao.append(jnp.zeros((1, HIDDEN), jnp.float32))
        a_g.append(jnp.ones((1, HIDDEN), jnp.float32))
        a_b.append(jnp.zeros((1, HIDDEN), jnp.float32))
        wi.append(w(lk[4], (HIDDEN, INTERMEDIATE)).astype(jnp.bfloat16))
        bi.append(jnp.zeros((1, INTERMEDIATE), jnp.float32))
        wo.append(w(lk[5], (INTERMEDIATE, HIDDEN)).astype(jnp.bfloat16))
        bo.append(jnp.zeros((1, HIDDEN), jnp.float32))
        o_g.append(jnp.ones((1, HIDDEN), jnp.float32))
        o_b.append(jnp.zeros((1, HIDDEN), jnp.float32))

    params.update({
        "wqkv": jnp.stack(wqkv), "bqkv": jnp.stack(bqkv),
        "wao": jnp.stack(wao), "bao": jnp.stack(bao),
        "a_ln_g": jnp.stack(a_g), "a_ln_b": jnp.stack(a_b),
        "wi": jnp.stack(wi), "bi": jnp.stack(bi),
        "wo": jnp.stack(wo), "bo": jnp.stack(bo),
        "o_ln_g": jnp.stack(o_g), "o_ln_b": jnp.stack(o_b),
    })
    return params


# ---------------------------- forward ------------------------------------------
def bert_forward(params, input_id, mask, label):
    B, S = input_id.shape

    # embeddings: word + position + token_type (token_type_ids = 0).
    # (gathers are XLA glue; dropout is a no-op in eval mode; the embedding
    #  LayerNorm is folded into the first step of the fused encoder kernel)
    we = jnp.take(params["word_emb"], input_id, axis=0)           # (B,S,H)
    pe = params["pos_emb"][:S][None, :, :]                        # (1,S,H)
    te = params["type_emb"][0][None, None, :]                     # (1,1,H)
    emb = we + pe + te                                            # (B,S,H) f32

    # HF extended attention mask: (1 - mask) * large_negative, added to scores.
    # TODO(synk): HF uses torch.finfo(dtype).min; -1e9 is numerically safer here.
    addmask = ((1.0 - mask.astype(jnp.float32)) * -1e9)[:, None, :]   # (B,1,S)

    # single fused Pallas call for the whole encoder stack
    h = bert_encoder(emb, addmask, params)                        # (B,S,H) f32

    # classifier (NUM_LABELS=5, sub-128-lane) + CE loss kept in plain XLA on purpose.
    logits = (h.reshape(B * S, HIDDEN) @ params["cls_w"] + params["cls_b"])
    logits = logits.reshape(B, S, NUM_LABELS)

    # token-classification CrossEntropyLoss (ignore_index=-100)
    flat_logits = logits.reshape(-1, NUM_LABELS)
    flat_labels = label.reshape(-1)
    valid = flat_labels != -100
    safe_labels = jnp.where(valid, flat_labels, 0)
    logz = jax.nn.logsumexp(flat_logits, axis=-1)
    picked = jnp.take_along_axis(flat_logits, safe_labels[:, None], axis=1)[:, 0]
    nll = logz - picked
    loss = jnp.sum(jnp.where(valid, nll, 0.0)) / jnp.maximum(jnp.sum(valid), 1)

    return loss, logits  # matches (loss, logits) of return_dict=False


# ---------------------------- main ----------------------------------------------
if __name__ == "__main__":
    key = jax.random.PRNGKey(0)
    kp, ki, kl = jax.random.split(key, 3)

    B, S = 2, 8
    params = init_params(kp)
    input_id = jax.random.randint(ki, (B, S), 0, VOCAB, dtype=jnp.int32)
    mask = jnp.ones((B, S), dtype=jnp.int32)
    label = jax.random.randint(kl, (B, S), 0, NUM_LABELS, dtype=jnp.int32)
    label = label.at[:, -1].set(-100)  # exercise ignore_index like padded tokens

    fwd = jax.jit(bert_forward)
    loss, logits = fwd(params, input_id, mask, label)
    jax.block_until_ready((loss, logits))

    assert logits.shape == (B, S, NUM_LABELS)
    assert loss.shape == ()
    assert bool(jnp.isfinite(loss))
    print("KERNEL_OK")
</pallas_src>

<mosaic_0001>
module attributes {stable_mosaic.version = 11 : i64} {
  func.func @_encoder_kernel(%arg0: i32, %arg1: i32, %arg2: memref<1x8x32xf32, #tpu.memory_space<vmem>>, %arg3: memref<1x1x8xf32, #tpu.memory_space<vmem>>, %arg4: memref<1x32xf32, #tpu.memory_space<vmem>>, %arg5: memref<1x32xf32, #tpu.memory_space<vmem>>, %arg6: memref<1x12x32x8xbf16, #tpu.memory_space<vmem>>, %arg7: memref<1x12x1x8xf32, #tpu.memory_space<vmem>>, %arg8: memref<1x4x8x32xbf16, #tpu.memory_space<vmem>>, %arg9: memref<1x1x32xf32, #tpu.memory_space<vmem>>, %arg10: memref<1x1x32xf32, #tpu.memory_space<vmem>>, %arg11: memref<1x1x32xf32, #tpu.memory_space<vmem>>, %arg12: memref<1x32x64xbf16, #tpu.memory_space<vmem>>, %arg13: memref<1x1x64xf32, #tpu.memory_space<vmem>>, %arg14: memref<1x64x32xbf16, #tpu.memory_space<vmem>>, %arg15: memref<1x1x32xf32, #tpu.memory_space<vmem>>, %arg16: memref<1x1x32xf32, #tpu.memory_space<vmem>>, %arg17: memref<1x1x32xf32, #tpu.memory_space<vmem>>, %arg18: memref<1x8x32xf32, #tpu.memory_space<vmem>>) attributes {dimension_semantics = [#tpu.dimension_semantics<parallel>, #tpu.dimension_semantics<arbitrary>], iteration_bounds = array<i64: 2, 2>, scalar_prefetch = 0 : i64, scratch_operands = 0 : i64, tpu.core_type = #tpu.core_type<tc>, window_params = [{transform_indices = @transform_0, window_bounds = array<i64: 1, 8, 32>}, {transform_indices = @transform_1, window_bounds = array<i64: 1, 1, 8>}, {pipeline_mode = #tpu.pipeline_mode<synchronous>, transform_indices = @transform_2, window_bounds = array<i64: 1, 32>}, {pipeline_mode = #tpu.pipeline_mode<synchronous>, transform_indices = @transform_3, window_bounds = array<i64: 1, 32>}, {transform_indices = @transform_4, window_bounds = array<i64: 1, 12, 32, 8>}, {transform_indices = @transform_5, window_bounds = array<i64: 1, 12, 1, 8>}, {transform_indices = @transform_6, window_bounds = array<i64: 1, 4, 8, 32>}, {transform_indices = @transform_7, window_bounds = array<i64: 1, 1, 32>}, {transform_indices = @transform_8, window_bounds = array<i64: 1, 1, 32>}, {transform_indices = @transform_9, window_bounds = array<i64: 1, 1, 32>}, {transform_indices = @transform_10, window_bounds = array<i64: 1, 32, 64>}, {transform_indices = @transform_11, window_bounds = array<i64: 1, 1, 64>}, {transform_indices = @transform_12, window_bounds = array<i64: 1, 64, 32>}, {transform_indices = @transform_13, window_bounds = array<i64: 1, 1, 32>}, {transform_indices = @transform_14, window_bounds = array<i64: 1, 1, 32>}, {transform_indices = @transform_15, window_bounds = array<i64: 1, 1, 32>}, {transform_indices = @transform_16, window_bounds = array<i64: 1, 8, 32>}]} {
    %c0_i32 = arith.constant 0 : i32
    %0 = arith.cmpi eq, %arg1, %c0_i32 : i32
    %1 = arith.extui %0 : i1 to i32
    %c0_i32_0 = arith.constant 0 : i32
    %2 = arith.cmpi ne, %1, %c0_i32_0 : i32
    scf.if %2 {
      %c0_189 = arith.constant 0 : index
      %c0_190 = arith.constant 0 : index
      %c0_191 = arith.constant 0 : index
      %275 = vector.load %arg2[%c0_189, %c0_190, %c0_191] : memref<1x8x32xf32, #tpu.memory_space<vmem>>, vector<1x8x32xf32>
      %276 = vector.shape_cast %275 : vector<1x8x32xf32> to vector<8x32xf32>
      %c0_192 = arith.constant 0 : index
      %c0_193 = arith.constant 0 : index
      %277 = vector.load %arg4[%c0_192, %c0_193] : memref<1x32xf32, #tpu.memory_space<vmem>>, vector<1x32xf32>
      %c0_194 = arith.constant 0 : index
      %c0_195 = arith.constant 0 : index
      %278 = vector.load %arg5[%c0_194, %c0_195] : memref<1x32xf32, #tpu.memory_space<vmem>>, vector<1x32xf32>
      %cst_196 = arith.constant dense<0.000000e+00> : vector<8xf32>
      %279 = vector.multi_reduction <add>, %276, %cst_196 [1] : vector<8x32xf32> to vector<8xf32>
      %280 = vector.shape_cast %279 : vector<8xf32> to vector<8x1xf32>
      %cst_197 = arith.constant 3.200000e+01 : f32
      %281 = vector.broadcast %cst_197 : f32 to vector<8x1xf32>
      %282 = arith.divf %280, %281 : vector<8x1xf32>
      %283 = vector.broadcast %282 : vector<8x1xf32> to vector<8x32xf32>
      %284 = arith.subf %276, %283 : vector<8x32xf32>
      %285 = arith.mulf %284, %284 : vector<8x32xf32>
      %cst_198 = arith.constant dense<0.000000e+00> : vector<8xf32>
      %286 = vector.multi_reduction <add>, %285, %cst_198 [1] : vector<8x32xf32> to vector<8xf32>
      %287 = vector.shape_cast %286 : vector<8xf32> to vector<8x1xf32>
      %cst_199 = arith.constant 3.200000e+01 : f32
      %288 = vector.broadcast %cst_199 : f32 to vector<8x1xf32>
      %289 = arith.divf %287, %288 : vector<8x1xf32>
      %cst_200 = arith.constant 9.99999996E-13 : f32
      %290 = vector.broadcast %cst_200 : f32 to vector<8x1xf32>
      %291 = arith.addf %289, %290 : vector<8x1xf32>
      %292 = math.rsqrt %291 : vector<8x1xf32>
      %293 = vector.broadcast %292 : vector<8x1xf32> to vector<8x32xf32>
      %294 = arith.mulf %284, %293 : vector<8x32xf32>
      %295 = vector.broadcast %277 : vector<1x32xf32> to vector<8x32xf32>
      %296 = arith.mulf %294, %295 : vector<8x32xf32>
      %297 = vector.broadcast %278 : vector<1x32xf32> to vector<8x32xf32>
      %298 = arith.addf %296, %297 : vector<8x32xf32>
      %c0_201 = arith.constant 0 : index
      %c0_202 = arith.constant 0 : index
      %c0_203 = arith.constant 0 : index
      %299 = vector.load %arg18[%c0_201, %c0_202, %c0_203] : memref<1x8x32xf32, #tpu.memory_space<vmem>>, vector<1x8x32xf32>
      %300 = vector.shape_cast %299 : vector<1x8x32xf32> to vector<8x32xf32>
      %301 = vector.shape_cast %298 : vector<8x32xf32> to vector<1x8x32xf32>
      tpu.vector_store %arg18[%c0_201, %c0_202, %c0_203], %301 {strides = array<i32>} : memref<1x8x32xf32, #tpu.memory_space<vmem>>, vector<1x8x32xf32>,
    } else {
    }
    %c0 = arith.constant 0 : index
    %c0_1 = arith.constant 0 : index
    %c0_2 = arith.constant 0 : index
    %3 = vector.load %arg18[%c0, %c0_1, %c0_2] : memref<1x8x32xf32, #tpu.memory_space<vmem>>, vector<1x8x32xf32>
    %4 = vector.shape_cast %3 : vector<1x8x32xf32> to vector<8x32xf32>
    %5 = arith.truncf %4 : vector<8x32xf32> to vector<8x32xbf16>
    %c0_3 = arith.constant 0 : index
    %c0_4 = arith.constant 0 : index
    %c0_5 = arith.constant 0 : index
    %6 = vector.load %arg3[%c0_3, %c0_4, %c0_5] : memref<1x1x8xf32, #tpu.memory_space<vmem>>, vector<1x1x8xf32>
    %7 = vector.shape_cast %6 : vector<1x1x8xf32> to vector<1x8xf32>
    %cst = arith.constant 0.000000e+00 : f32
    %8 = vector.broadcast %cst : f32 to vector<8x32xf32>
    %c0_6 = arith.constant 0 : index
    %c0_7 = arith.constant 0 : index
    %c0_8 = arith.constant 0 : index
    %c0_9 = arith.constant 0 : index
    %9 = vector.load %arg6[%c0_6, %c0_7, %c0_8, %c0_9] : memref<1x12x32x8xbf16, #tpu.memory_space<vmem>>, vector<1x1x32x8xbf16>
    %10 = vector.shape_cast %9 : vector<1x1x32x8xbf16> to vector<32x8xbf16>
    %cst_10 = arith.constant dense<0.000000e+00> : vector<8x8xf32>
    %11 = tpu.matmul %5, %10, %cst_10 {dimension_numbers = #tpu.dot_dimension_numbers<[1], [0], [0], [1], [0, 0, 1, 1], [], []>} : vector<8x32xbf16>, vector<32x8xbf16>, vector<8x8xf32> -> vector<8x8xf32>
    %c0_11 = arith.constant 0 : index
    %c0_12 = arith.constant 0 : index
    %c0_13 = arith.constant 0 : index
    %c0_14 = arith.constant 0 : index
    %12 = vector.load %arg7[%c0_11, %c0_12, %c0_13, %c0_14] : memref<1x12x1x8xf32, #tpu.memory_space<vmem>>, vector<1x1x1x8xf32>
    %13 = vector.shape_cast %12 : vector<1x1x1x8xf32> to vector<1x8xf32>
    %14 = vector.broadcast %13 : vector<1x8xf32> to vector<8x8xf32>
    %15 = arith.addf %11, %14 : vector<8x8xf32>
    %c0_15 = arith.constant 0 : index
    %c4 = arith.constant 4 : index
    %c0_16 = arith.constant 0 : index
    %c0_17 = arith.constant 0 : index
    %16 = vector.load %arg6[%c0_15, %c4, %c0_16, %c0_17] : memref<1x12x32x8xbf16, #tpu.memory_space<vmem>>, vector<1x1x32x8xbf16>
    %17 = vector.shape_cast %16 : vector<1x1x32x8xbf16> to vector<32x8xbf16>
    %cst_18 = arith.constant dense<0.000000e+00> : vector<8x8xf32>
    %18 = tpu.matmul %5, %17, %cst_18 {dimension_numbers = #tpu.dot_dimension_numbers<[1], [0], [0], [1], [0, 0, 1, 1], [], []>} : vector<8x32xbf16>, vector<32x8xbf16>, vector<8x8xf32> -> vector<8x8xf32>
    %c0_19 = arith.constant 0 : index
    %c4_20 = arith.constant 4 : index
    %c0_21 = arith.constant 0 : index
    %c0_22 = arith.constant 0 : index
    %19 = vector.load %arg7[%c0_19, %c4_20, %c0_21, %c0_22] : memref<1x12x1x8xf32, #tpu.memory_space<vmem>>, vector<1x1x1x8xf32>
    %20 = vector.shape_cast %19 : vector<1x1x1x8xf32> to vector<1x8xf32>
    %21 = vector.broadcast %20 : vector<1x8xf32> to vector<8x8xf32>
    %22 = arith.addf %18, %21 : vector<8x8xf32>
    %c0_23 = arith.constant 0 : index
    %c8 = arith.constant 8 : index
    %c0_24 = arith.constant 0 : index
    %c0_25 = arith.constant 0 : index
    %23 = vector.load %arg6[%c0_23, %c8, %c0_24, %c0_25] : memref<1x12x32x8xbf16, #tpu.memory_space<vmem>>, vector<1x1x32x8xbf16>
    %24 = vector.shape_cast %23 : vector<1x1x32x8xbf16> to vector<32x8xbf16>
    %cst_26 = arith.constant dense<0.000000e+00> : vector<8x8xf32>
    %25 = tpu.matmul %5, %24, %cst_26 {dimension_numbers = #tpu.dot_dimension_numbers<[1], [0], [0], [1], [0, 0, 1, 1], [], []>} : vector<8x32xbf16>, vector<32x8xbf16>, vector<8x8xf32> -> vector<8x8xf32>
    %c0_27 = arith.constant 0 : index
    %c8_28 = arith.constant 8 : index
    %c0_29 = arith.constant 0 : index
    %c0_30 = arith.constant 0 : index
    %26 = vector.load %arg7[%c0_27, %c8_28, %c0_29, %c0_30] : memref<1x12x1x8xf32, #tpu.memory_space<vmem>>, vector<1x1x1x8xf32>
    %27 = vector.shape_cast %26 : vector<1x1x1x8xf32> to vector<1x8xf32>
    %28 = vector.broadcast %27 : vector<1x8xf32> to vector<8x8xf32>
    %29 = arith.addf %25, %28 : vector<8x8xf32>
    %cst_31 = arith.constant 0.353553385 : f32
    %30 = vector.broadcast %cst_31 : f32 to vector<8x8xf32>
    %31 = arith.mulf %15, %30 : vector<8x8xf32>
    %32 = arith.truncf %31 : vector<8x8xf32> to vector<8x8xbf16>
    %33 = arith.truncf %22 : vector<8x8xf32> to vector<8x8xbf16>
    %cst_32 = arith.constant dense<0.000000e+00> : vector<8x8xf32>
    %34 = tpu.matmul %32, %33, %cst_32 {dimension_numbers = #tpu.dot_dimension_numbers<[1], [1], [0], [0], [0, 0, 1, 0], [], []>} : vector<8x8xbf16>, vector<8x8xbf16>, vector<8x8xf32> -> vector<8x8xf32>
    %35 = vector.broadcast %7 : vector<1x8xf32> to vector<8x8xf32>
    %36 = arith.addf %34, %35 : vector<8x8xf32>
    %cst_33 = arith.constant dense<0xFF800000> : vector<8xf32>
    %37 = vector.multi_reduction <maximumf>, %36, %cst_33 [1] : vector<8x8xf32> to vector<8xf32>
    %38 = vector.shape_cast %37 : vector<8xf32> to vector<8x1xf32>
    %39 = vector.broadcast %38 : vector<8x1xf32> to vector<8x8xf32>
    %40 = arith.subf %36, %39 : vector<8x8xf32>
    %41 = math.exp %40 : vector<8x8xf32>
    %cst_34 = arith.constant dense<0.000000e+00> : vector<8xf32>
    %42 = vector.multi_reduction <add>, %41, %cst_34 [1] : vector<8x8xf32> to vector<8xf32>
    %43 = vector.shape_cast %42 : vector<8xf32> to vector<8x1xf32>
    %44 = vector.broadcast %43 : vector<8x1xf32> to vector<8x8xf32>
    %45 = arith.divf %41, %44 : vector<8x8xf32>
    %46 = arith.truncf %45 : vector<8x8xf32> to vector<8x8xbf16>
    %47 = arith.truncf %29 : vector<8x8xf32> to vector<8x8xbf16>
    %cst_35 = arith.constant dense<0.000000e+00> : vector<8x8xf32>
    %48 = tpu.matmul %46, %47, %cst_35 {dimension_numbers = #tpu.dot_dimension_numbers<[1], [0], [0], [1], [0, 0, 1, 1], [], []>} : vector<8x8xbf16>, vector<8x8xbf16>, vector<8x8xf32> -> vector<8x8xf32>
    %49 = arith.truncf %48 : vector<8x8xf32> to vector<8x8xbf16>
    %c0_36 = arith.constant 0 : index
    %c0_37 = arith.constant 0 : index
    %c0_38 = arith.constant 0 : index
    %c0_39 = arith.constant 0 : index
    %50 = vector.load %arg8[%c0_36, %c0_37, %c0_38, %c0_39] : memref<1x4x8x32xbf16, #tpu.memory_space<vmem>>, vector<1x1x8x32xbf16>
    %51 = vector.shape_cast %50 : vector<1x1x8x32xbf16> to vector<8x32xbf16>
    %cst_40 = arith.constant dense<0.000000e+00> : vector<8x32xf32>
    %52 = tpu.matmul %49, %51, %cst_40 {dimension_numbers = #tpu.dot_dimension_numbers<[1], [0], [0], [1], [0, 0, 1, 1], [], []>} : vector<8x8xbf16>, vector<8x32xbf16>, vector<8x32xf32> -> vector<8x32xf32>
    %53 = arith.addf %8, %52 : vector<8x32xf32>
    %c0_41 = arith.constant 0 : index
    %c1 = arith.constant 1 : index
    %c0_42 = arith.constant 0 : index
    %c0_43 = arith.constant 0 : index
    %54 = vector.load %arg6[%c0_41, %c1, %c0_42, %c0_43] : memref<1x12x32x8xbf16, #tpu.memory_space<vmem>>, vector<1x1x32x8xbf16>
    %55 = vector.shape_cast %54 : vector<1x1x32x8xbf16> to vector<32x8xbf16>
    %cst_44 = arith.constant dense<0.000000e+00> : vector<8x8xf32>
    %56 = tpu.matmul %5, %55, %cst_44 {dimension_numbers = #tpu.dot_dimension_numbers<[1], [0], [0], [1], [0, 0, 1, 1], [], []>} : vector<8x32xbf16>, vector<32x8xbf16>, vector<8x8xf32> -> vector<8x8xf32>
    %c0_45 = arith.constant 0 : index
    %c1_46 = arith.constant 1 : index
    %c0_47 = arith.constant 0 : index
    %c0_48 = arith.constant 0 : index
    %57 = vector.load %arg7[%c0_45, %c1_46, %c0_47, %c0_48] : memref<1x12x1x8xf32, #tpu.memory_space<vmem>>, vector<1x1x1x8xf32>
    %58 = vector.shape_cast %57 : vector<1x1x1x8xf32> to vector<1x8xf32>
    %59 = vector.broadcast %58 : vector<1x8xf32> to vector<8x8xf32>
    %60 = arith.addf %56, %59 : vector<8x8xf32>
    %c0_49 = arith.constant 0 : index
    %c5 = arith.constant 5 : index
    %c0_50 = arith.constant 0 : index
    %c0_51 = arith.constant 0 : index
    %61 = vector.load %arg6[%c0_49, %c5, %c0_50, %c0_51] : memref<1x12x32x8xbf16, #tpu.memory_space<vmem>>, vector<1x1x32x8xbf16>
    %62 = vector.shape_cast %61 : vector<1x1x32x8xbf16> to vector<32x8xbf16>
    %cst_52 = arith.constant dense<0.000000e+00> : vector<8x8xf32>
    %63 = tpu.matmul %5, %62, %cst_52 {dimension_numbers = #tpu.dot_dimension_numbers<[1], [0], [0], [1], [0, 0, 1, 1], [], []>} : vector<8x32xbf16>, vector<32x8xbf16>, vector<8x8xf32> -> vector<8x8xf32>
    %c0_53 = arith.constant 0 : index
    %c5_54 = arith.constant 5 : index
    %c0_55 = arith.constant 0 : index
    %c0_56 = arith.constant 0 : index
    %64 = vector.load %arg7[%c0_53, %c5_54, %c0_55, %c0_56] : memref<1x12x1x8xf32, #tpu.memory_space<vmem>>, vector<1x1x1x8xf32>
    %65 = vector.shape_cast %64 : vector<1x1x1x8xf32> to vector<1x8xf32>
    %66 = vector.broadcast %65 : vector<1x8xf32> to vector<8x8xf32>
    %67 = arith.addf %63, %66 : vector<8x8xf32>
    %c0_57 = arith.constant 0 : index
    %c9 = arith.constant 9 : index
    %c0_58 = arith.constant 0 : index
    %c0_59 = arith.constant 0 : index
    %68 = vector.load %arg6[%c0_57, %c9, %c0_58, %c0_59] : memref<1x12x32x8xbf16, #tpu.memory_space<vmem>>, vector<1x1x32x8xbf16>
    %69 = vector.shape_cast %68 : vector<1x1x32x8xbf16> to vector<32x8xbf16>
    %cst_60 = arith.constant dense<0.000000e+00> : vector<8x8xf32>
    %70 = tpu.matmul %5, %69, %cst_60 {dimension_numbers = #tpu.dot_dimension_numbers<[1], [0], [0], [1], [0, 0, 1, 1], [], []>} : vector<8x32xbf16>, vector<32x8xbf16>, vector<8x8xf32> -> vector<8x8xf32>
    %c0_61 = arith.constant 0 : index
    %c9_62 = arith.constant 9 : index
    %c0_63 = arith.constant 0 : index
    %c0_64 = arith.constant 0 : index
    %71 = vector.load %arg7[%c0_61, %c9_62, %c0_63, %c0_64] : memref<1x12x1x8xf32, #tpu.memory_space<vmem>>, vector<1x1x1x8xf32>
    %72 = vector.shape_cast %71 : vector<1x1x1x8xf32> to vector<1x8xf32>
    %73 = vector.broadcast %72 : vector<1x8xf32> to vector<8x8xf32>
    %74 = arith.addf %70, %73 : vector<8x8xf32>
    %cst_65 = arith.constant 0.353553385 : f32
    %75 = vector.broadcast %cst_65 : f32 to vector<8x8xf32>
    %76 = arith.mulf %60, %75 : vector<8x8xf32>
    %77 = arith.truncf %76 : vector<8x8xf32> to vector<8x8xbf16>
    %78 = arith.truncf %67 : vector<8x8xf32> to vector<8x8xbf16>
    %cst_66 = arith.constant dense<0.000000e+00> : vector<8x8xf32>
    %79 = tpu.matmul %77, %78, %cst_66 {dimension_numbers = #tpu.dot_dimension_numbers<[1], [1], [0], [0], [0, 0, 1, 0], [], []>} : vector<8x8xbf16>, vector<8x8xbf16>, vector<8x8xf32> -> vector<8x8xf32>
    %80 = vector.broadcast %7 : vector<1x8xf32> to vector<8x8xf32>
    %81 = arith.addf %79, %80 : vector<8x8xf32>
    %cst_67 = arith.constant dense<0xFF800000> : vector<8xf32>
    %82 = vector.multi_reduction <maximumf>, %81, %cst_67 [1] : vector<8x8xf32> to vector<8xf32>
    %83 = vector.shape_cast %82 : vector<8xf32> to vector<8x1xf32>
    %84 = vector.broadcast %83 : vector<8x1xf32> to vector<8x8xf32>
    %85 = arith.subf %81, %84 : vector<8x8xf32>
    %86 = math.exp %85 : vector<8x8xf32>
    %cst_68 = arith.constant dense<0.000000e+00> : vector<8xf32>
    %87 = vector.multi_reduction <add>, %86, %cst_68 [1] : vector<8x8xf32> to vector<8xf32>
    %88 = vector.shape_cast %87 : vector<8xf32> to vector<8x1xf32>
    %89 = vector.broadcast %88 : vector<8x1xf32> to vector<8x8xf32>
    %90 = arith.divf %86, %89 : vector<8x8xf32>
    %91 = arith.truncf %90 : vector<8x8xf32> to vector<8x8xbf16>
    %92 = arith.truncf %74 : vector<8x8xf32> to vector<8x8xbf16>
    %cst_69 = arith.constant dense<0.000000e+00> : vector<8x8xf32>
    %93 = tpu.matmul %91, %92, %cst_69 {dimension_numbers = #tpu.dot_dimension_numbers<[1], [0], [0], [1], [0, 0, 1, 1], [], []>} : vector<8x8xbf16>, vector<8x8xbf16>, vector<8x8xf32> -> vector<8x8xf32>
    %94 = arith.truncf %93 : vector<8x8xf32> to vector<8x8xbf16>
    %c0_70 = arith.constant 0 : index
    %c1_71 = arith.constant 1 : index
    %c0_72 = arith.constant 0 : index
    %c0_73 = arith.constant 0 : index
    %95 = vector.load %arg8[%c0_70, %c1_71, %c0_72, %c0_73] : memref<1x4x8x32xbf16, #tpu.memory_space<vmem>>, vector<1x1x8x32xbf16>
    %96 = vector.shape_cast %95 : vector<1x1x8x32xbf16> to vector<8x32xbf16>
    %cst_74 = arith.constant dense<0.000000e+00> : vector<8x32xf32>
    %97 = tpu.matmul %94, %96, %cst_74 {dimension_numbers = #tpu.dot_dimension_numbers<[1], [0], [0], [1], [0, 0, 1, 1], [], []>} : vector<8x8xbf16>, vector<8x32xbf16>, vector<8x32xf32> -> vector<8x32xf32>
    %98 = arith.addf %53, %97 : vector<8x32xf32>
    %c0_75 = arith.constant 0 : index
    %c2 = arith.constant 2 : index
    %c0_76 = arith.constant 0 : index
    %c0_77 = arith.constant 0 : index
    %99 = vector.load %arg6[%c0_75, %c2, %c0_76, %c0_77] : memref<1x12x32x8xbf16, #tpu.memory_space<vmem>>, vector<1x1x32x8xbf16>
    %100 = vector.shape_cast %99 : vector<1x1x32x8xbf16> to vector<32x8xbf16>
    %cst_78 = arith.constant dense<0.000000e+00> : vector<8x8xf32>
    %101 = tpu.matmul %5, %100, %cst_78 {dimension_numbers = #tpu.dot_dimension_numbers<[1], [0], [0], [1], [0, 0, 1, 1], [], []>} : vector<8x32xbf16>, vector<32x8xbf16>, vector<8x8xf32> -> vector<8x8xf32>
    %c0_79 = arith.constant 0 : index
    %c2_80 = arith.constant 2 : index
    %c0_81 = arith.constant 0 : index
    %c0_82 = arith.constant 0 : index
    %102 = vector.load %arg7[%c0_79, %c2_80, %c0_81, %c0_82] : memref<1x12x1x8xf32, #tpu.memory_space<vmem>>, vector<1x1x1x8xf32>
    %103 = vector.shape_cast %102 : vector<1x1x1x8xf32> to vector<1x8xf32>
    %104 = vector.broadcast %103 : vector<1x8xf32> to vector<8x8xf32>
    %105 = arith.addf %101, %104 : vector<8x8xf32>
    %c0_83 = arith.constant 0 : index
    %c6 = arith.constant 6 : index
    %c0_84 = arith.constant 0 : index
    %c0_85 = arith.constant 0 : index
    %106 = vector.load %arg6[%c0_83, %c6, %c0_84, %c0_85] : memref<1x12x32x8xbf16, #tpu.memory_space<vmem>>, vector<1x1x32x8xbf16>
    %107 = vector.shape_cast %106 : vector<1x1x32x8xbf16> to vector<32x8xbf16>
    %cst_86 = arith.constant dense<0.000000e+00> : vector<8x8xf32>
    %108 = tpu.matmul %5, %107, %cst_86 {dimension_numbers = #tpu.dot_dimension_numbers<[1], [0], [0], [1], [0, 0, 1, 1], [], []>} : vector<8x32xbf16>, vector<32x8xbf16>, vector<8x8xf32> -> vector<8x8xf32>
    %c0_87 = arith.constant 0 : index
    %c6_88 = arith.constant 6 : index
    %c0_89 = arith.constant 0 : index
    %c0_90 = arith.constant 0 : index
    %109 = vector.load %arg7[%c0_87, %c6_88, %c0_89, %c0_90] : memref<1x12x1x8xf32, #tpu.memory_space<vmem>>, vector<1x1x1x8xf32>
    %110 = vector.shape_cast %109 : vector<1x1x1x8xf32> to vector<1x8xf32>
    %111 = vector.broadcast %110 : vector<1x8xf32> to vector<8x8xf32>
    %112 = arith.addf %108, %111 : vector<8x8xf32>
    %c0_91 = arith.constant 0 : index
    %c10 = arith.constant 10 : index
    %c0_92 = arith.constant 0 : index
    %c0_93 = arith.constant 0 : index
    %113 = vector.load %arg6[%c0_91, %c10, %c0_92, %c0_93] : memref<1x12x32x8xbf16, #tpu.memory_space<vmem>>, vector<1x1x32x8xbf16>
    %114 = vector.shape_cast %113 : vector<1x1x32x8xbf16> to vector<32x8xbf16>
    %cst_94 = arith.constant dense<0.000000e+00> : vector<8x8xf32>
    %115 = tpu.matmul %5, %114, %cst_94 {dimension_numbers = #tpu.dot_dimension_numbers<[1], [0], [0], [1], [0, 0, 1, 1], [], []>} : vector<8x32xbf16>, vector<32x8xbf16>, vector<8x8xf32> -> vector<8x8xf32>
    %c0_95 = arith.constant 0 : index
    %c10_96 = arith.constant 10 : index
    %c0_97 = arith.constant 0 : index
    %c0_98 = arith.constant 0 : index
    %116 = vector.load %arg7[%c0_95, %c10_96, %c0_97, %c0_98] : memref<1x12x1x8xf32, #tpu.memory_space<vmem>>, vector<1x1x1x8xf32>
    %117 = vector.shape_cast %116 : vector<1x1x1x8xf32> to vector<1x8xf32>
    %118 = vector.broadcast %117 : vector<1x8xf32> to vector<8x8xf32>
    %119 = arith.addf %115, %118 : vector<8x8xf32>
    %cst_99 = arith.constant 0.353553385 : f32
    %120 = vector.broadcast %cst_99 : f32 to vector<8x8xf32>
    %121 = arith.mulf %105, %120 : vector<8x8xf32>
    %122 = arith.truncf %121 : vector<8x8xf32> to vector<8x8xbf16>
    %123 = arith.truncf %112 : vector<8x8xf32> to vector<8x8xbf16>
    %cst_100 = arith.constant dense<0.000000e+00> : vector<8x8xf32>
    %124 = tpu.matmul %122, %123, %cst_100 {dimension_numbers = #tpu.dot_dimension_numbers<[1], [1], [0], [0], [0, 0, 1, 0], [], []>} : vector<8x8xbf16>, vector<8x8xbf16>, vector<8x8xf32> -> vector<8x8xf32>
    %125 = vector.broadcast %7 : vector<1x8xf32> to vector<8x8xf32>
    %126 = arith.addf %124, %125 : vector<8x8xf32>
    %cst_101 = arith.constant dense<0xFF800000> : vector<8xf32>
    %127 = vector.multi_reduction <maximumf>, %126, %cst_101 [1] : vector<8x8xf32> to vector<8xf32>
    %128 = vector.shape_cast %127 : vector<8xf32> to vector<8x1xf32>
    %129 = vector.broadcast %128 : vector<8x1xf32> to vector<8x8xf32>
    %130 = arith.subf %126, %129 : vector<8x8xf32>
    %131 = math.exp %130 : vector<8x8xf32>
    %cst_102 = arith.constant dense<0.000000e+00> : vector<8xf32>
    %132 = vector.multi_reduction <add>, %131, %cst_102 [1] : vector<8x8xf32> to vector<8xf32>
    %133 = vector.shape_cast %132 : vector<8xf32> to vector<8x1xf32>
    %134 = vector.broadcast %133 : vector<8x1xf32> to vector<8x8xf32>
    %135 = arith.divf %131, %134 : vector<8x8xf32>
    %136 = arith.truncf %135 : vector<8x8xf32> to vector<8x8xbf16>
    %137 = arith.truncf %119 : vector<8x8xf32> to vector<8x8xbf16>
    %cst_103 = arith.constant dense<0.000000e+00> : vector<8x8xf32>
    %138 = tpu.matmul %136, %137, %cst_103 {dimension_numbers = #tpu.dot_dimension_numbers<[1], [0], [0], [1], [0, 0, 1, 1], [], []>} : vector<8x8xbf16>, vector<8x8xbf16>, vector<8x8xf32> -> vector<8x8xf32>
    %139 = arith.truncf %138 : vector<8x8xf32> to vector<8x8xbf16>
    %c0_104 = arith.constant 0 : index
    %c2_105 = arith.constant 2 : index
    %c0_106 = arith.constant 0 : index
    %c0_107 = arith.constant 0 : index
    %140 = vector.load %arg8[%c0_104, %c2_105, %c0_106, %c0_107] : memref<1x4x8x32xbf16, #tpu.memory_space<vmem>>, vector<1x1x8x32xbf16>
    %141 = vector.shape_cast %140 : vector<1x1x8x32xbf16> to vector<8x32xbf16>
    %cst_108 = arith.constant dense<0.000000e+00> : vector<8x32xf32>
    %142 = tpu.matmul %139, %141, %cst_108 {dimension_numbers = #tpu.dot_dimension_numbers<[1], [0], [0], [1], [0, 0, 1, 1], [], []>} : vector<8x8xbf16>, vector<8x32xbf16>, vector<8x32xf32> -> vector<8x32xf32>
    %143 = arith.addf %98, %142 : vector<8x32xf32>
    %c0_109 = arith.constant 0 : index
    %c3 = arith.constant 3 : index
    %c0_110 = arith.constant 0 : index
    %c0_111 = arith.constant 0 : index
    %144 = vector.load %arg6[%c0_109, %c3, %c0_110, %c0_111] : memref<1x12x32x8xbf16, #tpu.memory_space<vmem>>, vector<1x1x32x8xbf16>
    %145 = vector.shape_cast %144 : vector<1x1x32x8xbf16> to vector<32x8xbf16>
    %cst_112 = arith.constant dense<0.000000e+00> : vector<8x8xf32>
    %146 = tpu.matmul %5, %145, %cst_112 {dimension_numbers = #tpu.dot_dimension_numbers<[1], [0], [0], [1], [0, 0, 1, 1], [], []>} : vector<8x32xbf16>, vector<32x8xbf16>, vector<8x8xf32> -> vector<8x8xf32>
    %c0_113 = arith.constant 0 : index
    %c3_114 = arith.constant 3 : index
    %c0_115 = arith.constant 0 : index
    %c0_116 = arith.constant 0 : index
    %147 = vector.load %arg7[%c0_113, %c3_114, %c0_115, %c0_116] : memref<1x12x1x8xf32, #tpu.memory_space<vmem>>, vector<1x1x1x8xf32>
    %148 = vector.shape_cast %147 : vector<1x1x1x8xf32> to vector<1x8xf32>
    %149 = vector.broadcast %148 : vector<1x8xf32> to vector<8x8xf32>
    %150 = arith.addf %146, %149 : vector<8x8xf32>
    %c0_117 = arith.constant 0 : index
    %c7 = arith.constant 7 : index
    %c0_118 = arith.constant 0 : index
    %c0_119 = arith.constant 0 : index
    %151 = vector.load %arg6[%c0_117, %c7, %c0_118, %c0_119] : memref<1x12x32x8xbf16, #tpu.memory_space<vmem>>, vector<1x1x32x8xbf16>
    %152 = vector.shape_cast %151 : vector<1x1x32x8xbf16> to vector<32x8xbf16>
    %cst_120 = arith.constant dense<0.000000e+00> : vector<8x8xf32>
    %153 = tpu.matmul %5, %152, %cst_120 {dimension_numbers = #tpu.dot_dimension_numbers<[1], [0], [0], [1], [0, 0, 1, 1], [], []>} : vector<8x32xbf16>, vector<32x8xbf16>, vector<8x8xf32> -> vector<8x8xf32>
    %c0_121 = arith.constant 0 : index
    %c7_122 = arith.constant 7 : index
    %c0_123 = arith.constant 0 : index
    %c0_124 = arith.constant 0 : index
    %154 = vector.load %arg7[%c0_121, %c7_122, %c0_123, %c0_124] : memref<1x12x1x8xf32, #tpu.memory_space<vmem>>, vector<1x1x1x8xf32>
    %155 = vector.shape_cast %154 : vector<1x1x1x8xf32> to vector<1x8xf32>
    %156 = vector.broadcast %155 : vector<1x8xf32> to vector<8x8xf32>
    %157 = arith.addf %153, %156 : vector<8x8xf32>
    %c0_125 = arith.constant 0 : index
    %c11 = arith.constant 11 : index
    %c0_126 = arith.constant 0 : index
    %c0_127 = arith.constant 0 : index
    %158 = vector.load %arg6[%c0_125, %c11, %c0_126, %c0_127] : memref<1x12x32x8xbf16, #tpu.memory_space<vmem>>, vector<1x1x32x8xbf16>
    %159 = vector.shape_cast %158 : vector<1x1x32x8xbf16> to vector<32x8xbf16>
    %cst_128 = arith.constant dense<0.000000e+00> : vector<8x8xf32>
    %160 = tpu.matmul %5, %159, %cst_128 {dimension_numbers = #tpu.dot_dimension_numbers<[1], [0], [0], [1], [0, 0, 1, 1], [], []>} : vector<8x32xbf16>, vector<32x8xbf16>, vector<8x8xf32> -> vector<8x8xf32>
    %c0_129 = arith.constant 0 : index
    %c11_130 = arith.constant 11 : index
    %c0_131 = arith.constant 0 : index
    %c0_132 = arith.constant 0 : index
    %161 = vector.load %arg7[%c0_129, %c11_130, %c0_131, %c0_132] : memref<1x12x1x8xf32, #tpu.memory_space<vmem>>, vector<1x1x1x8xf32>
    %162 = vector.shape_cast %161 : vector<1x1x1x8xf32> to vector<1x8xf32>
    %163 = vector.broadcast %162 : vector<1x8xf32> to vector<8x8xf32>
    %164 = arith.addf %160, %163 : vector<8x8xf32>
    %cst_133 = arith.constant 0.353553385 : f32
    %165 = vector.broadcast %cst_133 : f32 to vector<8x8xf32>
    %166 = arith.mulf %150, %165 : vector<8x8xf32>
    %167 = arith.truncf %166 : vector<8x8xf32> to vector<8x8xbf16>
    %168 = arith.truncf %157 : vector<8x8xf32> to vector<8x8xbf16>
    %cst_134 = arith.constant dense<0.000000e+00> : vector<8x8xf32>
    %169 = tpu.matmul %167, %168, %cst_134 {dimension_numbers = #tpu.dot_dimension_numbers<[1], [1], [0], [0], [0, 0, 1, 0], [], []>} : vector<8x8xbf16>, vector<8x8xbf16>, vector<8x8xf32> -> vector<8x8xf32>
    %170 = vector.broadcast %7 : vector<1x8xf32> to vector<8x8xf32>
    %171 = arith.addf %169, %170 : vector<8x8xf32>
    %cst_135 = arith.constant dense<0xFF800000> : vector<8xf32>
    %172 = vector.multi_reduction <maximumf>, %171, %cst_135 [1] : vector<8x8xf32> to vector<8xf32>
    %173 = vector.shape_cast %172 : vector<8xf32> to vector<8x1xf32>
    %174 = vector.broadcast %173 : vector<8x1xf32> to vector<8x8xf32>
    %175 = arith.subf %171, %174 : vector<8x8xf32>
    %176 = math.exp %175 : vector<8x8xf32>
    %cst_136 = arith.constant dense<0.000000e+00> : vector<8xf32>
    %177 = vector.multi_reduction <add>, %176, %cst_136 [1] : vector<8x8xf32> to vector<8xf32>
    %178 = vector.shape_cast %177 : vector<8xf32> to vector<8x1xf32>
    %179 = vector.broadcast %178 : vector<8x1xf32> to vector<8x8xf32>
    %180 = arith.divf %176, %179 : vector<8x8xf32>
    %181 = arith.truncf %180 : vector<8x8xf32> to vector<8x8xbf16>
    %182 = arith.truncf %164 : vector<8x8xf32> to vector<8x8xbf16>
    %cst_137 = arith.constant dense<0.000000e+00> : vector<8x8xf32>
    %183 = tpu.matmul %181, %182, %cst_137 {dimension_numbers = #tpu.dot_dimension_numbers<[1], [0], [0], [1], [0, 0, 1, 1], [], []>} : vector<8x8xbf16>, vector<8x8xbf16>, vector<8x8xf32> -> vector<8x8xf32>
    %184 = arith.truncf %183 : vector<8x8xf32> to vector<8x8xbf16>
    %c0_138 = arith.constant 0 : index
    %c3_139 = arith.constant 3 : index
    %c0_140 = arith.constant 0 : index
    %c0_141 = arith.constant 0 : index
    %185 = vector.load %arg8[%c0_138, %c3_139, %c0_140, %c0_141] : memref<1x4x8x32xbf16, #tpu.memory_space<vmem>>, vector<1x1x8x32xbf16>
    %186 = vector.shape_cast %185 : vector<1x1x8x32xbf16> to vector<8x32xbf16>
    %cst_142 = arith.constant dense<0.000000e+00> : vector<8x32xf32>
    %187 = tpu.matmul %184, %186, %cst_142 {dimension_numbers = #tpu.dot_dimension_numbers<[1], [0], [0], [1], [0, 0, 1, 1], [], []>} : vector<8x8xbf16>, vector<8x32xbf16>, vector<8x32xf32> -> vector<8x32xf32>
    %188 = arith.addf %143, %187 : vector<8x32xf32>
    %c0_143 = arith.constant 0 : index
    %c0_144 = arith.constant 0 : index
    %c0_145 = arith.constant 0 : index
    %189 = vector.load %arg9[%c0_143, %c0_144, %c0_145] : memref<1x1x32xf32, #tpu.memory_space<vmem>>, vector<1x1x32xf32>
    %190 = vector.shape_cast %189 : vector<1x1x32xf32> to vector<1x32xf32>
    %191 = vector.broadcast %190 : vector<1x32xf32> to vector<8x32xf32>
    %192 = arith.addf %188, %191 : vector<8x32xf32>
    %193 = arith.addf %192, %4 : vector<8x32xf32>
    %c0_146 = arith.constant 0 : index
    %c0_147 = arith.constant 0 : index
    %c0_148 = arith.constant 0 : index
    %194 = vector.load %arg10[%c0_146, %c0_147, %c0_148] : memref<1x1x32xf32, #tpu.memory_space<vmem>>, vector<1x1x32xf32>
    %195 = vector.shape_cast %194 : vector<1x1x32xf32> to vector<1x32xf32>
    %c0_149 = arith.constant 0 : index
    %c0_150 = arith.constant 0 : index
    %c0_151 = arith.constant 0 : index
    %196 = vector.load %arg11[%c0_149, %c0_150, %c0_151] : memref<1x1x32xf32, #tpu.memory_space<vmem>>, vector<1x1x32xf32>
    %197 = vector.shape_cast %196 : vector<1x1x32xf32> to vector<1x32xf32>
    %cst_152 = arith.constant dense<0.000000e+00> : vector<8xf32>
    %198 = vector.multi_reduction <add>, %193, %cst_152 [1] : vector<8x32xf32> to vector<8xf32>
    %199 = vector.shape_cast %198 : vector<8xf32> to vector<8x1xf32>
    %cst_153 = arith.constant 3.200000e+01 : f32
    %200 = vector.broadcast %cst_153 : f32 to vector<8x1xf32>
    %201 = arith.divf %199, %200 : vector<8x1xf32>
    %202 = vector.broadcast %201 : vector<8x1xf32> to vector<8x32xf32>
    %203 = arith.subf %193, %202 : vector<8x32xf32>
    %204 = arith.mulf %203, %203 : vector<8x32xf32>
    %cst_154 = arith.constant dense<0.000000e+00> : vector<8xf32>
    %205 = vector.multi_reduction <add>, %204, %cst_154 [1] : vector<8x32xf32> to vector<8xf32>
    %206 = vector.shape_cast %205 : vector<8xf32> to vector<8x1xf32>
    %cst_155 = arith.constant 3.200000e+01 : f32
    %207 = vector.broadcast %cst_155 : f32 to vector<8x1xf32>
    %208 = arith.divf %206, %207 : vector<8x1xf32>
    %cst_156 = arith.constant 9.99999996E-13 : f32
    %209 = vector.broadcast %cst_156 : f32 to vector<8x1xf32>
    %210 = arith.addf %208, %209 : vector<8x1xf32>
    %211 = math.rsqrt %210 : vector<8x1xf32>
    %212 = vector.broadcast %211 : vector<8x1xf32> to vector<8x32xf32>
    %213 = arith.mulf %203, %212 : vector<8x32xf32>
    %214 = vector.broadcast %195 : vector<1x32xf32> to vector<8x32xf32>
    %215 = arith.mulf %213, %214 : vector<8x32xf32>
    %216 = vector.broadcast %197 : vector<1x32xf32> to vector<8x32xf32>
    %217 = arith.addf %215, %216 : vector<8x32xf32>
    %218 = arith.truncf %217 : vector<8x32xf32> to vector<8x32xbf16>
    %c0_157 = arith.constant 0 : index
    %c0_158 = arith.constant 0 : index
    %c0_159 = arith.constant 0 : index
    %219 = vector.load %arg12[%c0_157, %c0_158, %c0_159] : memref<1x32x64xbf16, #tpu.memory_space<vmem>>, vector<1x32x64xbf16>
    %220 = vector.shape_cast %219 : vector<1x32x64xbf16> to vector<32x64xbf16>
    %cst_160 = arith.constant dense<0.000000e+00> : vector<8x64xf32>
    %221 = tpu.matmul %218, %220, %cst_160 {dimension_numbers = #tpu.dot_dimension_numbers<[1], [0], [0], [1], [0, 0, 1, 1], [], []>} : vector<8x32xbf16>, vector<32x64xbf16>, vector<8x64xf32> -> vector<8x64xf32>
    %c0_161 = arith.constant 0 : index
    %c0_162 = arith.constant 0 : index
    %c0_163 = arith.constant 0 : index
    %222 = vector.load %arg13[%c0_161, %c0_162, %c0_163] : memref<1x1x64xf32, #tpu.memory_space<vmem>>, vector<1x1x64xf32>
    %223 = vector.shape_cast %222 : vector<1x1x64xf32> to vector<1x64xf32>
    %224 = vector.broadcast %223 : vector<1x64xf32> to vector<8x64xf32>
    %225 = arith.addf %221, %224 : vector<8x64xf32>
    %cst_164 = arith.constant 5.000000e-01 : f32
    %226 = vector.broadcast %cst_164 : f32 to vector<8x64xf32>
    %227 = arith.mulf %226, %225 : vector<8x64xf32>
    %cst_165 = arith.constant 4.471500e-02 : f32
    %228 = vector.broadcast %cst_165 : f32 to vector<8x64xf32>
    %229 = arith.mulf %228, %225 : vector<8x64xf32>
    %230 = arith.mulf %229, %225 : vector<8x64xf32>
    %231 = arith.mulf %230, %225 : vector<8x64xf32>
    %232 = arith.addf %225, %231 : vector<8x64xf32>
    %cst_166 = arith.constant 0.797884583 : f32
    %233 = vector.broadcast %cst_166 : f32 to vector<8x64xf32>
    %234 = arith.mulf %233, %232 : vector<8x64xf32>
    %235 = math.tanh %234 : vector<8x64xf32>
    %cst_167 = arith.constant 1.000000e+00 : f32
    %236 = vector.broadcast %cst_167 : f32 to vector<8x64xf32>
    %237 = arith.addf %236, %235 : vector<8x64xf32>
    %238 = arith.mulf %227, %237 : vector<8x64xf32>
    %239 = arith.truncf %238 : vector<8x64xf32> to vector<8x64xbf16>
    %c0_168 = arith.constant 0 : index
    %c0_169 = arith.constant 0 : index
    %c0_170 = arith.constant 0 : index
    %240 = vector.load %arg14[%c0_168, %c0_169, %c0_170] : memref<1x64x32xbf16, #tpu.memory_space<vmem>>, vector<1x64x32xbf16>
    %241 = vector.shape_cast %240 : vector<1x64x32xbf16> to vector<64x32xbf16>
    %cst_171 = arith.constant dense<0.000000e+00> : vector<8x32xf32>
    %242 = tpu.matmul %239, %241, %cst_171 {dimension_numbers = #tpu.dot_dimension_numbers<[1], [0], [0], [1], [0, 0, 1, 1], [], []>} : vector<8x64xbf16>, vector<64x32xbf16>, vector<8x32xf32> -> vector<8x32xf32>
    %c0_172 = arith.constant 0 : index
    %c0_173 = arith.constant 0 : index
    %c0_174 = arith.constant 0 : index
    %243 = vector.load %arg15[%c0_172, %c0_173, %c0_174] : memref<1x1x32xf32, #tpu.memory_space<vmem>>, vector<1x1x32xf32>
    %244 = vector.shape_cast %243 : vector<1x1x32xf32> to vector<1x32xf32>
    %245 = vector.broadcast %244 : vector<1x32xf32> to vector<8x32xf32>
    %246 = arith.addf %242, %245 : vector<8x32xf32>
    %247 = arith.addf %246, %217 : vector<8x32xf32>
    %c0_175 = arith.constant 0 : index
    %c0_176 = arith.constant 0 : index
    %c0_177 = arith.constant 0 : index
    %248 = vector.load %arg16[%c0_175, %c0_176, %c0_177] : memref<1x1x32xf32, #tpu.memory_space<vmem>>, vector<1x1x32xf32>
    %249 = vector.shape_cast %248 : vector<1x1x32xf32> to vector<1x32xf32>
    %c0_178 = arith.constant 0 : index
    %c0_179 = arith.constant 0 : index
    %c0_180 = arith.constant 0 : index
    %250 = vector.load %arg17[%c0_178, %c0_179, %c0_180] : memref<1x1x32xf32, #tpu.memory_space<vmem>>, vector<1x1x32xf32>
    %251 = vector.shape_cast %250 : vector<1x1x32xf32> to vector<1x32xf32>
    %cst_181 = arith.constant dense<0.000000e+00> : vector<8xf32>
    %252 = vector.multi_reduction <add>, %247, %cst_181 [1] : vector<8x32xf32> to vector<8xf32>
    %253 = vector.shape_cast %252 : vector<8xf32> to vector<8x1xf32>
    %cst_182 = arith.constant 3.200000e+01 : f32
    %254 = vector.broadcast %cst_182 : f32 to vector<8x1xf32>
    %255 = arith.divf %253, %254 : vector<8x1xf32>
    %256 = vector.broadcast %255 : vector<8x1xf32> to vector<8x32xf32>
    %257 = arith.subf %247, %256 : vector<8x32xf32>
    %258 = arith.mulf %257, %257 : vector<8x32xf32>
    %cst_183 = arith.constant dense<0.000000e+00> : vector<8xf32>
    %259 = vector.multi_reduction <add>, %258, %cst_183 [1] : vector<8x32xf32> to vector<8xf32>
    %260 = vector.shape_cast %259 : vector<8xf32> to vector<8x1xf32>
    %cst_184 = arith.constant 3.200000e+01 : f32
    %261 = vector.broadcast %cst_184 : f32 to vector<8x1xf32>
    %262 = arith.divf %260, %261 : vector<8x1xf32>
    %cst_185 = arith.constant 9.99999996E-13 : f32
    %263 = vector.broadcast %cst_185 : f32 to vector<8x1xf32>
    %264 = arith.addf %262, %263 : vector<8x1xf32>
    %265 = math.rsqrt %264 : vector<8x1xf32>
    %266 = vector.broadcast %265 : vector<8x1xf32> to vector<8x32xf32>
    %267 = arith.mulf %257, %266 : vector<8x32xf32>
    %268 = vector.broadcast %249 : vector<1x32xf32> to vector<8x32xf32>
    %269 = arith.mulf %267, %268 : vector<8x32xf32>
    %270 = vector.broadcast %251 : vector<1x32xf32> to vector<8x32xf32>
    %271 = arith.addf %269, %270 : vector<8x32xf32>
    %c0_186 = arith.constant 0 : index
    %c0_187 = arith.constant 0 : index
    %c0_188 = arith.constant 0 : index
    %272 = vector.load %arg18[%c0_186, %c0_187, %c0_188] : memref<1x8x32xf32, #tpu.memory_space<vmem>>, vector<1x8x32xf32>
    %273 = vector.shape_cast %272 : vector<1x8x32xf32> to vector<8x32xf32>
    %274 = vector.shape_cast %271 : vector<8x32xf32> to vector<1x8x32xf32>
    tpu.vector_store %arg18[%c0_186, %c0_187, %c0_188], %274 {strides = array<i32>} : memref<1x8x32xf32, #tpu.memory_space<vmem>>, vector<1x8x32xf32>,
    return
  }
  func.func @transform_0(%arg0: i32, %arg1: i32) -> (i32, i32, i32) {
    %c0_i32 = arith.constant 0 : i32
    %c0_i32_0 = arith.constant 0 : i32
    %c0_i32_1 = arith.constant 0 : i32
    return %arg0, %c0_i32, %c0_i32_0 : i32, i32, i32
  }
  func.func @transform_1(%arg0: i32, %arg1: i32) -> (i32, i32, i32) {
    %c0_i32 = arith.constant 0 : i32
    %c0_i32_0 = arith.constant 0 : i32
    %c0_i32_1 = arith.constant 0 : i32
    return %arg0, %c0_i32, %c0_i32_0 : i32, i32, i32
  }
  func.func @transform_2(%arg0: i32, %arg1: i32) -> (i32, i32) {
    %c0_i32 = arith.constant 0 : i32
    %c0_i32_0 = arith.constant 0 : i32
    %c0_i32_1 = arith.constant 0 : i32
    return %c0_i32, %c0_i32_0 : i32, i32
  }
  func.func @transform_3(%arg0: i32, %arg1: i32) -> (i32, i32) {
    %c0_i32 = arith.constant 0 : i32
    %c0_i32_0 = arith.constant 0 : i32
    %c0_i32_1 = arith.constant 0 : i32
    return %c0_i32, %c0_i32_0 : i32, i32
  }
  func.func @transform_4(%arg0: i32, %arg1: i32) -> (i32, i32, i32, i32) {
    %c0_i32 = arith.constant 0 : i32
    %c0_i32_0 = arith.constant 0 : i32
    %c0_i32_1 = arith.constant 0 : i32
    %c0_i32_2 = arith.constant 0 : i32
    return %arg1, %c0_i32, %c0_i32_0, %c0_i32_1 : i32, i32, i32, i32
  }
  func.func @transform_5(%arg0: i32, %arg1: i32) -> (i32, i32, i32, i32) {
    %c0_i32 = arith.constant 0 : i32
    %c0_i32_0 = arith.constant 0 : i32
    %c0_i32_1 = arith.constant 0 : i32
    %c0_i32_2 = arith.constant 0 : i32
    return %arg1, %c0_i32, %c0_i32_0, %c0_i32_1 : i32, i32, i32, i32
  }
  func.func @transform_6(%arg0: i32, %arg1: i32) -> (i32, i32, i32, i32) {
    %c0_i32 = arith.constant 0 : i32
    %c0_i32_0 = arith.constant 0 : i32
    %c0_i32_1 = arith.constant 0 : i32
    %c0_i32_2 = arith.constant 0 : i32
    return %arg1, %c0_i32, %c0_i32_0, %c0_i32_1 : i32, i32, i32, i32
  }
  func.func @transform_7(%arg0: i32, %arg1: i32) -> (i32, i32, i32) {
    %c0_i32 = arith.constant 0 : i32
    %c0_i32_0 = arith.constant 0 : i32
    %c0_i32_1 = arith.constant 0 : i32
    return %arg1, %c0_i32, %c0_i32_0 : i32, i32, i32
  }
  func.func @transform_8(%arg0: i32, %arg1: i32) -> (i32, i32, i32) {
    %c0_i32 = arith.constant 0 : i32
    %c0_i32_0 = arith.constant 0 : i32
    %c0_i32_1 = arith.constant 0 : i32
    return %arg1, %c0_i32, %c0_i32_0 : i32, i32, i32
  }
  func.func @transform_9(%arg0: i32, %arg1: i32) -> (i32, i32, i32) {
    %c0_i32 = arith.constant 0 : i32
    %c0_i32_0 = arith.constant 0 : i32
    %c0_i32_1 = arith.constant 0 : i32
    return %arg1, %c0_i32, %c0_i32_0 : i32, i32, i32
  }
  func.func @transform_10(%arg0: i32, %arg1: i32) -> (i32, i32, i32) {
    %c0_i32 = arith.constant 0 : i32
    %c0_i32_0 = arith.constant 0 : i32
    %c0_i32_1 = arith.constant 0 : i32
    return %arg1, %c0_i32, %c0_i32_0 : i32, i32, i32
  }
  func.func @transform_11(%arg0: i32, %arg1: i32) -> (i32, i32, i32) {
    %c0_i32 = arith.constant 0 : i32
    %c0_i32_0 = arith.constant 0 : i32
    %c0_i32_1 = arith.constant 0 : i32
    return %arg1, %c0_i32, %c0_i32_0 : i32, i32, i32
  }
  func.func @transform_12(%arg0: i32, %arg1: i32) -> (i32, i32, i32) {
    %c0_i32 = arith.constant 0 : i32
    %c0_i32_0 = arith.constant 0 : i32
    %c0_i32_1 = arith.constant 0 : i32
    return %arg1, %c0_i32, %c0_i32_0 : i32, i32, i32
  }
  func.func @transform_13(%arg0: i32, %arg1: i32) -> (i32, i32, i32) {
    %c0_i32 = arith.constant 0 : i32
    %c0_i32_0 = arith.constant 0 : i32
    %c0_i32_1 = arith.constant 0 : i32
    return %arg1, %c0_i32, %c0_i32_0 : i32, i32, i32
  }
  func.func @transform_14(%arg0: i32, %arg1: i32) -> (i32, i32, i32) {
    %c0_i32 = arith.constant 0 : i32
    %c0_i32_0 = arith.constant 0 : i32
    %c0_i32_1 = arith.constant 0 : i32
    return %arg1, %c0_i32, %c0_i32_0 : i32, i32, i32
  }
  func.func @transform_15(%arg0: i32, %arg1: i32) -> (i32, i32, i32) {
    %c0_i32 = arith.constant 0 : i32
    %c0_i32_0 = arith.constant 0 : i32
    %c0_i32_1 = arith.constant 0 : i32
    return %arg1, %c0_i32, %c0_i32_0 : i32, i32, i32
  }
  func.func @transform_16(%arg0: i32, %arg1: i32) -> (i32, i32, i32) {
    %c0_i32 = arith.constant 0 : i32
    %c0_i32_0 = arith.constant 0 : i32
    %c0_i32_1 = arith.constant 0 : i32
    return %arg0, %c0_i32, %c0_i32_0 : i32, i32, i32
  }
}

</mosaic_0001>

<llo_original>
// kernel: bert_forward.1
$region0: #{bert_forward.1}
  #allocation0 [shape = 'u32[]', space=smem, size = 0x4, offset = 0x4, fixed_abs, tag = 'smem constant byte address 0x4 - core index']
  #allocation1 [shape = 'u32[144,128]{1,0:T(1,128)}', space=vmem, size = 0x12000, scoped, tag = 'internal scratch']
  %s0 = inlined_call_operand.vmem [shape: f32[2,8,32], index: 0, kind: input, shape index: {}]
  %s1 = inlined_call_operand.vmem [shape: f32[2,1,8], index: 1, kind: input, shape index: {}]
  %s2 = inlined_call_operand.vmem [shape: f32[1,32], index: 2, kind: input, shape index: {}]
  %s3 = inlined_call_operand.vmem [shape: f32[1,32], index: 3, kind: input, shape index: {}]
  %s4 = inlined_call_operand.vmem [shape: bf16[2,12,32,8], index: 4, kind: input, shape index: {}]
  %s5 = inlined_call_operand.vmem [shape: f32[2,12,1,8], index: 5, kind: input, shape index: {}]
  %s6 = inlined_call_operand.vmem [shape: bf16[2,4,8,32], index: 6, kind: input, shape index: {}]
  %s7 = inlined_call_operand.vmem [shape: f32[2,1,32], index: 7, kind: input, shape index: {}]
  %s8 = inlined_call_operand.vmem [shape: f32[2,1,32], index: 8, kind: input, shape index: {}]
  %s9 = inlined_call_operand.vmem [shape: f32[2,1,32], index: 9, kind: input, shape index: {}]
  %s10 = inlined_call_operand.vmem [shape: bf16[2,32,64], index: 10, kind: input, shape index: {}]
  %s11 = inlined_call_operand.vmem [shape: f32[2,1,64], index: 11, kind: input, shape index: {}]
  %s12 = inlined_call_operand.vmem [shape: bf16[2,64,32], index: 12, kind: input, shape index: {}]
  %s13 = inlined_call_operand.vmem [shape: f32[2,1,32], index: 13, kind: input, shape index: {}]
  %s14 = inlined_call_operand.vmem [shape: f32[2,1,32], index: 14, kind: input, shape index: {}]
  %s15 = inlined_call_operand.vmem [shape: f32[2,1,32], index: 15, kind: input, shape index: {}]
  %s16 = inlined_call_operand.vmem [shape: f32[2,8,32], index: 16, kind: output, shape index: {}]
  %s17 = sld [smem:[#allocation0]]
  $region101: #{bert_forward.1} parent=0
    _
  %s19 = ssub.s32 1, %s17
  %s20 = scalar_select 0, %s19, %s17
  loop: start=0, step=1, limit=6
  $region2: #{bert_forward.1} parent=0 // loop_pre_header
    _
  $region3: #{bert_forward.1} parent=0 // loop_header
    %s22 = sphi 0, %s26
    %p23 = scmp.ge.s32.totalorder %s22, 6
    %s29 = sphi 0, %s41
    %s30 = sphi 0, %s37
    %s31 = sphi 0, %s29
    %s32 = sphi 0, %s30
    %s33 = sphi 0, %s31
    %s34 = sphi 0, %s32
    %s44 = sphi 0, %s46
    %s47 = sphi 0, %s44
    %s48 = sphi 0, %s47
    %s64 = sphi 0, %s48
    %s70 = sphi 0, %s72
    %s73 = sphi 0, %s70
    %s74 = sphi 0, %s73
    %s90 = sphi 0, %s74
    %s94 = sphi 0, %s94
    %s96 = sphi 0, %s94
    %s97 = sphi 0, %s96
    %s111 = sphi 0, %s97
    %s115 = sphi 0, %s115
    %s117 = sphi 0, %s115
    %s118 = sphi 0, %s117
    %s132 = sphi 0, %s118
    %s138 = sphi 0, %s140
    %s141 = sphi 0, %s138
    %s142 = sphi 0, %s141
    %s158 = sphi 0, %s142
    %s164 = sphi 0, %s166
    %s167 = sphi 0, %s164
    %s168 = sphi 0, %s167
    %s184 = sphi 0, %s168
    %s190 = sphi 0, %s192
    %s193 = sphi 0, %s190
    %s194 = sphi 0, %s193
    %s210 = sphi 0, %s194
    %s216 = sphi 0, %s218
    %s219 = sphi 0, %s216
    %s220 = sphi 0, %s219
    %s236 = sphi 0, %s220
    %s242 = sphi 0, %s244
    %s245 = sphi 0, %s242
    %s246 = sphi 0, %s245
    %s262 = sphi 0, %s246
    %s268 = sphi 0, %s270
    %s271 = sphi 0, %s268
    %s272 = sphi 0, %s271
    %s288 = sphi 0, %s272
    %s294 = sphi 0, %s296
    %s297 = sphi 0, %s294
    %s298 = sphi 0, %s297
    %s314 = sphi 0, %s298
    %s320 = sphi 0, %s322
    %s323 = sphi 0, %s320
    %s324 = sphi 0, %s323
    %s340 = sphi 0, %s324
    %s346 = sphi 0, %s348
    %s349 = sphi 0, %s346
    %s350 = sphi 0, %s349
    %s366 = sphi 0, %s350
    %s372 = sphi 0, %s374
    %s375 = sphi 0, %s372
    %s376 = sphi 0, %s375
    %s392 = sphi 0, %s376
    %s398 = sphi 0, %s400
    %s401 = sphi 0, %s398
    %s402 = sphi 0, %s401
    %s418 = sphi 0, %s402
    %s424 = sphi 0, %s426
    %s427 = sphi 0, %s424
    %s428 = sphi 0, %s427
    %s444 = sphi 0, %s428
    %s450 = sphi 0, %s452
    %s453 = sphi 0, %s450
    %s454 = sphi 0, %s453
    %s470 = sphi 0, %s454
  $region4: #{bert_forward.1} parent=0 // loop_header_branch
    %25 = sbr.rel (%p23) target = $region8
  $region5: #{bert_forward.1} parent=0 // loop_body
    %s27 = ssub.s32 %s22, 1
    %s28 = ssub.s32 %s22, 2
    %s35 = sadd.s32 1, %s30
    %p36 = scmp.ge.s32.totalorder %s35, 2
    %s37 = scalar_select %p36, 0, %s35
    %s38 = sadd.s32 1, %s29
    %s39 = scalar_select %p36, %s38, %s29
    %p40 = scmp.ge.s32.totalorder %s39, 2
    %s41 = scalar_select %p40, 0, %s39
    %s42 = ssub.s32 %s29, %s41
    %p43 = scmp.eq.s32.totalorder %s42, 0
    %s45 = sadd.s32 %s44, 1
    %s46 = scalar_select %p43, %s44, %s45
    %p49 = pneg %p43
    %p50 = scmp.eq.s32.totalorder %s22, 3
    %p51 = por %p49, %p50
    %p52 = scmp.ne.s32.totalorder %s44, %s47
    %p53 = scmp.eq.s32.totalorder %s22, 0
    %p54 = por %p52, %p53
    %p55 = scmp.ne.s32.totalorder %s44, %s47
    %p56 = scmp.eq.s32.totalorder %s27, 3
    %p57 = por %p55, %p56
    %p58 = scmp.ne.s32.totalorder %s47, %s48
    %p59 = scmp.eq.s32.totalorder %s27, 0
    %p60 = por %p58, %p59
    %p61 = scmp.ne.s32.totalorder %s47, %s48
    %p62 = scmp.eq.s32.totalorder %s28, 3
    %p63 = por %p61, %p62
    %p65 = scmp.ne.s32.totalorder %s48, %s64
    %p66 = scmp.eq.s32.totalorder %s28, 0
    %p67 = por %p65, %p66
    %s68 = ssub.s32 %s29, %s41
    %p69 = scmp.eq.s32.totalorder %s68, 0
    %s71 = sadd.s32 %s70, 1
    %s72 = scalar_select %p69, %s70, %s71
    %p75 = pneg %p69
    %p76 = scmp.eq.s32.totalorder %s22, 3
    %p77 = por %p75, %p76
    %p78 = scmp.ne.s32.totalorder %s70, %s73
    %p79 = scmp.eq.s32.totalorder %s22, 0
    %p80 = por %p78, %p79
    %p81 = scmp.ne.s32.totalorder %s70, %s73
    %p82 = scmp.eq.s32.totalorder %s27, 3
    %p83 = por %p81, %p82
    %p84 = scmp.ne.s32.totalorder %s73, %s74
    %p85 = scmp.eq.s32.totalorder %s27, 0
    %p86 = por %p84, %p85
    %p87 = scmp.ne.s32.totalorder %s73, %s74
    %p88 = scmp.eq.s32.totalorder %s28, 3
    %p89 = por %p87, %p88
    %p91 = scmp.ne.s32.totalorder %s74, %s90
    %p92 = scmp.eq.s32.totalorder %s28, 0
    %p93 = por %p91, %p92
    %s95 = sadd.s32 %s94, 1
    %p98 = scmp.eq.s32.totalorder %s22, 3
    %p99 = scmp.ne.s32.totalorder %s94, %s96
    %p100 = scmp.eq.s32.totalorder %s22, 0
    %p101 = por %p99, %p100
    %p102 = scmp.ne.s32.totalorder %s94, %s96
    %p103 = scmp.eq.s32.totalorder %s27, 3
    %p104 = por %p102, %p103
    %p105 = scmp.ne.s32.totalorder %s96, %s97
    %p106 = scmp.eq.s32.totalorder %s27, 0
    %p107 = por %p105, %p106
    %p108 = scmp.ne.s32.totalorder %s96, %s97
    %p109 = scmp.eq.s32.totalorder %s28, 3
    %p110 = por %p108, %p109
    %p112 = scmp.ne.s32.totalorder %s97, %s111
    %p113 = scmp.eq.s32.totalorder %s28, 0
    %p114 = por %p112, %p113
    %s116 = sadd.s32 %s115, 1
    %p119 = scmp.eq.s32.totalorder %s22, 3
    %p120 = scmp.ne.s32.totalorder %s115, %s117
    %p121 = scmp.eq.s32.totalorder %s22, 0
    %p122 = por %p120, %p121
    %p123 = scmp.ne.s32.totalorder %s115, %s117
    %p124 = scmp.eq.s32.totalorder %s27, 3
    %p125 = por %p123, %p124
    %p126 = scmp.ne.s32.totalorder %s117, %s118
    %p127 = scmp.eq.s32.totalorder %s27, 0
    %p128 = por %p126, %p127
    %p129 = scmp.ne.s32.totalorder %s117, %s118
    %p130 = scmp.eq.s32.totalorder %s28, 3
    %p131 = por %p129, %p130
    %p133 = scmp.ne.s32.totalorder %s118, %s132
    %p134 = scmp.eq.s32.totalorder %s28, 0
    %p135 = por %p133, %p134
    %s136 = ssub.s32 %s30, %s37
    %p137 = scmp.eq.s32.totalorder %s136, 0
    %s139 = sadd.s32 %s138, 1
    %s140 = scalar_select %p137, %s138, %s139
    %p143 = pneg %p137
    %p144 = scmp.eq.s32.totalorder %s22, 3
    %p145 = por %p143, %p144
    %p146 = scmp.ne.s32.totalorder %s138, %s141
    %p147 = scmp.eq.s32.totalorder %s22, 0
    %p148 = por %p146, %p147
    %p149 = scmp.ne.s32.totalorder %s138, %s141
    %p150 = scmp.eq.s32.totalorder %s27, 3
    %p151 = por %p149, %p150
    %p152 = scmp.ne.s32.totalorder %s141, %s142
    %p153 = scmp.eq.s32.totalorder %s27, 0
    %p154 = por %p152, %p153
    %p155 = scmp.ne.s32.totalorder %s141, %s142
    %p156 = scmp.eq.s32.totalorder %s28, 3
    %p157 = por %p155, %p156
    %p159 = scmp.ne.s32.totalorder %s142, %s158
    %p160 = scmp.eq.s32.totalorder %s28, 0
    %p161 = por %p159, %p160
    %s162 = ssub.s32 %s30, %s37
    %p163 = scmp.eq.s32.totalorder %s162, 0
    %s165 = sadd.s32 %s164, 1
    %s166 = scalar_select %p163, %s164, %s165
    %p169 = pneg %p163
    %p170 = scmp.eq.s32.totalorder %s22, 3
    %p171 = por %p169, %p170
    %p172 = scmp.ne.s32.totalorder %s164, %s167
    %p173 = scmp.eq.s32.totalorder %s22, 0
    %p174 = por %p172, %p173
    %p175 = scmp.ne.s32.totalorder %s164, %s167
    %p176 = scmp.eq.s32.totalorder %s27, 3
    %p177 = por %p175, %p176
    %p178 = scmp.ne.s32.totalorder %s167, %s168
    %p179 = scmp.eq.s32.totalorder %s27, 0
    %p180 = por %p178, %p179
    %p181 = scmp.ne.s32.totalorder %s167, %s168
    %p182 = scmp.eq.s32.totalorder %s28, 3
    %p183 = por %p181, %p182
    %p185 = scmp.ne.s32.totalorder %s168, %s184
    %p186 = scmp.eq.s32.totalorder %s28, 0
    %p187 = por %p185, %p186
    %s188 = ssub.s32 %s30, %s37
    %p189 = scmp.eq.s32.totalorder %s188, 0
    %s191 = sadd.s32 %s190, 1
    %s192 = scalar_select %p189, %s190, %s191
    %p195 = pneg %p189
    %p196 = scmp.eq.s32.totalorder %s22, 3
    %p197 = por %p195, %p196
    %p198 = scmp.ne.s32.totalorder %s190, %s193
    %p199 = scmp.eq.s32.totalorder %s22, 0
    %p200 = por %p198, %p199
    %p201 = scmp.ne.s32.totalorder %s190, %s193
    %p202 = scmp.eq.s32.totalorder %s27, 3
    %p203 = por %p201, %p202
    %p204 = scmp.ne.s32.totalorder %s193, %s194
    %p205 = scmp.eq.s32.totalorder %s27, 0
    %p206 = por %p204, %p205
    %p207 = scmp.ne.s32.totalorder %s193, %s194
    %p208 = scmp.eq.s32.totalorder %s28, 3
    %p209 = por %p207, %p208
    %p211 = scmp.ne.s32.totalorder %s194, %s210
    %p212 = scmp.eq.s32.totalorder %s28, 0
    %p213 = por %p211, %p212
    %s214 = ssub.s32 %s30, %s37
    %p215 = scmp.eq.s32.totalorder %s214, 0
    %s217 = sadd.s32 %s216, 1
    %s218 = scalar_select %p215, %s216, %s217
    %p221 = pneg %p215
    %p222 = scmp.eq.s32.totalorder %s22, 3
    %p223 = por %p221, %p222
    %p224 = scmp.ne.s32.totalorder %s216, %s219
    %p225 = scmp.eq.s32.totalorder %s22, 0
    %p226 = por %p224, %p225
    %p227 = scmp.ne.s32.totalorder %s216, %s219
    %p228 = scmp.eq.s32.totalorder %s27, 3
    %p229 = por %p227, %p228
    %p230 = scmp.ne.s32.totalorder %s219, %s220
    %p231 = scmp.eq.s32.totalorder %s27, 0
    %p232 = por %p230, %p231
    %p233 = scmp.ne.s32.totalorder %s219, %s220
    %p234 = scmp.eq.s32.totalorder %s28, 3
    %p235 = por %p233, %p234
    %p237 = scmp.ne.s32.totalorder %s220, %s236
    %p238 = scmp.eq.s32.totalorder %s28, 0
    %p239 = por %p237, %p238
    %s240 = ssub.s32 %s30, %s37
    %p241 = scmp.eq.s32.totalorder %s240, 0
    %s243 = sadd.s32 %s242, 1
    %s244 = scalar_select %p241, %s242, %s243
    %p247 = pneg %p241
    %p248 = scmp.eq.s32.totalorder %s22, 3
    %p249 = por %p247, %p248
    %p250 = scmp.ne.s32.totalorder %s242, %s245
    %p251 = scmp.eq.s32.totalorder %s22, 0
    %p252 = por %p250, %p251
    %p253 = scmp.ne.s32.totalorder %s242, %s245
    %p254 = scmp.eq.s32.totalorder %s27, 3
    %p255 = por %p253, %p254
    %p256 = scmp.ne.s32.totalorder %s245, %s246
    %p257 = scmp.eq.s32.totalorder %s27, 0
    %p258 = por %p256, %p257
    %p259 = scmp.ne.s32.totalorder %s245, %s246
    %p260 = scmp.eq.s32.totalorder %s28, 3
    %p261 = por %p259, %p260
    %p263 = scmp.ne.s32.totalorder %s246, %s262
    %p264 = scmp.eq.s32.totalorder %s28, 0
    %p265 = por %p263, %p264
    %s266 = ssub.s32 %s30, %s37
    %p267 = scmp.eq.s32.totalorder %s266, 0
    %s269 = sadd.s32 %s268, 1
    %s270 = scalar_select %p267, %s268, %s269
    %p273 = pneg %p267
    %p274 = scmp.eq.s32.totalorder %s22, 3
    %p275 = por %p273, %p274
    %p276 = scmp.ne.s32.totalorder %s268, %s271
    %p277 = scmp.eq.s32.totalorder %s22, 0
    %p278 = por %p276, %p277
    %p279 = scmp.ne.s32.totalorder %s268, %s271
    %p280 = scmp.eq.s32.totalorder %s27, 3
    %p281 = por %p279, %p280
    %p282 = scmp.ne.s32.totalorder %s271, %s272
    %p283 = scmp.eq.s32.totalorder %s27, 0
    %p284 = por %p282, %p283
    %p285 = scmp.ne.s32.totalorder %s271, %s272
    %p286 = scmp.eq.s32.totalorder %s28, 3
    %p287 = por %p285, %p286
    %p289 = scmp.ne.s32.totalorder %s272, %s288
    %p290 = scmp.eq.s32.totalorder %s28, 0
    %p291 = por %p289, %p290
    %s292 = ssub.s32 %s30, %s37
    %p293 = scmp.eq.s32.totalorder %s292, 0
    %s295 = sadd.s32 %s294, 1
    %s296 = scalar_select %p293, %s294, %s295
    %p299 = pneg %p293
    %p300 = scmp.eq.s32.totalorder %s22, 3
    %p301 = por %p299, %p300
    %p302 = scmp.ne.s32.totalorder %s294, %s297
    %p303 = scmp.eq.s32.totalorder %s22, 0
    %p304 = por %p302, %p303
    %p305 = scmp.ne.s32.totalorder %s294, %s297
    %p306 = scmp.eq.s32.totalorder %s27, 3
    %p307 = por %p305, %p306
    %p308 = scmp.ne.s32.totalorder %s297, %s298
    %p309 = scmp.eq.s32.totalorder %s27, 0
    %p310 = por %p308, %p309
    %p311 = scmp.ne.s32.totalorder %s297, %s298
    %p312 = scmp.eq.s32.totalorder %s28, 3
    %p313 = por %p311, %p312
    %p315 = scmp.ne.s32.totalorder %s298, %s314
    %p316 = scmp.eq.s32.totalorder %s28, 0
    %p317 = por %p315, %p316
    %s318 = ssub.s32 %s30, %s37
    %p319 = scmp.eq.s32.totalorder %s318, 0
    %s321 = sadd.s32 %s320, 1
    %s322 = scalar_select %p319, %s320, %s321
    %p325 = pneg %p319
    %p326 = scmp.eq.s32.totalorder %s22, 3
    %p327 = por %p325, %p326
    %p328 = scmp.ne.s32.totalorder %s320, %s323
    %p329 = scmp.eq.s32.totalorder %s22, 0
    %p330 = por %p328, %p329
    %p331 = scmp.ne.s32.totalorder %s320, %s323
    %p332 = scmp.eq.s32.totalorder %s27, 3
    %p333 = por %p331, %p332
    %p334 = scmp.ne.s32.totalorder %s323, %s324
    %p335 = scmp.eq.s32.totalorder %s27, 0
    %p336 = por %p334, %p335
    %p337 = scmp.ne.s32.totalorder %s323, %s324
    %p338 = scmp.eq.s32.totalorder %s28, 3
    %p339 = por %p337, %p338
    %p341 = scmp.ne.s32.totalorder %s324, %s340
    %p342 = scmp.eq.s32.totalorder %s28, 0
    %p343 = por %p341, %p342
    %s344 = ssub.s32 %s30, %s37
    %p345 = scmp.eq.s32.totalorder %s344, 0
    %s347 = sadd.s32 %s346, 1
    %s348 = scalar_select %p345, %s346, %s347
    %p351 = pneg %p345
    %p352 = scmp.eq.s32.totalorder %s22, 3
    %p353 = por %p351, %p352
    %p354 = scmp.ne.s32.totalorder %s346, %s349
    %p355 = scmp.eq.s32.totalorder %s22, 0
    %p356 = por %p354, %p355
    %p357 = scmp.ne.s32.totalorder %s346, %s349
    %p358 = scmp.eq.s32.totalorder %s27, 3
    %p359 = por %p357, %p358
    %p360 = scmp.ne.s32.totalorder %s349, %s350
    %p361 = scmp.eq.s32.totalorder %s27, 0
    %p362 = por %p360, %p361
    %p363 = scmp.ne.s32.totalorder %s349, %s350
    %p364 = scmp.eq.s32.totalorder %s28, 3
    %p365 = por %p363, %p364
    %p367 = scmp.ne.s32.totalorder %s350, %s366
    %p368 = scmp.eq.s32.totalorder %s28, 0
    %p369 = por %p367, %p368
    %s370 = ssub.s32 %s30, %s37
    %p371 = scmp.eq.s32.totalorder %s370, 0
    %s373 = sadd.s32 %s372, 1
    %s374 = scalar_select %p371, %s372, %s373
    %p377 = pneg %p371
    %p378 = scmp.eq.s32.totalorder %s22, 3
    %p379 = por %p377, %p378
    %p380 = scmp.ne.s32.totalorder %s372, %s375
    %p381 = scmp.eq.s32.totalorder %s22, 0
    %p382 = por %p380, %p381
    %p383 = scmp.ne.s32.totalorder %s372, %s375
    %p384 = scmp.eq.s32.totalorder %s27, 3
    %p385 = por %p383, %p384
    %p386 = scmp.ne.s32.totalorder %s375, %s376
    %p387 = scmp.eq.s32.totalorder %s27, 0
    %p388 = por %p386, %p387
    %p389 = scmp.ne.s32.totalorder %s375, %s376
    %p390 = scmp.eq.s32.totalorder %s28, 3
    %p391 = por %p389, %p390
    %p393 = scmp.ne.s32.totalorder %s376, %s392
    %p394 = scmp.eq.s32.totalorder %s28, 0
    %p395 = por %p393, %p394
    %s396 = ssub.s32 %s30, %s37
    %p397 = scmp.eq.s32.totalorder %s396, 0
    %s399 = sadd.s32 %s398, 1
    %s400 = scalar_select %p397, %s398, %s399
    %p403 = pneg %p397
    %p404 = scmp.eq.s32.totalorder %s22, 3
    %p405 = por %p403, %p404
    %p406 = scmp.ne.s32.totalorder %s398, %s401
    %p407 = scmp.eq.s32.totalorder %s22, 0
    %p408 = por %p406, %p407
    %p409 = scmp.ne.s32.totalorder %s398, %s401
    %p410 = scmp.eq.s32.totalorder %s27, 3
    %p411 = por %p409, %p410
    %p412 = scmp.ne.s32.totalorder %s401, %s402
    %p413 = scmp.eq.s32.totalorder %s27, 0
    %p414 = por %p412, %p413
    %p415 = scmp.ne.s32.totalorder %s401, %s402
    %p416 = scmp.eq.s32.totalorder %s28, 3
    %p417 = por %p415, %p416
    %p419 = scmp.ne.s32.totalorder %s402, %s418
    %p420 = scmp.eq.s32.totalorder %s28, 0
    %p421 = por %p419, %p420
    %s422 = ssub.s32 %s30, %s37
    %p423 = scmp.eq.s32.totalorder %s422, 0
    %s425 = sadd.s32 %s424, 1
    %s426 = scalar_select %p423, %s424, %s425
    %p429 = pneg %p423
    %p430 = scmp.eq.s32.totalorder %s22, 3
    %p431 = por %p429, %p430
    %p432 = scmp.ne.s32.totalorder %s424, %s427
    %p433 = scmp.eq.s32.totalorder %s22, 0
    %p434 = por %p432, %p433
    %p435 = scmp.ne.s32.totalorder %s424, %s427
    %p436 = scmp.eq.s32.totalorder %s27, 3
    %p437 = por %p435, %p436
    %p438 = scmp.ne.s32.totalorder %s427, %s428
    %p439 = scmp.eq.s32.totalorder %s27, 0
    %p440 = por %p438, %p439
    %p441 = scmp.ne.s32.totalorder %s427, %s428
    %p442 = scmp.eq.s32.totalorder %s28, 3
    %p443 = por %p441, %p442
    %p445 = scmp.ne.s32.totalorder %s428, %s444
    %p446 = scmp.eq.s32.totalorder %s28, 0
    %p447 = por %p445, %p446
    %s448 = ssub.s32 %s29, %s41
    %p449 = scmp.eq.s32.totalorder %s448, 0
    %s451 = sadd.s32 %s450, 1
    %s452 = scalar_select %p449, %s450, %s451
    %p455 = pneg %p449
    %p456 = scmp.eq.s32.totalorder %s22, 3
    %p457 = por %p455, %p456
    %p458 = scmp.ne.s32.totalorder %s450, %s453
    %p459 = scmp.eq.s32.totalorder %s22, 0
    %p460 = por %p458, %p459
    %p461 = scmp.ne.s32.totalorder %s450, %s453
    %p462 = scmp.eq.s32.totalorder %s27, 3
    %p463 = por %p461, %p462
    %p464 = scmp.ne.s32.totalorder %s453, %s454
    %p465 = scmp.eq.s32.totalorder %s27, 0
    %p466 = por %p464, %p465
    %p467 = scmp.ne.s32.totalorder %s453, %s454
    %p468 = scmp.eq.s32.totalorder %s28, 3
    %p469 = por %p467, %p468
    %p471 = scmp.ne.s32.totalorder %s454, %s470
    %p472 = scmp.eq.s32.totalorder %s28, 0
    %p473 = por %p471, %p472
    %p474 = scmp.le.s32.totalorder 1, %s22
    %p475 = scmp.lt.s32.totalorder %s22, 5
    %p476 = pnand %p474, %p475
    %p477 = pneg %p476
    // Predicated region
    $region9: #{bert_forward.1} parent=5 // pred_check
      _
    $region10: #{bert_forward.1} parent=5 // pred_check_branch
      %479 = sbr.rel (%p476) target = $region12
    $region11: #{bert_forward.1} parent=5 // pred_region
      %s480 = ssub.s32 %s22, 1
      // Predicated region
      $region13: #{bert_forward.1} parent=11 // pred_check
        %p481 = pneg %p107
      $region14: #{bert_forward.1} parent=11 // pred_check_branch
        %483 = sbr.rel (%p481) target = $region16
      $region15: #{bert_forward.1} parent=11 // pred_region
        _
      $region16: #{bert_forward.1} parent=11 // pred_fallthru
        _
      // Predicated region
      $region17: #{bert_forward.1} parent=11 // pred_check
        %p484 = pneg %p128
      $region18: #{bert_forward.1} parent=11 // pred_check_branch
        %486 = sbr.rel (%p484) target = $region20
      $region19: #{bert_forward.1} parent=11 // pred_region
        _
      $region20: #{bert_forward.1} parent=11 // pred_fallthru
        _
    $region12: #{bert_forward.1} parent=5 // pred_fallthru
      _
    %p487 = scmp.lt.s32.totalorder %s22, 4
    // Predicated region
    $region21: #{bert_forward.1} parent=5 // pred_check
      %p488 = pneg %p487
    $region22: #{bert_forward.1} parent=5 // pred_check_branch
      %490 = sbr.rel (%p488) target = $region24
    $region23: #{bert_forward.1} parent=5 // pred_region
      // Predicated region
      $region25: #{bert_forward.1} parent=23 // pred_check
        %p491 = pneg %p54
      $region26: #{bert_forward.1} parent=23 // pred_check_branch
        %493 = sbr.rel (%p491) target = $region28
      $region27: #{bert_forward.1} parent=23 // pred_region
        %p494 = scmp.lt.s32.totalorder %s29, 1
        %s495 = scalar_select %p494, %s29, 1
        %s496 = smul.addr %s495, 8
        %s497 = scalar_lea.vmem %s0, %s496
      $region28: #{bert_forward.1} parent=23 // pred_fallthru
        _
      // Predicated region
      $region29: #{bert_forward.1} parent=23 // pred_check
        %p498 = pneg %p80
      $region30: #{bert_forward.1} parent=23 // pred_check_branch
        %500 = sbr.rel (%p498) target = $region32
      $region31: #{bert_forward.1} parent=23 // pred_region
        %p501 = scmp.lt.s32.totalorder %s29, 1
        %s502 = scalar_select %p501, %s29, 1
        %s503 = scalar_lea.vmem %s1, %s502
      $region32: #{bert_forward.1} parent=23 // pred_fallthru
        _
      // Predicated region
      $region33: #{bert_forward.1} parent=23 // pred_check
        %p504 = pneg %p148
      $region34: #{bert_forward.1} parent=23 // pred_check_branch
        %506 = sbr.rel (%p504) target = $region36
      $region35: #{bert_forward.1} parent=23 // pred_region
        %p507 = scmp.lt.s32.totalorder %s30, 1
        %s508 = scalar_select %p507, %s30, 1
        %s509 = smul.addr %s508, 48
        %s510 = smul.addr %s509, 4
        %s511 = scalar_lea.vmem %s4, %s510
      $region36: #{bert_forward.1} parent=23 // pred_fallthru
        _
      // Predicated region
      $region37: #{bert_forward.1} parent=23 // pred_check
        %p512 = pneg %p174
      $region38: #{bert_forward.1} parent=23 // pred_check_branch
        %514 = sbr.rel (%p512) target = $region40
      $region39: #{bert_forward.1} parent=23 // pred_region
        %p515 = scmp.lt.s32.totalorder %s30, 1
        %s516 = scalar_select %p515, %s30, 1
        %s517 = smul.addr %s516, 12
        %s518 = scalar_lea.vmem %s5, %s517
      $region40: #{bert_forward.1} parent=23 // pred_fallthru
        _
      // Predicated region
      $region41: #{bert_forward.1} parent=23 // pred_check
        %p519 = pneg %p200
      $region42: #{bert_forward.1} parent=23 // pred_check_branch
        %521 = sbr.rel (%p519) target = $region44
      $region43: #{bert_forward.1} parent=23 // pred_region
        %p522 = scmp.lt.s32.totalorder %s30, 1
        %s523 = scalar_select %p522, %s30, 1
        %s524 = smul.addr %s523, 4
        %s525 = smul.addr %s524, 4
        %s526 = scalar_lea.vmem %s6, %s525
      $region44: #{bert_forward.1} parent=23 // pred_fallthru
        _
      // Predicated region
      $region45: #{bert_forward.1} parent=23 // pred_check
        %p527 = pneg %p226
      $region46: #{bert_forward.1} parent=23 // pred_check_branch
        %529 = sbr.rel (%p527) target = $region48
      $region47: #{bert_forward.1} parent=23 // pred_region
        %p530 = scmp.lt.s32.totalorder %s30, 1
        %s531 = scalar_select %p530, %s30, 1
        %s532 = scalar_lea.vmem %s7, %s531
      $region48: #{bert_forward.1} parent=23 // pred_fallthru
        _
      // Predicated region
      $region49: #{bert_forward.1} parent=23 // pred_check
        %p533 = pneg %p252
      $region50: #{bert_forward.1} parent=23 // pred_check_branch
        %535 = sbr.rel (%p533) target = $region52
      $region51: #{bert_forward.1} parent=23 // pred_region
        %p536 = scmp.lt.s32.totalorder %s30, 1
        %s537 = scalar_select %p536, %s30, 1
        %s538 = scalar_lea.vmem %s8, %s537
      $region52: #{bert_forward.1} parent=23 // pred_fallthru
        _
      // Predicated region
      $region53: #{bert_forward.1} parent=23 // pred_check
        %p539 = pneg %p278
      $region54: #{bert_forward.1} parent=23 // pred_check_branch
        %541 = sbr.rel (%p539) target = $region56
      $region55: #{bert_forward.1} parent=23 // pred_region
        %p542 = scmp.lt.s32.totalorder %s30, 1
        %s543 = scalar_select %p542, %s30, 1
        %s544 = scalar_lea.vmem %s9, %s543
      $region56: #{bert_forward.1} parent=23 // pred_fallthru
        _
      // Predicated region
      $region57: #{bert_forward.1} parent=23 // pred_check
        %p545 = pneg %p304
      $region58: #{bert_forward.1} parent=23 // pred_check_branch
        %547 = sbr.rel (%p545) target = $region60
      $region59: #{bert_forward.1} parent=23 // pred_region
        %p548 = scmp.lt.s32.totalorder %s30, 1
        %s549 = scalar_select %p548, %s30, 1
        %s550 = smul.addr %s549, 4
        %s551 = smul.addr %s550, 4
        %s552 = scalar_lea.vmem %s10, %s551
      $region60: #{bert_forward.1} parent=23 // pred_fallthru
        _
      // Predicated region
      $region61: #{bert_forward.1} parent=23 // pred_check
        %p553 = pneg %p330
      $region62: #{bert_forward.1} parent=23 // pred_check_branch
        %555 = sbr.rel (%p553) target = $region64
      $region63: #{bert_forward.1} parent=23 // pred_region
        %p556 = scmp.lt.s32.totalorder %s30, 1
        %s557 = scalar_select %p556, %s30, 1
        %s558 = scalar_lea.vmem %s11, %s557
      $region64: #{bert_forward.1} parent=23 // pred_fallthru
        _
      // Predicated region
      $region65: #{bert_forward.1} parent=23 // pred_check
        %p559 = pneg %p356
      $region66: #{bert_forward.1} parent=23 // pred_check_branch
        %561 = sbr.rel (%p559) target = $region68
      $region67: #{bert_forward.1} parent=23 // pred_region
        %p562 = scmp.lt.s32.totalorder %s30, 1
        %s563 = scalar_select %p562, %s30, 1
        %s564 = smul.addr %s563, 8
        %s565 = smul.addr %s564, 4
        %s566 = scalar_lea.vmem %s12, %s565
      $region68: #{bert_forward.1} parent=23 // pred_fallthru
        _
      // Predicated region
      $region69: #{bert_forward.1} parent=23 // pred_check
        %p567 = pneg %p382
      $region70: #{bert_forward.1} parent=23 // pred_check_branch
        %569 = sbr.rel (%p567) target = $region72
      $region71: #{bert_forward.1} parent=23 // pred_region
        %p570 = scmp.lt.s32.totalorder %s30, 1
        %s571 = scalar_select %p570, %s30, 1
        %s572 = scalar_lea.vmem %s13, %s571
      $region72: #{bert_forward.1} parent=23 // pred_fallthru
        _
      // Predicated region
      $region73: #{bert_forward.1} parent=23 // pred_check
        %p573 = pneg %p408
      $region74: #{bert_forward.1} parent=23 // pred_check_branch
        %575 = sbr.rel (%p573) target = $region76
      $region75: #{bert_forward.1} parent=23 // pred_region
        %p576 = scmp.lt.s32.totalorder %s30, 1
        %s577 = scalar_select %p576, %s30, 1
        %s578 = scalar_lea.vmem %s14, %s577
      $region76: #{bert_forward.1} parent=23 // pred_fallthru
        _
      // Predicated region
      $region77: #{bert_forward.1} parent=23 // pred_check
        %p579 = pneg %p434
      $region78: #{bert_forward.1} parent=23 // pred_check_branch
        %581 = sbr.rel (%p579) target = $region80
      $region79: #{bert_forward.1} parent=23 // pred_region
        %p582 = scmp.lt.s32.totalorder %s30, 1
        %s583 = scalar_select %p582, %s30, 1
        %s584 = scalar_lea.vmem %s15, %s583
      $region80: #{bert_forward.1} parent=23 // pred_fallthru
        _
    $region24: #{bert_forward.1} parent=5 // pred_fallthru
      _
    %p585 = scmp.le.s32.totalorder 1, %s22
    %p586 = scmp.lt.s32.totalorder %s22, 5
    %p587 = pnand %p585, %p586
    %p588 = pneg %p587
    // Predicated region
    $region81: #{bert_forward.1} parent=5 // pred_check
      _
    $region82: #{bert_forward.1} parent=5 // pred_check_branch
      %590 = sbr.rel (%p587) target = $region84
    $region83: #{bert_forward.1} parent=5 // pred_region
      %s591 = ssub.s32 %s22, 1
      %p592 = scmp.lt.s32.totalorder %s31, 1
      %s593 = scalar_select %p592, %s31, 1
      %s594 = smul.addr %s593, 8
      %s595 = scalar_lea.vmem %s0, %s594
      %p596 = pneg %p60
      %p597 = pneg %p57
      %p598 = scmp.lt.s32.totalorder %s31, 1
      %s599 = scalar_select %p598, %s31, 1
      %s600 = scalar_lea.vmem %s1, %s599
      %p601 = pneg %p86
      %p602 = pneg %p83
      %p603 = pneg %p107
      %p604 = pneg %p104
      %p605 = pneg %p128
      %p606 = pneg %p125
      %p607 = scmp.lt.s32.totalorder %s32, 1
      %s608 = scalar_select %p607, %s32, 1
      %s609 = smul.addr %s608, 48
      %s610 = smul.addr %s609, 4
      %s611 = scalar_lea.vmem %s4, %s610
      %p612 = pneg %p154
      %p613 = pneg %p151
      %p614 = scmp.lt.s32.totalorder %s32, 1
      %s615 = scalar_select %p614, %s32, 1
      %s616 = smul.addr %s615, 12
      %s617 = scalar_lea.vmem %s5, %s616
      %p618 = pneg %p180
      %p619 = pneg %p177
      %p620 = scmp.lt.s32.totalorder %s32, 1
      %s621 = scalar_select %p620, %s32, 1
      %s622 = smul.addr %s621, 4
      %s623 = smul.addr %s622, 4
      %s624 = scalar_lea.vmem %s6, %s623
      %p625 = pneg %p206
      %p626 = pneg %p203
      %p627 = scmp.lt.s32.totalorder %s32, 1
      %s628 = scalar_select %p627, %s32, 1
      %s629 = scalar_lea.vmem %s7, %s628
      %p630 = pneg %p232
      %p631 = pneg %p229
      %p632 = scmp.lt.s32.totalorder %s32, 1
      %s633 = scalar_select %p632, %s32, 1
      %s634 = scalar_lea.vmem %s8, %s633
      %p635 = pneg %p258
      %p636 = pneg %p255
      %p637 = scmp.lt.s32.totalorder %s32, 1
      %s638 = scalar_select %p637, %s32, 1
      %s639 = scalar_lea.vmem %s9, %s638
      %p640 = pneg %p284
      %p641 = pneg %p281
      %p642 = scmp.lt.s32.totalorder %s32, 1
      %s643 = scalar_select %p642, %s32, 1
      %s644 = smul.addr %s643, 4
      %s645 = smul.addr %s644, 4
      %s646 = scalar_lea.vmem %s10, %s645
      %p647 = pneg %p310
      %p648 = pneg %p307
      %p649 = scmp.lt.s32.totalorder %s32, 1
      %s650 = scalar_select %p649, %s32, 1
      %s651 = scalar_lea.vmem %s11, %s650
      %p652 = pneg %p336
      %p653 = pneg %p333
      %p654 = scmp.lt.s32.totalorder %s32, 1
      %s655 = scalar_select %p654, %s32, 1
      %s656 = smul.addr %s655, 8
      %s657 = smul.addr %s656, 4
      %s658 = scalar_lea.vmem %s12, %s657
      %p659 = pneg %p362
      %p660 = pneg %p359
      %p661 = scmp.lt.s32.totalorder %s32, 1
      %s662 = scalar_select %p661, %s32, 1
      %s663 = scalar_lea.vmem %s13, %s662
      %p664 = pneg %p388
      %p665 = pneg %p385
      %p666 = scmp.lt.s32.totalorder %s32, 1
      %s667 = scalar_select %p666, %s32, 1
      %s668 = scalar_lea.vmem %s14, %s667
      %p669 = pneg %p414
      %p670 = pneg %p411
      %p671 = scmp.lt.s32.totalorder %s32, 1
      %s672 = scalar_select %p671, %s32, 1
      %s673 = scalar_lea.vmem %s15, %s672
      %p674 = pneg %p440
      %p675 = pneg %p437
      %p676 = pneg %p466
      %p677 = pneg %p463
      %p678 = scmp.lt.s32.totalorder %s31, 1
      %s679 = scalar_select %p678, %s31, 1
      %s680 = smul.addr %s679, 8
      %s681 = scalar_lea.vmem %s16, %s680
      %p682 = scmp.lt.s32.totalorder %s31, 1
      %s683 = scalar_select %p682, %s31, 1
      %s684 = smul.addr %s683, 8
      %s685 = scalar_lea.vmem %s0, %s684
      %p686 = scmp.lt.s32.totalorder %s31, 1
      %s687 = scalar_select %p686, %s31, 1
      %s688 = scalar_lea.vmem %s1, %s687
      %p689 = scmp.lt.s32.totalorder %s32, 1
      %s690 = scalar_select %p689, %s32, 1
      %s691 = smul.addr %s690, 48
      %s692 = smul.addr %s691, 4
      %s693 = scalar_lea.vmem %s4, %s692
      %p694 = scmp.lt.s32.totalorder %s32, 1
      %s695 = scalar_select %p694, %s32, 1
      %s696 = smul.addr %s695, 12
      %s697 = scalar_lea.vmem %s5, %s696
      %p698 = scmp.lt.s32.totalorder %s32, 1
      %s699 = scalar_select %p698, %s32, 1
      %s700 = smul.addr %s699, 4
      %s701 = smul.addr %s700, 4
      %s702 = scalar_lea.vmem %s6, %s701
      %p703 = scmp.lt.s32.totalorder %s32, 1
      %s704 = scalar_select %p703, %s32, 1
      %s705 = scalar_lea.vmem %s7, %s704
      %p706 = scmp.lt.s32.totalorder %s32, 1
      %s707 = scalar_select %p706, %s32, 1
      %s708 = scalar_lea.vmem %s8, %s707
      %p709 = scmp.lt.s32.totalorder %s32, 1
      %s710 = scalar_select %p709, %s32, 1
      %s711 = scalar_lea.vmem %s9, %s710
      %p712 = scmp.lt.s32.totalorder %s32, 1
      %s713 = scalar_select %p712, %s32, 1
      %s714 = smul.addr %s713, 4
      %s715 = smul.addr %s714, 4
      %s716 = scalar_lea.vmem %s10, %s715
      %p717 = scmp.lt.s32.totalorder %s32, 1
      %s718 = scalar_select %p717, %s32, 1
      %s719 = scalar_lea.vmem %s11, %s718
      %p720 = scmp.lt.s32.totalorder %s32, 1
      %s721 = scalar_select %p720, %s32, 1
      %s722 = smul.addr %s721, 8
      %s723 = smul.addr %s722, 4
      %s724 = scalar_lea.vmem %s12, %s723
      %p725 = scmp.lt.s32.totalorder %s32, 1
      %s726 = scalar_select %p725, %s32, 1
      %s727 = scalar_lea.vmem %s13, %s726
      %p728 = scmp.lt.s32.totalorder %s32, 1
      %s729 = scalar_select %p728, %s32, 1
      %s730 = scalar_lea.vmem %s14, %s729
      %p731 = scmp.lt.s32.totalorder %s32, 1
      %s732 = scalar_select %p731, %s32, 1
      %s733 = scalar_lea.vmem %s15, %s732
      %p734 = scmp.lt.s32.totalorder %s31, 1
      %s735 = scalar_select %p734, %s31, 1
      %s736 = smul.addr %s735, 8
      %s737 = scalar_lea.vmem %s16, %s736
      %p739 = scmp.eq.s32.totalorder %s32, 0
      // Predicated region
      $region85: #{bert_forward.1} parent=83 // pred_check
        %p740 = pneg %p739
      $region86: #{bert_forward.1} parent=83 // pred_check_branch
        %742 = sbr.rel (%p740) target = $region88
      $region87: #{bert_forward.1} parent=83 // pred_region
        %v743 = vld [vmem:[%s685] sm:$0xff]
        %v744 = vld [vmem:[%s2] sm:$0x1]
        %v745 = vld [vmem:[%s3] sm:$0x1]
        %vm746 = vcmask 261120
        %v747 = vsel %vm746, %v743, 0.0
        %748 = vadd.xlane.f32.xlu0 %v747
        %v749 = vpop.xlane.xlu0 %748
        %v750 = vrcp.pop 32.0
        %v751 = vmul.f32 %v749, %v750
        %v752 = vsub.f32 %v743, %v751
        %v753 = vmul.f32 %v752, %v752
        %v754 = vsel %vm746, %v753, 0.0
        %755 = vadd.xlane.f32.xlu0 %v754
        %v756 = vpop.xlane.xlu0 %755
        %v757 = vmul.f32 %v756, %v750
        %v758 = vadd.f32 %v757, 1e-12
        %v759 = vrsqrt.pop %v758
        %v760 = vmul.f32 %v752, %v759
        %v762 = vlaneseq
        %v763 = vshrl.u32 %v762, 7
        %v764 = vsub.s32 0, %v763
        %v765 = vrot.slane %v744, %v764
        %v767 = vmul.f32 %v760, %v765
        %v769 = vlaneseq
        %v770 = vshrl.u32 %v769, 7
        %v771 = vsub.s32 0, %v770
        %v772 = vrot.slane %v745, %v771
        %v774 = vadd.f32 %v767, %v772
        %775 = vst.msk [vmem:[%s737] sm:$0xff] %vm746, %v774
      $region88: #{bert_forward.1} parent=83 // pred_fallthru
        _
      %v776 = vld [vmem:[%s737] sm:$0xff]
      %v777 = vpack.c.bf16 %v776, %v776
      %v778 = vld [vmem:[%s688] sm:$0x1]
      %v779 = vld [vmem:[%s693] sm:$0xf]
      %v780 = vld [vmem:[%s693 + $0x4] sm:$0xf]
      %v781 = vld [vmem:[%s693 + $0x8] sm:$0xf]
      %v782 = vld [vmem:[%s693 + $0xc] sm:$0xf]
      %v783 = vld [vmem:[%s697] sm:$0x1]
      %v785 = vlaneseq
      %v786 = vshrl.u32 %v785, 7
      %v787 = vsub.s32 0, %v786
      %v788 = vrot.slane %v783, %v787
      %v794 = vunpack.c.l.b16 %v779
      %v795 = vunpack.c.l.b16 %v780
      %v796 = vunpack.c.l.b16 %v781
      %v797 = vunpack.c.l.b16 %v782
      %v798 = vpack.c.b16 %v795, %v794
      %v799 = vpack.c.b16 %v797, %v796
      %vm802 = vcmask 261120
      %v804 = vsel %vm802, %v777, 0
      %806 = vmatprep.subr.bf16.mxu0 0
      %807 = vmatpush1.bf16.msra.mxu0 %v798
      %808 = vmatprep.subr.bf16.mxu0 0
      %809 = vmatpush1.bf16.msra.mxu0 %v799
      %810 = vmatprep.subr.bf16.mxu0 0
      %811 = vmatpush1.bf16.msra.mxu0 0
      %812 = vmatprep.subr.bf16.mxu0 0
      %813 = vmatpush1.bf16.msra.mxu0 0
      %814 = vmatprep.subr.bf16.mxu0 0
      %815 = vmatpush1.bf16.msra.mxu0 0
      %816 = vmatprep.subr.bf16.mxu0 0
      %817 = vmatpush1.bf16.msra.mxu0 0
      %818 = vmatprep.subr.bf16.mxu0 0
      %819 = vmatpush1.bf16.msra.mxu0 0
      %820 = vmatprep.subr.bf16.mxu0 0
      %821 = vmatpush1.bf16.msra.mxu0 0
      %822 = vmatprep.subr.bf16.mxu0 0
      %823 = vmatpush1.bf16.msra.mxu0 0
      %824 = vmatprep.subr.bf16.mxu0 0
      %825 = vmatpush1.bf16.msra.mxu0 0
      %826 = vmatprep.subr.bf16.mxu0 0
      %827 = vmatpush1.bf16.msra.mxu0 0
      %828 = vmatprep.subr.bf16.mxu0 0
      %829 = vmatpush1.bf16.msra.mxu0 0
      %830 = vmatprep.subr.bf16.mxu0 0
      %831 = vmatpush1.bf16.msra.mxu0 0
      %832 = vmatprep.subr.bf16.mxu0 0
      %833 = vmatpush1.bf16.msra.mxu0 0
      %834 = vmatprep.subr.bf16.mxu0 0
      %835 = vmatpush1.bf16.msra.mxu0 0
      %836 = vmatprep.subr.bf16.mxu0 0
      %837 = vmatpush1.bf16.msra.mxu0 0
      %838 = vmatprep.mubr.bf16.mxu0 0
      %839 = vmatmul.mubr.bf16.gmra.mrb[0].mxu0 %v804
      %v840 = vpop.f32.mrb[0].mxu0
      %v841 = vadd.f32 %v788, %v840
      %v842 = vpop.f32.mrb[0].mxu0
      %v843 = vpop.f32.mrb[0].mxu0
      %v844 = vpop.f32.mrb[0].mxu0
      %845 = vdwg.mxu0
      %s846 = scalar_lea.vmem %s693, 64
      %v847 = vld [vmem:[%s846] sm:$0xf]
      %v848 = vld [vmem:[%s846 + $0x4] sm:$0xf]
      %v849 = vld [vmem:[%s846 + $0x8] sm:$0xf]
      %v850 = vld [vmem:[%s846 + $0xc] sm:$0xf]
      %s851 = scalar_lea.vmem %s697, 4
      %v852 = vld [vmem:[%s851] sm:$0x1]
      %v854 = vlaneseq
      %v855 = vshrl.u32 %v854, 7
      %v856 = vsub.s32 0, %v855
      %v857 = vrot.slane %v852, %v856
      %v863 = vunpack.c.l.b16 %v847
      %v864 = vunpack.c.l.b16 %v848
      %v865 = vunpack.c.l.b16 %v849
      %v866 = vunpack.c.l.b16 %v850
      %v867 = vpack.c.b16 %v864, %v863
      %v868 = vpack.c.b16 %v866, %v865
      %871 = vmatprep.subr.bf16.mxu0 0
      %872 = vmatpush1.bf16.msra.mxu0 %v867
      %873 = vmatprep.subr.bf16.mxu0 0
      %874 = vmatpush1.bf16.msra.mxu0 %v868
      %875 = vmatprep.subr.bf16.mxu0 0
      %876 = vmatpush1.bf16.msra.mxu0 0
      %877 = vmatprep.subr.bf16.mxu0 0
      %878 = vmatpush1.bf16.msra.mxu0 0
      %879 = vmatprep.subr.bf16.mxu0 0
      %880 = vmatpush1.bf16.msra.mxu0 0
      %881 = vmatprep.subr.bf16.mxu0 0
      %882 = vmatpush1.bf16.msra.mxu0 0
      %883 = vmatprep.subr.bf16.mxu0 0
      %884 = vmatpush1.bf16.msra.mxu0 0
      %885 = vmatprep.subr.bf16.mxu0 0
      %886 = vmatpush1.bf16.msra.mxu0 0
      %887 = vmatprep.subr.bf16.mxu0 0
      %888 = vmatpush1.bf16.msra.mxu0 0
      %889 = vmatprep.subr.bf16.mxu0 0
      %890 = vmatpush1.bf16.msra.mxu0 0
      %891 = vmatprep.subr.bf16.mxu0 0
      %892 = vmatpush1.bf16.msra.mxu0 0
      %893 = vmatprep.subr.bf16.mxu0 0
      %894 = vmatpush1.bf16.msra.mxu0 0
      %895 = vmatprep.subr.bf16.mxu0 0
      %896 = vmatpush1.bf16.msra.mxu0 0
      %897 = vmatprep.subr.bf16.mxu0 0
      %898 = vmatpush1.bf16.msra.mxu0 0
      %899 = vmatprep.subr.bf16.mxu0 0
      %900 = vmatpush1.bf16.msra.mxu0 0
      %901 = vmatprep.subr.bf16.mxu0 0
      %902 = vmatpush1.bf16.msra.mxu0 0
      %903 = vmatprep.mubr.bf16.mxu0 0
      %904 = vmatmul.mubr.bf16.gmra.mrb[0].mxu0 %v804
      %v905 = vpop.f32.mrb[0].mxu0
      %v906 = vadd.f32 %v857, %v905
      %v907 = vpop.f32.mrb[0].mxu0
      %v908 = vpop.f32.mrb[0].mxu0
      %v909 = vpop.f32.mrb[0].mxu0
      %910 = vdwg.mxu0
      %s911 = scalar_lea.vmem %s693, 128
      %v912 = vld [vmem:[%s911] sm:$0xf]
      %v913 = vld [vmem:[%s911 + $0x4] sm:$0xf]
      %v914 = vld [vmem:[%s911 + $0x8] sm:$0xf]
      %v915 = vld [vmem:[%s911 + $0xc] sm:$0xf]
      %s916 = scalar_lea.vmem %s697, 8
      %v917 = vld [vmem:[%s916] sm:$0x1]
      %v919 = vlaneseq
      %v920 = vshrl.u32 %v919, 7
      %v921 = vsub.s32 0, %v920
      %v922 = vrot.slane %v917, %v921
      %v928 = vunpack.c.l.b16 %v912
      %v929 = vunpack.c.l.b16 %v913
      %v930 = vunpack.c.l.b16 %v914
      %v931 = vunpack.c.l.b16 %v915
      %v932 = vpack.c.b16 %v929, %v928
      %v933 = vpack.c.b16 %v931, %v930
      %936 = vmatprep.subr.bf16.mxu0 0
      %937 = vmatpush1.bf16.msra.mxu0 %v932
      %938 = vmatprep.subr.bf16.mxu0 0
      %939 = vmatpush1.bf16.msra.mxu0 %v933
      %940 = vmatprep.subr.bf16.mxu0 0
      %941 = vmatpush1.bf16.msra.mxu0 0
      %942 = vmatprep.subr.bf16.mxu0 0
      %943 = vmatpush1.bf16.msra.mxu0 0
      %944 = vmatprep.subr.bf16.mxu0 0
      %945 = vmatpush1.bf16.msra.mxu0 0
      %946 = vmatprep.subr.bf16.mxu0 0
      %947 = vmatpush1.bf16.msra.mxu0 0
      %948 = vmatprep.subr.bf16.mxu0 0
      %949 = vmatpush1.bf16.msra.mxu0 0
      %950 = vmatprep.subr.bf16.mxu0 0
      %951 = vmatpush1.bf16.msra.mxu0 0
      %952 = vmatprep.subr.bf16.mxu0 0
      %953 = vmatpush1.bf16.msra.mxu0 0
      %954 = vmatprep.subr.bf16.mxu0 0
      %955 = vmatpush1.bf16.msra.mxu0 0
      %956 = vmatprep.subr.bf16.mxu0 0
      %957 = vmatpush1.bf16.msra.mxu0 0
      %958 = vmatprep.subr.bf16.mxu0 0
      %959 = vmatpush1.bf16.msra.mxu0 0
      %960 = vmatprep.subr.bf16.mxu0 0
      %961 = vmatpush1.bf16.msra.mxu0 0
      %962 = vmatprep.subr.bf16.mxu0 0
      %963 = vmatpush1.bf16.msra.mxu0 0
      %964 = vmatprep.subr.bf16.mxu0 0
      %965 = vmatpush1.bf16.msra.mxu0 0
      %966 = vmatprep.subr.bf16.mxu0 0
      %967 = vmatpush1.bf16.msra.mxu0 0
      %968 = vmatprep.mubr.bf16.mxu0 0
      %969 = vmatmul.mubr.bf16.gmra.mrb[0].mxu0 %v804
      %v970 = vpop.f32.mrb[0].mxu0
      %v971 = vadd.f32 %v922, %v970
      %v972 = vpop.f32.mrb[0].mxu0
      %v973 = vpop.f32.mrb[0].mxu0
      %v974 = vpop.f32.mrb[0].mxu0
      %975 = vdwg.mxu0
      %v976 = vmul.f32 %v841, 0.35355338
      %v977 = vpack.c.bf16 %v976, %v976
      %v978 = vpack.c.bf16 %v906, %v906
      %v980 = vlaneseq
      %v981 = vshrl.u32 %v980, 7
      %v982 = vsub.s32 0, %v981
      %v983 = vrot.slane %v778, %v982
      %vm985 = vcmask 64512
      %v987 = vsel %vm985, %v977, 0
      %v990 = vsel %vm985, %v978, 0
      %992 = vmatprep.subr.bf16.mxu0 0
      %993 = vmatpush1.bf16.xpose.msra.mxu0 %v990
      %994 = vmatprep.subr.bf16.mxu0 0
      %995 = vmatpush1.bf16.xpose.msra.mxu0 0
      %996 = vmatprep.subr.bf16.mxu0 0
      %997 = vmatpush1.bf16.xpose.msra.mxu0 0
      %998 = vmatprep.subr.bf16.mxu0 0
      %999 = vmatpush1.bf16.xpose.msra.mxu0 0
      %1000 = vmatprep.subr.bf16.mxu0 0
      %1001 = vmatpush1.bf16.xpose.msra.mxu0 0
      %1002 = vmatprep.subr.bf16.mxu0 0
      %1003 = vmatpush1.bf16.xpose.msra.mxu0 0
      %1004 = vmatprep.subr.bf16.mxu0 0
      %1005 = vmatpush1.bf16.xpose.msra.mxu0 0
      %1006 = vmatprep.subr.bf16.mxu0 0
      %1007 = vmatpush1.bf16.xpose.msra.mxu0 0
      %1008 = vmatprep.subr.bf16.mxu0 0
      %1009 = vmatpush1.bf16.xpose.msra.mxu0 0
      %1010 = vmatprep.subr.bf16.mxu0 0
      %1011 = vmatpush1.bf16.xpose.msra.mxu0 0
      %1012 = vmatprep.subr.bf16.mxu0 0
      %1013 = vmatpush1.bf16.xpose.msra.mxu0 0
      %1014 = vmatprep.subr.bf16.mxu0 0
      %1015 = vmatpush1.bf16.xpose.msra.mxu0 0
      %1016 = vmatprep.subr.bf16.mxu0 0
      %1017 = vmatpush1.bf16.xpose.msra.mxu0 0
      %1018 = vmatprep.subr.bf16.mxu0 0
      %1019 = vmatpush1.bf16.xpose.msra.mxu0 0
      %1020 = vmatprep.subr.bf16.mxu0 0
      %1021 = vmatpush1.bf16.xpose.msra.mxu0 0
      %1022 = vmatprep.subr.bf16.mxu0 0
      %1023 = vmatpush1.bf16.xpose.msra.mxu0 0
      %1024 = vmatprep.mubr.bf16.mxu0 0
      %1025 = vmatmul.mubr.bf16.gmra.mrb[0].mxu0 %v987
      %v1026 = vpop.f32.mrb[0].mxu0
      %v1027 = vadd.f32 %v983, %v1026
      %v1028 = vpop.f32.mrb[0].mxu0
      %v1029 = vpop.f32.mrb[0].mxu0
      %v1030 = vpop.f32.mrb[0].mxu0
      %1031 = vdwg.mxu0
      %v1032 = vsel %vm985, %v1027, -inf
      %1033 = vmax.xlane.f32.xlu0 %v1032
      %v1034 = vpop.xlane.xlu0 %1033
      %v1035 = vsub.f32 %v1027, %v1034
      %v1036 = vmul.f32 %v1035, 1.442695
      %v1037 = vpow.pop %v1036
      %v1038 = vsel %vm985, %v1037, 0.0
      %1039 = vadd.xlane.f32.xlu0 %v1038
      %v1040 = vpop.xlane.xlu0 %1039
      %v1041 = vrcp.pop %v1040
      %v1042 = vmul.f32 %v1037, %v1041
      %v1043 = vpack.c.bf16 %v1042, %v1042
      %v1044 = vpack.c.bf16 %v971, %v971
      %v1046 = vsel %vm985, %v1043, 0
      %vm1048 = vcmask 1043456
      %v1050 = vsel %vm1048, %v1044, 0
      %1052 = vmatprep.subr.bf16.mxu0 0
      %1053 = vmatpush1.bf16.msra.mxu0 %v1050
      %1054 = vmatprep.subr.bf16.mxu0 0
      %1055 = vmatpush1.bf16.msra.mxu0 0
      %1056 = vmatprep.subr.bf16.mxu0 0
      %1057 = vmatpush1.bf16.msra.mxu0 0
      %1058 = vmatprep.subr.bf16.mxu0 0
      %1059 = vmatpush1.bf16.msra.mxu0 0
      %1060 = vmatprep.subr.bf16.mxu0 0
      %1061 = vmatpush1.bf16.msra.mxu0 0
      %1062 = vmatprep.subr.bf16.mxu0 0
      %1063 = vmatpush1.bf16.msra.mxu0 0
      %1064 = vmatprep.subr.bf16.mxu0 0
      %1065 = vmatpush1.bf16.msra.mxu0 0
      %1066 = vmatprep.subr.bf16.mxu0 0
      %1067 = vmatpush1.bf16.msra.mxu0 0
      %1068 = vmatprep.subr.bf16.mxu0 0
      %1069 = vmatpush1.bf16.msra.mxu0 0
      %1070 = vmatprep.subr.bf16.mxu0 0
      %1071 = vmatpush1.bf16.msra.mxu0 0
      %1072 = vmatprep.subr.bf16.mxu0 0
      %1073 = vmatpush1.bf16.msra.mxu0 0
      %1074 = vmatprep.subr.bf16.mxu0 0
      %1075 = vmatpush1.bf16.msra.mxu0 0
      %1076 = vmatprep.subr.bf16.mxu0 0
      %1077 = vmatpush1.bf16.msra.mxu0 0
      %1078 = vmatprep.subr.bf16.mxu0 0
      %1079 = vmatpush1.bf16.msra.mxu0 0
      %1080 = vmatprep.subr.bf16.mxu0 0
      %1081 = vmatpush1.bf16.msra.mxu0 0
      %1082 = vmatprep.subr.bf16.mxu0 0
      %1083 = vmatpush1.bf16.msra.mxu0 0
      %1084 = vmatprep.mubr.bf16.mxu0 0
      %1085 = vmatmul.mubr.bf16.gmra.mrb[0].mxu0 %v1046
      %v1086 = vpop.f32.mrb[0].mxu0
      %v1087 = vadd.f32 0.0, %v1086
      %v1088 = vpop.f32.mrb[0].mxu0
      %v1089 = vpop.f32.mrb[0].mxu0
      %v1090 = vpop.f32.mrb[0].mxu0
      %1091 = vdwg.mxu0
      %v1092 = vpack.c.bf16 %v1087, %v1087
      %v1093 = vld [vmem:[%s702] sm:$0xf]
      %s1094 = scalar_lea.vmem %s693, 16
      %v1095 = vld [vmem:[%s1094] sm:$0xf]
      %v1096 = vld [vmem:[%s1094 + $0x4] sm:$0xf]
      %v1097 = vld [vmem:[%s1094 + $0x8] sm:$0xf]
      %v1098 = vld [vmem:[%s1094 + $0xc] sm:$0xf]
      %s1099 = scalar_lea.vmem %s697, 1
      %v1100 = vld [vmem:[%s1099] sm:$0x1]
      %v1102 = vlaneseq
      %v1103 = vshrl.u32 %v1102, 7
      %v1104 = vsub.s32 0, %v1103
      %v1105 = vrot.slane %v1100, %v1104
      %v1111 = vunpack.c.l.b16 %v1095
      %v1112 = vunpack.c.l.b16 %v1096
      %v1113 = vunpack.c.l.b16 %v1097
      %v1114 = vunpack.c.l.b16 %v1098
      %v1115 = vpack.c.b16 %v1112, %v1111
      %v1116 = vpack.c.b16 %v1114, %v1113
      %1119 = vmatprep.subr.bf16.mxu0 0
      %1120 = vmatpush1.bf16.msra.mxu0 %v1115
      %1121 = vmatprep.subr.bf16.mxu0 0
      %1122 = vmatpush1.bf16.msra.mxu0 %v1116
      %1123 = vmatprep.subr.bf16.mxu0 0
      %1124 = vmatpush1.bf16.msra.mxu0 0
      %1125 = vmatprep.subr.bf16.mxu0 0
      %1126 = vmatpush1.bf16.msra.mxu0 0
      %1127 = vmatprep.subr.bf16.mxu0 0
      %1128 = vmatpush1.bf16.msra.mxu0 0
      %1129 = vmatprep.subr.bf16.mxu0 0
      %1130 = vmatpush1.bf16.msra.mxu0 0
      %1131 = vmatprep.subr.bf16.mxu0 0
      %1132 = vmatpush1.bf16.msra.mxu0 0
      %1133 = vmatprep.subr.bf16.mxu0 0
      %1134 = vmatpush1.bf16.msra.mxu0 0
      %1135 = vmatprep.subr.bf16.mxu0 0
      %1136 = vmatpush1.bf16.msra.mxu0 0
      %1137 = vmatprep.subr.bf16.mxu0 0
      %1138 = vmatpush1.bf16.msra.mxu0 0
      %1139 = vmatprep.subr.bf16.mxu0 0
      %1140 = vmatpush1.bf16.msra.mxu0 0
      %1141 = vmatprep.subr.bf16.mxu0 0
      %1142 = vmatpush1.bf16.msra.mxu0 0
      %1143 = vmatprep.subr.bf16.mxu0 0
      %1144 = vmatpush1.bf16.msra.mxu0 0
      %1145 = vmatprep.subr.bf16.mxu0 0
      %1146 = vmatpush1.bf16.msra.mxu0 0
      %1147 = vmatprep.subr.bf16.mxu0 0
      %1148 = vmatpush1.bf16.msra.mxu0 0
      %1149 = vmatprep.subr.bf16.mxu0 0
      %1150 = vmatpush1.bf16.msra.mxu0 0
      %1151 = vmatprep.mubr.bf16.mxu0 0
      %1152 = vmatmul.mubr.bf16.gmra.mrb[0].mxu0 %v804
      %v1153 = vpop.f32.mrb[0].mxu0
      %v1154 = vadd.f32 %v1105, %v1153
      %v1155 = vpop.f32.mrb[0].mxu0
      %v1156 = vpop.f32.mrb[0].mxu0
      %v1157 = vpop.f32.mrb[0].mxu0
      %1158 = vdwg.mxu0
      %s1159 = scalar_lea.vmem %s693, 80
      %v1160 = vld [vmem:[%s1159] sm:$0xf]
      %v1161 = vld [vmem:[%s1159 + $0x4] sm:$0xf]
      %v1162 = vld [vmem:[%s1159 + $0x8] sm:$0xf]
      %v1163 = vld [vmem:[%s1159 + $0xc] sm:$0xf]
      %s1164 = scalar_lea.vmem %s697, 5
      %v1165 = vld [vmem:[%s1164] sm:$0x1]
      %v1167 = vlaneseq
      %v1168 = vshrl.u32 %v1167, 7
      %v1169 = vsub.s32 0, %v1168
      %v1170 = vrot.slane %v1165, %v1169
      %v1176 = vunpack.c.l.b16 %v1160
      %v1177 = vunpack.c.l.b16 %v1161
      %v1178 = vunpack.c.l.b16 %v1162
      %v1179 = vunpack.c.l.b16 %v1163
      %v1180 = vpack.c.b16 %v1177, %v1176
      %v1181 = vpack.c.b16 %v1179, %v1178
      %1184 = vmatprep.subr.bf16.mxu0 0
      %1185 = vmatpush1.bf16.msra.mxu0 %v1180
      %1186 = vmatprep.subr.bf16.mxu0 0
      %1187 = vmatpush1.bf16.msra.mxu0 %v1181
      %1188 = vmatprep.subr.bf16.mxu0 0
      %1189 = vmatpush1.bf16.msra.mxu0 0
      %1190 = vmatprep.subr.bf16.mxu0 0
      %1191 = vmatpush1.bf16.msra.mxu0 0
      %1192 = vmatprep.subr.bf16.mxu0 0
      %1193 = vmatpush1.bf16.msra.mxu0 0
      %1194 = vmatprep.subr.bf16.mxu0 0
      %1195 = vmatpush1.bf16.msra.mxu0 0
      %1196 = vmatprep.subr.bf16.mxu0 0
      %1197 = vmatpush1.bf16.msra.mxu0 0
      %1198 = vmatprep.subr.bf16.mxu0 0
      %1199 = vmatpush1.bf16.msra.mxu0 0
      %1200 = vmatprep.subr.bf16.mxu0 0
      %1201 = vmatpush1.bf16.msra.mxu0 0
      %1202 = vmatprep.subr.bf16.mxu0 0
      %1203 = vmatpush1.bf16.msra.mxu0 0
      %1204 = vmatprep.subr.bf16.mxu0 0
      %1205 = vmatpush1.bf16.msra.mxu0 0
      %1206 = vmatprep.subr.bf16.mxu0 0
      %1207 = vmatpush1.bf16.msra.mxu0 0
      %1208 = vmatprep.subr.bf16.mxu0 0
      %1209 = vmatpush1.bf16.msra.mxu0 0
      %1210 = vmatprep.subr.bf16.mxu0 0
      %1211 = vmatpush1.bf16.msra.mxu0 0
      %1212 = vmatprep.subr.bf16.mxu0 0
      %1213 = vmatpush1.bf16.msra.mxu0 0
      %1214 = vmatprep.subr.bf16.mxu0 0
      %1215 = vmatpush1.bf16.msra.mxu0 0
      %1216 = vmatprep.mubr.bf16.mxu0 0
      %1217 = vmatmul.mubr.bf16.gmra.mrb[0].mxu0 %v804
      %v1218 = vpop.f32.mrb[0].mxu0
      %v1219 = vadd.f32 %v1170, %v1218
      %v1220 = vpop.f32.mrb[0].mxu0
      %v1221 = vpop.f32.mrb[0].mxu0
      %v1222 = vpop.f32.mrb[0].mxu0
      %1223 = vdwg.mxu0
      %s1224 = scalar_lea.vmem %s693, 144
      %v1225 = vld [vmem:[%s1224] sm:$0xf]
      %v1226 = vld [vmem:[%s1224 + $0x4] sm:$0xf]
      %v1227 = vld [vmem:[%s1224 + $0x8] sm:$0xf]
      %v1228 = vld [vmem:[%s1224 + $0xc] sm:$0xf]
      %s1229 = scalar_lea.vmem %s697, 9
      %v1230 = vld [vmem:[%s1229] sm:$0x1]
      %v1232 = vlaneseq
      %v1233 = vshrl.u32 %v1232, 7
      %v1234 = vsub.s32 0, %v1233
      %v1235 = vrot.slane %v1230, %v1234
      %v1241 = vunpack.c.l.b16 %v1225
      %v1242 = vunpack.c.l.b16 %v1226
      %v1243 = vunpack.c.l.b16 %v1227
      %v1244 = vunpack.c.l.b16 %v1228
      %v1245 = vpack.c.b16 %v1242, %v1241
      %v1246 = vpack.c.b16 %v1244, %v1243
      %1249 = vmatprep.subr.bf16.mxu0 0
      %1250 = vmatpush1.bf16.msra.mxu0 %v1245
      %1251 = vmatprep.subr.bf16.mxu0 0
      %1252 = vmatpush1.bf16.msra.mxu0 %v1246
      %1253 = vmatprep.subr.bf16.mxu0 0
      %1254 = vmatpush1.bf16.msra.mxu0 0
      %1255 = vmatprep.subr.bf16.mxu0 0
      %1256 = vmatpush1.bf16.msra.mxu0 0
      %1257 = vmatprep.subr.bf16.mxu0 0
      %1258 = vmatpush1.bf16.msra.mxu0 0
      %1259 = vmatprep.subr.bf16.mxu0 0
      %1260 = vmatpush1.bf16.msra.mxu0 0
      %1261 = vmatprep.subr.bf16.mxu0 0
      %1262 = vmatpush1.bf16.msra.mxu0 0
      %1263 = vmatprep.subr.bf16.mxu0 0
      %1264 = vmatpush1.bf16.msra.mxu0 0
      %1265 = vmatprep.subr.bf16.mxu0 0
      %1266 = vmatpush1.bf16.msra.mxu0 0
      %1267 = vmatprep.subr.bf16.mxu0 0
      %1268 = vmatpush1.bf16.msra.mxu0 0
      %1269 = vmatprep.subr.bf16.mxu0 0
      %1270 = vmatpush1.bf16.msra.mxu0 0
      %1271 = vmatprep.subr.bf16.mxu0 0
      %1272 = vmatpush1.bf16.msra.mxu0 0
      %1273 = vmatprep.subr.bf16.mxu0 0
      %1274 = vmatpush1.bf16.msra.mxu0 0
      %1275 = vmatprep.subr.bf16.mxu0 0
      %1276 = vmatpush1.bf16.msra.mxu0 0
      %1277 = vmatprep.subr.bf16.mxu0 0
      %1278 = vmatpush1.bf16.msra.mxu0 0
      %1279 = vmatprep.subr.bf16.mxu0 0
      %1280 = vmatpush1.bf16.msra.mxu0 0
      %1281 = vmatprep.mubr.bf16.mxu0 0
      %1282 = vmatmul.mubr.bf16.gmra.mrb[0].mxu0 %v804
      %v1283 = vpop.f32.mrb[0].mxu0
      %v1284 = vadd.f32 %v1235, %v1283
      %v1285 = vpop.f32.mrb[0].mxu0
      %v1286 = vpop.f32.mrb[0].mxu0
      %v1287 = vpop.f32.mrb[0].mxu0
      %1288 = vdwg.mxu0
      %v1289 = vmul.f32 %v1154, 0.35355338
      %v1290 = vpack.c.bf16 %v1289, %v1289
      %v1291 = vpack.c.bf16 %v1219, %v1219
      %v1293 = vsel %vm985, %v1290, 0
      %v1296 = vsel %vm985, %v1291, 0
      %1298 = vmatprep.subr.bf16.mxu0 0
      %1299 = vmatpush1.bf16.xpose.msra.mxu0 %v1296
      %1300 = vmatprep.subr.bf16.mxu0 0
      %1301 = vmatpush1.bf16.xpose.msra.mxu0 0
      %1302 = vmatprep.subr.bf16.mxu0 0
      %1303 = vmatpush1.bf16.xpose.msra.mxu0 0
      %1304 = vmatprep.subr.bf16.mxu0 0
      %1305 = vmatpush1.bf16.xpose.msra.mxu0 0
      %1306 = vmatprep.subr.bf16.mxu0 0
      %1307 = vmatpush1.bf16.xpose.msra.mxu0 0
      %1308 = vmatprep.subr.bf16.mxu0 0
      %1309 = vmatpush1.bf16.xpose.msra.mxu0 0
      %1310 = vmatprep.subr.bf16.mxu0 0
      %1311 = vmatpush1.bf16.xpose.msra.mxu0 0
      %1312 = vmatprep.subr.bf16.mxu0 0
      %1313 = vmatpush1.bf16.xpose.msra.mxu0 0
      %1314 = vmatprep.subr.bf16.mxu0 0
      %1315 = vmatpush1.bf16.xpose.msra.mxu0 0
      %1316 = vmatprep.subr.bf16.mxu0 0
      %1317 = vmatpush1.bf16.xpose.msra.mxu0 0
      %1318 = vmatprep.subr.bf16.mxu0 0
      %1319 = vmatpush1.bf16.xpose.msra.mxu0 0
      %1320 = vmatprep.subr.bf16.mxu0 0
      %1321 = vmatpush1.bf16.xpose.msra.mxu0 0
      %1322 = vmatprep.subr.bf16.mxu0 0
      %1323 = vmatpush1.bf16.xpose.msra.mxu0 0
      %1324 = vmatprep.subr.bf16.mxu0 0
      %1325 = vmatpush1.bf16.xpose.msra.mxu0 0
      %1326 = vmatprep.subr.bf16.mxu0 0
      %1327 = vmatpush1.bf16.xpose.msra.mxu0 0
      %1328 = vmatprep.subr.bf16.mxu0 0
      %1329 = vmatpush1.bf16.xpose.msra.mxu0 0
      %1330 = vmatprep.mubr.bf16.mxu0 0
      %1331 = vmatmul.mubr.bf16.gmra.mrb[0].mxu0 %v1293
      %v1332 = vpop.f32.mrb[0].mxu0
      %v1333 = vadd.f32 %v983, %v1332
      %v1334 = vpop.f32.mrb[0].mxu0
      %v1335 = vpop.f32.mrb[0].mxu0
      %v1336 = vpop.f32.mrb[0].mxu0
      %1337 = vdwg.mxu0
      %v1338 = vsel %vm985, %v1333, -inf
      %1339 = vmax.xlane.f32.xlu0 %v1338
      %v1340 = vpop.xlane.xlu0 %1339
      %v1341 = vsub.f32 %v1333, %v1340
      %v1342 = vmul.f32 %v1341, 1.442695
      %v1343 = vpow.pop %v1342
      %v1344 = vsel %vm985, %v1343, 0.0
      %1345 = vadd.xlane.f32.xlu0 %v1344
      %v1346 = vpop.xlane.xlu0 %1345
      %v1347 = vrcp.pop %v1346
      %v1348 = vmul.f32 %v1343, %v1347
      %v1349 = vpack.c.bf16 %v1348, %v1348
      %v1350 = vpack.c.bf16 %v1284, %v1284
      %v1352 = vsel %vm985, %v1349, 0
      %v1355 = vsel %vm1048, %v1350, 0
      %1357 = vmatprep.subr.bf16.mxu0 0
      %1358 = vmatpush1.bf16.msra.mxu0 %v1355
      %1359 = vmatprep.subr.bf16.mxu0 0
      %1360 = vmatpush1.bf16.msra.mxu0 0
      %1361 = vmatprep.subr.bf16.mxu0 0
      %1362 = vmatpush1.bf16.msra.mxu0 0
      %1363 = vmatprep.subr.bf16.mxu0 0
      %1364 = vmatpush1.bf16.msra.mxu0 0
      %1365 = vmatprep.subr.bf16.mxu0 0
      %1366 = vmatpush1.bf16.msra.mxu0 0
      %1367 = vmatprep.subr.bf16.mxu0 0
      %1368 = vmatpush1.bf16.msra.mxu0 0
      %1369 = vmatprep.subr.bf16.mxu0 0
      %1370 = vmatpush1.bf16.msra.mxu0 0
      %1371 = vmatprep.subr.bf16.mxu0 0
      %1372 = vmatpush1.bf16.msra.mxu0 0
      %1373 = vmatprep.subr.bf16.mxu0 0
      %1374 = vmatpush1.bf16.msra.mxu0 0
      %1375 = vmatprep.subr.bf16.mxu0 0
      %1376 = vmatpush1.bf16.msra.mxu0 0
      %1377 = vmatprep.subr.bf16.mxu0 0
      %1378 = vmatpush1.bf16.msra.mxu0 0
      %1379 = vmatprep.subr.bf16.mxu0 0
      %1380 = vmatpush1.bf16.msra.mxu0 0
      %1381 = vmatprep.subr.bf16.mxu0 0
      %1382 = vmatpush1.bf16.msra.mxu0 0
      %1383 = vmatprep.subr.bf16.mxu0 0
      %1384 = vmatpush1.bf16.msra.mxu0 0
      %1385 = vmatprep.subr.bf16.mxu0 0
      %1386 = vmatpush1.bf16.msra.mxu0 0
      %1387 = vmatprep.subr.bf16.mxu0 0
      %1388 = vmatpush1.bf16.msra.mxu0 0
      %1389 = vmatprep.mubr.bf16.mxu0 0
      %1390 = vmatmul.mubr.bf16.gmra.mrb[0].mxu0 %v1352
      %v1391 = vpop.f32.mrb[0].mxu0
      %v1392 = vadd.f32 0.0, %v1391
      %v1393 = vpop.f32.mrb[0].mxu0
      %v1394 = vpop.f32.mrb[0].mxu0
      %v1395 = vpop.f32.mrb[0].mxu0
      %1396 = vdwg.mxu0
      %v1397 = vpack.c.bf16 %v1392, %v1392
      %s1398 = scalar_lea.vmem %s702, 4
      %v1399 = vld [vmem:[%s1398] sm:$0xf]
      %v1401 = vsel %vm985, %v1397, 0
      %v1404 = vsel %vm1048, %v1399, 0
      %1406 = vmatprep.subr.bf16.mxu0 0
      %1407 = vmatpush1.bf16.msra.mxu0 %v1404
      %1408 = vmatprep.subr.bf16.mxu0 0
      %1409 = vmatpush1.bf16.msra.mxu0 0
      %1410 = vmatprep.subr.bf16.mxu0 0
      %1411 = vmatpush1.bf16.msra.mxu0 0
      %1412 = vmatprep.subr.bf16.mxu0 0
      %1413 = vmatpush1.bf16.msra.mxu0 0
      %1414 = vmatprep.subr.bf16.mxu0 0
      %1415 = vmatpush1.bf16.msra.mxu0 0
      %1416 = vmatprep.subr.bf16.mxu0 0
      %1417 = vmatpush1.bf16.msra.mxu0 0
      %1418 = vmatprep.subr.bf16.mxu0 0
      %1419 = vmatpush1.bf16.msra.mxu0 0
      %1420 = vmatprep.subr.bf16.mxu0 0
      %1421 = vmatpush1.bf16.msra.mxu0 0
      %1422 = vmatprep.subr.bf16.mxu0 0
      %1423 = vmatpush1.bf16.msra.mxu0 0
      %1424 = vmatprep.subr.bf16.mxu0 0
      %1425 = vmatpush1.bf16.msra.mxu0 0
      %1426 = vmatprep.subr.bf16.mxu0 0
      %1427 = vmatpush1.bf16.msra.mxu0 0
      %1428 = vmatprep.subr.bf16.mxu0 0
      %1429 = vmatpush1.bf16.msra.mxu0 0
      %1430 = vmatprep.subr.bf16.mxu0 0
      %1431 = vmatpush1.bf16.msra.mxu0 0
      %1432 = vmatprep.subr.bf16.mxu0 0
      %1433 = vmatpush1.bf16.msra.mxu0 0
      %1434 = vmatprep.subr.bf16.mxu0 0
      %1435 = vmatpush1.bf16.msra.mxu0 0
      %1436 = vmatprep.subr.bf16.mxu0 0
      %1437 = vmatpush1.bf16.msra.mxu0 0
      %1438 = vmatprep.mubr.bf16.mxu0 0
      %1439 = vmatmul.mubr.bf16.gmra.mrb[0].mxu0 %v1401
      %v1440 = vpop.f32.mrb[0].mxu0
      %v1441 = vadd.f32 0.0, %v1440
      %v1442 = vpop.f32.mrb[0].mxu0
      %v1443 = vpop.f32.mrb[0].mxu0
      %v1444 = vpop.f32.mrb[0].mxu0
      %1445 = vdwg.mxu0
      %v1447 = vsel %vm985, %v1092, 0
      %v1450 = vsel %vm1048, %v1093, 0
      %1452 = vmatprep.subr.bf16.mxu0 0
      %1453 = vmatpush1.bf16.msra.mxu0 %v1450
      %1454 = vmatprep.subr.bf16.mxu0 0
      %1455 = vmatpush1.bf16.msra.mxu0 0
      %1456 = vmatprep.subr.bf16.mxu0 0
      %1457 = vmatpush1.bf16.msra.mxu0 0
      %1458 = vmatprep.subr.bf16.mxu0 0
      %1459 = vmatpush1.bf16.msra.mxu0 0
      %1460 = vmatprep.subr.bf16.mxu0 0
      %1461 = vmatpush1.bf16.msra.mxu0 0
      %1462 = vmatprep.subr.bf16.mxu0 0
      %1463 = vmatpush1.bf16.msra.mxu0 0
      %1464 = vmatprep.subr.bf16.mxu0 0
      %1465 = vmatpush1.bf16.msra.mxu0 0
      %1466 = vmatprep.subr.bf16.mxu0 0
      %1467 = vmatpush1.bf16.msra.mxu0 0
      %1468 = vmatprep.subr.bf16.mxu0 0
      %1469 = vmatpush1.bf16.msra.mxu0 0
      %1470 = vmatprep.subr.bf16.mxu0 0
      %1471 = vmatpush1.bf16.msra.mxu0 0
      %1472 = vmatprep.subr.bf16.mxu0 0
      %1473 = vmatpush1.bf16.msra.mxu0 0
      %1474 = vmatprep.subr.bf16.mxu0 0
      %1475 = vmatpush1.bf16.msra.mxu0 0
      %1476 = vmatprep.subr.bf16.mxu0 0
      %1477 = vmatpush1.bf16.msra.mxu0 0
      %1478 = vmatprep.subr.bf16.mxu0 0
      %1479 = vmatpush1.bf16.msra.mxu0 0
      %1480 = vmatprep.subr.bf16.mxu0 0
      %1481 = vmatpush1.bf16.msra.mxu0 0
      %1482 = vmatprep.subr.bf16.mxu0 0
      %1483 = vmatpush1.bf16.msra.mxu0 0
      %1484 = vmatprep.mubr.bf16.mxu0 0
      %1485 = vmatmul.mubr.bf16.gmra.mrb[0].mxu0 %v1447
      %v1486 = vpop.f32.mrb[0].mxu0
      %v1487 = vadd.f32 %v1441, %v1486
      %v1488 = vpop.f32.mrb[0].mxu0
      %v1489 = vpop.f32.mrb[0].mxu0
      %v1490 = vpop.f32.mrb[0].mxu0
      %1491 = vdwg.mxu0
      %s1492 = scalar_lea.vmem %s693, 32
      %v1493 = vld [vmem:[%s1492] sm:$0xf]
      %v1494 = vld [vmem:[%s1492 + $0x4] sm:$0xf]
      %v1495 = vld [vmem:[%s1492 + $0x8] sm:$0xf]
      %v1496 = vld [vmem:[%s1492 + $0xc] sm:$0xf]
      %s1497 = scalar_lea.vmem %s697, 2
      %v1498 = vld [vmem:[%s1497] sm:$0x1]
      %v1500 = vlaneseq
      %v1501 = vshrl.u32 %v1500, 7
      %v1502 = vsub.s32 0, %v1501
      %v1503 = vrot.slane %v1498, %v1502
      %v1509 = vunpack.c.l.b16 %v1493
      %v1510 = vunpack.c.l.b16 %v1494
      %v1511 = vunpack.c.l.b16 %v1495
      %v1512 = vunpack.c.l.b16 %v1496
      %v1513 = vpack.c.b16 %v1510, %v1509
      %v1514 = vpack.c.b16 %v1512, %v1511
      %1517 = vmatprep.subr.bf16.mxu0 0
      %1518 = vmatpush1.bf16.msra.mxu0 %v1513
      %1519 = vmatprep.subr.bf16.mxu0 0
      %1520 = vmatpush1.bf16.msra.mxu0 %v1514
      %1521 = vmatprep.subr.bf16.mxu0 0
      %1522 = vmatpush1.bf16.msra.mxu0 0
      %1523 = vmatprep.subr.bf16.mxu0 0
      %1524 = vmatpush1.bf16.msra.mxu0 0
      %1525 = vmatprep.subr.bf16.mxu0 0
      %1526 = vmatpush1.bf16.msra.mxu0 0
      %1527 = vmatprep.subr.bf16.mxu0 0
      %1528 = vmatpush1.bf16.msra.mxu0 0
      %1529 = vmatprep.subr.bf16.mxu0 0
      %1530 = vmatpush1.bf16.msra.mxu0 0
      %1531 = vmatprep.subr.bf16.mxu0 0
      %1532 = vmatpush1.bf16.msra.mxu0 0
      %1533 = vmatprep.subr.bf16.mxu0 0
      %1534 = vmatpush1.bf16.msra.mxu0 0
      %1535 = vmatprep.subr.bf16.mxu0 0
      %1536 = vmatpush1.bf16.msra.mxu0 0
      %1537 = vmatprep.subr.bf16.mxu0 0
      %1538 = vmatpush1.bf16.msra.mxu0 0
      %1539 = vmatprep.subr.bf16.mxu0 0
      %1540 = vmatpush1.bf16.msra.mxu0 0
      %1541 = vmatprep.subr.bf16.mxu0 0
      %1542 = vmatpush1.bf16.msra.mxu0 0
      %1543 = vmatprep.subr.bf16.mxu0 0
      %1544 = vmatpush1.bf16.msra.mxu0 0
      %1545 = vmatprep.subr.bf16.mxu0 0
      %1546 = vmatpush1.bf16.msra.mxu0 0
      %1547 = vmatprep.subr.bf16.mxu0 0
      %1548 = vmatpush1.bf16.msra.mxu0 0
      %1549 = vmatprep.mubr.bf16.mxu0 0
      %1550 = vmatmul.mubr.bf16.gmra.mrb[0].mxu0 %v804
      %v1551 = vpop.f32.mrb[0].mxu0
      %v1552 = vadd.f32 %v1503, %v1551
      %v1553 = vpop.f32.mrb[0].mxu0
      %v1554 = vpop.f32.mrb[0].mxu0
      %v1555 = vpop.f32.mrb[0].mxu0
      %1556 = vdwg.mxu0
      %s1557 = scalar_lea.vmem %s693, 96
      %v1558 = vld [vmem:[%s1557] sm:$0xf]
      %v1559 = vld [vmem:[%s1557 + $0x4] sm:$0xf]
      %v1560 = vld [vmem:[%s1557 + $0x8] sm:$0xf]
      %v1561 = vld [vmem:[%s1557 + $0xc] sm:$0xf]
      %s1562 = scalar_lea.vmem %s697, 6
      %v1563 = vld [vmem:[%s1562] sm:$0x1]
      %v1565 = vlaneseq
      %v1566 = vshrl.u32 %v1565, 7
      %v1567 = vsub.s32 0, %v1566
      %v1568 = vrot.slane %v1563, %v1567
      %v1574 = vunpack.c.l.b16 %v1558
      %v1575 = vunpack.c.l.b16 %v1559
      %v1576 = vunpack.c.l.b16 %v1560
      %v1577 = vunpack.c.l.b16 %v1561
      %v1578 = vpack.c.b16 %v1575, %v1574
      %v1579 = vpack.c.b16 %v1577, %v1576
      %1582 = vmatprep.subr.bf16.mxu0 0
      %1583 = vmatpush1.bf16.msra.mxu0 %v1578
      %1584 = vmatprep.subr.bf16.mxu0 0
      %1585 = vmatpush1.bf16.msra.mxu0 %v1579
      %1586 = vmatprep.subr.bf16.mxu0 0
      %1587 = vmatpush1.bf16.msra.mxu0 0
      %1588 = vmatprep.subr.bf16.mxu0 0
      %1589 = vmatpush1.bf16.msra.mxu0 0
      %1590 = vmatprep.subr.bf16.mxu0 0
      %1591 = vmatpush1.bf16.msra.mxu0 0
      %1592 = vmatprep.subr.bf16.mxu0 0
      %1593 = vmatpush1.bf16.msra.mxu0 0
      %1594 = vmatprep.subr.bf16.mxu0 0
      %1595 = vmatpush1.bf16.msra.mxu0 0
      %1596 = vmatprep.subr.bf16.mxu0 0
      %1597 = vmatpush1.bf16.msra.mxu0 0
      %1598 = vmatprep.subr.bf16.mxu0 0
      %1599 = vmatpush1.bf16.msra.mxu0 0
      %1600 = vmatprep.subr.bf16.mxu0 0
      %1601 = vmatpush1.bf16.msra.mxu0 0
      %1602 = vmatprep.subr.bf16.mxu0 0
      %1603 = vmatpush1.bf16.msra.mxu0 0
      %1604 = vmatprep.subr.bf16.mxu0 0
      %1605 = vmatpush1.bf16.msra.mxu0 0
      %1606 = vmatprep.subr.bf16.mxu0 0
      %1607 = vmatpush1.bf16.msra.mxu0 0
      %1608 = vmatprep.subr.bf16.mxu0 0
      %1609 = vmatpush1.bf16.msra.mxu0 0
      %1610 = vmatprep.subr.bf16.mxu0 0
      %1611 = vmatpush1.bf16.msra.mxu0 0
      %1612 = vmatprep.subr.bf16.mxu0 0
      %1613 = vmatpush1.bf16.msra.mxu0 0
      %1614 = vmatprep.mubr.bf16.mxu0 0
      %1615 = vmatmul.mubr.bf16.gmra.mrb[0].mxu0 %v804
      %v1616 = vpop.f32.mrb[0].mxu0
      %v1617 = vadd.f32 %v1568, %v1616
      %v1618 = vpop.f32.mrb[0].mxu0
      %v1619 = vpop.f32.mrb[0].mxu0
      %v1620 = vpop.f32.mrb[0].mxu0
      %1621 = vdwg.mxu0
      %s1622 = scalar_lea.vmem %s693, 160
      %v1623 = vld [vmem:[%s1622] sm:$0xf]
      %v1624 = vld [vmem:[%s1622 + $0x4] sm:$0xf]
      %v1625 = vld [vmem:[%s1622 + $0x8] sm:$0xf]
      %v1626 = vld [vmem:[%s1622 + $0xc] sm:$0xf]
      %s1627 = scalar_lea.vmem %s697, 10
      %v1628 = vld [vmem:[%s1627] sm:$0x1]
      %v1630 = vlaneseq
      %v1631 = vshrl.u32 %v1630, 7
      %v1632 = vsub.s32 0, %v1631
      %v1633 = vrot.slane %v1628, %v1632
      %v1639 = vunpack.c.l.b16 %v1623
      %v1640 = vunpack.c.l.b16 %v1624
      %v1641 = vunpack.c.l.b16 %v1625
      %v1642 = vunpack.c.l.b16 %v1626
      %v1643 = vpack.c.b16 %v1640, %v1639
      %v1644 = vpack.c.b16 %v1642, %v1641
      %1647 = vmatprep.subr.bf16.mxu0 0
      %1648 = vmatpush1.bf16.msra.mxu0 %v1643
      %1649 = vmatprep.subr.bf16.mxu0 0
      %1650 = vmatpush1.bf16.msra.mxu0 %v1644
      %1651 = vmatprep.subr.bf16.mxu0 0
      %1652 = vmatpush1.bf16.msra.mxu0 0
      %1653 = vmatprep.subr.bf16.mxu0 0
      %1654 = vmatpush1.bf16.msra.mxu0 0
      %1655 = vmatprep.subr.bf16.mxu0 0
      %1656 = vmatpush1.bf16.msra.mxu0 0
      %1657 = vmatprep.subr.bf16.mxu0 0
      %1658 = vmatpush1.bf16.msra.mxu0 0
      %1659 = vmatprep.subr.bf16.mxu0 0
      %1660 = vmatpush1.bf16.msra.mxu0 0
      %1661 = vmatprep.subr.bf16.mxu0 0
      %1662 = vmatpush1.bf16.msra.mxu0 0
      %1663 = vmatprep.subr.bf16.mxu0 0
      %1664 = vmatpush1.bf16.msra.mxu0 0
      %1665 = vmatprep.subr.bf16.mxu0 0
      %1666 = vmatpush1.bf16.msra.mxu0 0
      %1667 = vmatprep.subr.bf16.mxu0 0
      %1668 = vmatpush1.bf16.msra.mxu0 0
      %1669 = vmatprep.subr.bf16.mxu0 0
      %1670 = vmatpush1.bf16.msra.mxu0 0
      %1671 = vmatprep.subr.bf16.mxu0 0
      %1672 = vmatpush1.bf16.msra.mxu0 0
      %1673 = vmatprep.subr.bf16.mxu0 0
      %1674 = vmatpush1.bf16.msra.mxu0 0
      %1675 = vmatprep.subr.bf16.mxu0 0
      %1676 = vmatpush1.bf16.msra.mxu0 0
      %1677 = vmatprep.subr.bf16.mxu0 0
      %1678 = vmatpush1.bf16.msra.mxu0 0
      %1679 = vmatprep.mubr.bf16.mxu0 0
      %1680 = vmatmul.mubr.bf16.gmra.mrb[0].mxu0 %v804
      %v1681 = vpop.f32.mrb[0].mxu0
      %v1682 = vadd.f32 %v1633, %v1681
      %v1683 = vpop.f32.mrb[0].mxu0
      %v1684 = vpop.f32.mrb[0].mxu0
      %v1685 = vpop.f32.mrb[0].mxu0
      %1686 = vdwg.mxu0
      %v1687 = vmul.f32 %v1552, 0.35355338
      %v1688 = vpack.c.bf16 %v1687, %v1687
      %v1689 = vpack.c.bf16 %v1617, %v1617
      %v1691 = vsel %vm985, %v1688, 0
      %v1694 = vsel %vm985, %v1689, 0
      %1696 = vmatprep.subr.bf16.mxu0 0
      %1697 = vmatpush1.bf16.xpose.msra.mxu0 %v1694
      %1698 = vmatprep.subr.bf16.mxu0 0
      %1699 = vmatpush1.bf16.xpose.msra.mxu0 0
      %1700 = vmatprep.subr.bf16.mxu0 0
      %1701 = vmatpush1.bf16.xpose.msra.mxu0 0
      %1702 = vmatprep.subr.bf16.mxu0 0
      %1703 = vmatpush1.bf16.xpose.msra.mxu0 0
      %1704 = vmatprep.subr.bf16.mxu0 0
      %1705 = vmatpush1.bf16.xpose.msra.mxu0 0
      %1706 = vmatprep.subr.bf16.mxu0 0
      %1707 = vmatpush1.bf16.xpose.msra.mxu0 0
      %1708 = vmatprep.subr.bf16.mxu0 0
      %1709 = vmatpush1.bf16.xpose.msra.mxu0 0
      %1710 = vmatprep.subr.bf16.mxu0 0
      %1711 = vmatpush1.bf16.xpose.msra.mxu0 0
      %1712 = vmatprep.subr.bf16.mxu0 0
      %1713 = vmatpush1.bf16.xpose.msra.mxu0 0
      %1714 = vmatprep.subr.bf16.mxu0 0
      %1715 = vmatpush1.bf16.xpose.msra.mxu0 0
      %1716 = vmatprep.subr.bf16.mxu0 0
      %1717 = vmatpush1.bf16.xpose.msra.mxu0 0
      %1718 = vmatprep.subr.bf16.mxu0 0
      %1719 = vmatpush1.bf16.xpose.msra.mxu0 0
      %1720 = vmatprep.subr.bf16.mxu0 0
      %1721 = vmatpush1.bf16.xpose.msra.mxu0 0
      %1722 = vmatprep.subr.bf16.mxu0 0
      %1723 = vmatpush1.bf16.xpose.msra.mxu0 0
      %1724 = vmatprep.subr.bf16.mxu0 0
      %1725 = vmatpush1.bf16.xpose.msra.mxu0 0
      %1726 = vmatprep.subr.bf16.mxu0 0
      %1727 = vmatpush1.bf16.xpose.msra.mxu0 0
      %1728 = vmatprep.mubr.bf16.mxu0 0
      %1729 = vmatmul.mubr.bf16.gmra.mrb[0].mxu0 %v1691
      %v1730 = vpop.f32.mrb[0].mxu0
      %v1731 = vadd.f32 %v983, %v1730
      %v1732 = vpop.f32.mrb[0].mxu0
      %v1733 = vpop.f32.mrb[0].mxu0
      %v1734 = vpop.f32.mrb[0].mxu0
      %1735 = vdwg.mxu0
      %v1736 = vsel %vm985, %v1731, -inf
      %1737 = vmax.xlane.f32.xlu0 %v1736
      %v1738 = vpop.xlane.xlu0 %1737
      %v1739 = vsub.f32 %v1731, %v1738
      %v1740 = vmul.f32 %v1739, 1.442695
      %v1741 = vpow.pop %v1740
      %v1742 = vsel %vm985, %v1741, 0.0
      %1743 = vadd.xlane.f32.xlu0 %v1742
      %v1744 = vpop.xlane.xlu0 %1743
      %v1745 = vrcp.pop %v1744
      %v1746 = vmul.f32 %v1741, %v1745
      %v1747 = vpack.c.bf16 %v1746, %v1746
      %v1748 = vpack.c.bf16 %v1682, %v1682
      %v1750 = vsel %vm985, %v1747, 0
      %v1753 = vsel %vm1048, %v1748, 0
      %1755 = vmatprep.subr.bf16.mxu0 0
      %1756 = vmatpush1.bf16.msra.mxu0 %v1753
      %1757 = vmatprep.subr.bf16.mxu0 0
      %1758 = vmatpush1.bf16.msra.mxu0 0
      %1759 = vmatprep.subr.bf16.mxu0 0
      %1760 = vmatpush1.bf16.msra.mxu0 0
      %1761 = vmatprep.subr.bf16.mxu0 0
      %1762 = vmatpush1.bf16.msra.mxu0 0
      %1763 = vmatprep.subr.bf16.mxu0 0
      %1764 = vmatpush1.bf16.msra.mxu0 0
      %1765 = vmatprep.subr.bf16.mxu0 0
      %1766 = vmatpush1.bf16.msra.mxu0 0
      %1767 = vmatprep.subr.bf16.mxu0 0
      %1768 = vmatpush1.bf16.msra.mxu0 0
      %1769 = vmatprep.subr.bf16.mxu0 0
      %1770 = vmatpush1.bf16.msra.mxu0 0
      %1771 = vmatprep.subr.bf16.mxu0 0
      %1772 = vmatpush1.bf16.msra.mxu0 0
      %1773 = vmatprep.subr.bf16.mxu0 0
      %1774 = vmatpush1.bf16.msra.mxu0 0
      %1775 = vmatprep.subr.bf16.mxu0 0
      %1776 = vmatpush1.bf16.msra.mxu0 0
      %1777 = vmatprep.subr.bf16.mxu0 0
      %1778 = vmatpush1.bf16.msra.mxu0 0
      %1779 = vmatprep.subr.bf16.mxu0 0
      %1780 = vmatpush1.bf16.msra.mxu0 0
      %1781 = vmatprep.subr.bf16.mxu0 0
      %1782 = vmatpush1.bf16.msra.mxu0 0
      %1783 = vmatprep.subr.bf16.mxu0 0
      %1784 = vmatpush1.bf16.msra.mxu0 0
      %1785 = vmatprep.subr.bf16.mxu0 0
      %1786 = vmatpush1.bf16.msra.mxu0 0
      %1787 = vmatprep.mubr.bf16.mxu0 0
      %1788 = vmatmul.mubr.bf16.gmra.mrb[0].mxu0 %v1750
      %v1789 = vpop.f32.mrb[0].mxu0
      %v1790 = vadd.f32 0.0, %v1789
      %v1791 = vpop.f32.mrb[0].mxu0
      %v1792 = vpop.f32.mrb[0].mxu0
      %v1793 = vpop.f32.mrb[0].mxu0
      %1794 = vdwg.mxu0
      %v1795 = vpack.c.bf16 %v1790, %v1790
      %s1796 = scalar_lea.vmem %s702, 8
      %v1797 = vld [vmem:[%s1796] sm:$0xf]
      %v1799 = vsel %vm985, %v1795, 0
      %v1802 = vsel %vm1048, %v1797, 0
      %1804 = vmatprep.subr.bf16.mxu0 0
      %1805 = vmatpush1.bf16.msra.mxu0 %v1802
      %1806 = vmatprep.subr.bf16.mxu0 0
      %1807 = vmatpush1.bf16.msra.mxu0 0
      %1808 = vmatprep.subr.bf16.mxu0 0
      %1809 = vmatpush1.bf16.msra.mxu0 0
      %1810 = vmatprep.subr.bf16.mxu0 0
      %1811 = vmatpush1.bf16.msra.mxu0 0
      %1812 = vmatprep.subr.bf16.mxu0 0
      %1813 = vmatpush1.bf16.msra.mxu0 0
      %1814 = vmatprep.subr.bf16.mxu0 0
      %1815 = vmatpush1.bf16.msra.mxu0 0
      %1816 = vmatprep.subr.bf16.mxu0 0
      %1817 = vmatpush1.bf16.msra.mxu0 0
      %1818 = vmatprep.subr.bf16.mxu0 0
      %1819 = vmatpush1.bf16.msra.mxu0 0
      %1820 = vmatprep.subr.bf16.mxu0 0
      %1821 = vmatpush1.bf16.msra.mxu0 0
      %1822 = vmatprep.subr.bf16.mxu0 0
      %1823 = vmatpush1.bf16.msra.mxu0 0
      %1824 = vmatprep.subr.bf16.mxu0 0
      %1825 = vmatpush1.bf16.msra.mxu0 0
      %1826 = vmatprep.subr.bf16.mxu0 0
      %1827 = vmatpush1.bf16.msra.mxu0 0
      %1828 = vmatprep.subr.bf16.mxu0 0
      %1829 = vmatpush1.bf16.msra.mxu0 0
      %1830 = vmatprep.subr.bf16.mxu0 0
      %1831 = vmatpush1.bf16.msra.mxu0 0
      %1832 = vmatprep.subr.bf16.mxu0 0
      %1833 = vmatpush1.bf16.msra.mxu0 0
      %1834 = vmatprep.subr.bf16.mxu0 0
      %1835 = vmatpush1.bf16.msra.mxu0 0
      %1836 = vmatprep.mubr.bf16.mxu0 0
      %1837 = vmatmul.mubr.bf16.gmra.mrb[0].mxu0 %v1799
      %v1838 = vpop.f32.mrb[0].mxu0
      %v1839 = vadd.f32 0.0, %v1838
      %v1840 = vpop.f32.mrb[0].mxu0
      %v1841 = vpop.f32.mrb[0].mxu0
      %v1842 = vpop.f32.mrb[0].mxu0
      %1843 = vdwg.mxu0
      %v1844 = vadd.f32 %v1487, %v1839
      %s1845 = scalar_lea.vmem %s693, 48
      %v1846 = vld [vmem:[%s1845] sm:$0xf]
      %v1847 = vld [vmem:[%s1845 + $0x4] sm:$0xf]
      %v1848 = vld [vmem:[%s1845 + $0x8] sm:$0xf]
      %v1849 = vld [vmem:[%s1845 + $0xc] sm:$0xf]
      %s1850 = scalar_lea.vmem %s697, 3
      %v1851 = vld [vmem:[%s1850] sm:$0x1]
      %v1853 = vlaneseq
      %v1854 = vshrl.u32 %v1853, 7
      %v1855 = vsub.s32 0, %v1854
      %v1856 = vrot.slane %v1851, %v1855
      %v1862 = vunpack.c.l.b16 %v1846
      %v1863 = vunpack.c.l.b16 %v1847
      %v1864 = vunpack.c.l.b16 %v1848
      %v1865 = vunpack.c.l.b16 %v1849
      %v1866 = vpack.c.b16 %v1863, %v1862
      %v1867 = vpack.c.b16 %v1865, %v1864
      %1870 = vmatprep.subr.bf16.mxu0 0
      %1871 = vmatpush1.bf16.msra.mxu0 %v1866
      %1872 = vmatprep.subr.bf16.mxu0 0
      %1873 = vmatpush1.bf16.msra.mxu0 %v1867
      %1874 = vmatprep.subr.bf16.mxu0 0
      %1875 = vmatpush1.bf16.msra.mxu0 0
      %1876 = vmatprep.subr.bf16.mxu0 0
      %1877 = vmatpush1.bf16.msra.mxu0 0
      %1878 = vmatprep.subr.bf16.mxu0 0
      %1879 = vmatpush1.bf16.msra.mxu0 0
      %1880 = vmatprep.subr.bf16.mxu0 0
      %1881 = vmatpush1.bf16.msra.mxu0 0
      %1882 = vmatprep.subr.bf16.mxu0 0
      %1883 = vmatpush1.bf16.msra.mxu0 0
      %1884 = vmatprep.subr.bf16.mxu0 0
      %1885 = vmatpush1.bf16.msra.mxu0 0
      %1886 = vmatprep.subr.bf16.mxu0 0
      %1887 = vmatpush1.bf16.msra.mxu0 0
      %1888 = vmatprep.subr.bf16.mxu0 0
      %1889 = vmatpush1.bf16.msra.mxu0 0
      %1890 = vmatprep.subr.bf16.mxu0 0
      %1891 = vmatpush1.bf16.msra.mxu0 0
      %1892 = vmatprep.subr.bf16.mxu0 0
      %1893 = vmatpush1.bf16.msra.mxu0 0
      %1894 = vmatprep.subr.bf16.mxu0 0
      %1895 = vmatpush1.bf16.msra.mxu0 0
      %1896 = vmatprep.subr.bf16.mxu0 0
      %1897 = vmatpush1.bf16.msra.mxu0 0
      %1898 = vmatprep.subr.bf16.mxu0 0
      %1899 = vmatpush1.bf16.msra.mxu0 0
      %1900 = vmatprep.subr.bf16.mxu0 0
      %1901 = vmatpush1.bf16.msra.mxu0 0
      %1902 = vmatprep.mubr.bf16.mxu0 0
      %1903 = vmatmul.mubr.bf16.gmra.mrb[0].mxu0 %v804
      %v1904 = vpop.f32.mrb[0].mxu0
      %v1905 = vadd.f32 %v1856, %v1904
      %v1906 = vpop.f32.mrb[0].mxu0
      %v1907 = vpop.f32.mrb[0].mxu0
      %v1908 = vpop.f32.mrb[0].mxu0
      %1909 = vdwg.mxu0
      %s1910 = scalar_lea.vmem %s693, 112
      %v1911 = vld [vmem:[%s1910] sm:$0xf]
      %v1912 = vld [vmem:[%s1910 + $0x4] sm:$0xf]
      %v1913 = vld [vmem:[%s1910 + $0x8] sm:$0xf]
      %v1914 = vld [vmem:[%s1910 + $0xc] sm:$0xf]
      %s1915 = scalar_lea.vmem %s697, 7
      %v1916 = vld [vmem:[%s1915] sm:$0x1]
      %v1918 = vlaneseq
      %v1919 = vshrl.u32 %v1918, 7
      %v1920 = vsub.s32 0, %v1919
      %v1921 = vrot.slane %v1916, %v1920
      %v1927 = vunpack.c.l.b16 %v1911
      %v1928 = vunpack.c.l.b16 %v1912
      %v1929 = vunpack.c.l.b16 %v1913
      %v1930 = vunpack.c.l.b16 %v1914
      %v1931 = vpack.c.b16 %v1928, %v1927
      %v1932 = vpack.c.b16 %v1930, %v1929
      %1935 = vmatprep.subr.bf16.mxu0 0
      %1936 = vmatpush1.bf16.msra.mxu0 %v1931
      %1937 = vmatprep.subr.bf16.mxu0 0
      %1938 = vmatpush1.bf16.msra.mxu0 %v1932
      %1939 = vmatprep.subr.bf16.mxu0 0
      %1940 = vmatpush1.bf16.msra.mxu0 0
      %1941 = vmatprep.subr.bf16.mxu0 0
      %1942 = vmatpush1.bf16.msra.mxu0 0
      %1943 = vmatprep.subr.bf16.mxu0 0
      %1944 = vmatpush1.bf16.msra.mxu0 0
      %1945 = vmatprep.subr.bf16.mxu0 0
      %1946 = vmatpush1.bf16.msra.mxu0 0
      %1947 = vmatprep.subr.bf16.mxu0 0
      %1948 = vmatpush1.bf16.msra.mxu0 0
      %1949 = vmatprep.subr.bf16.mxu0 0
      %1950 = vmatpush1.bf16.msra.mxu0 0
      %1951 = vmatprep.subr.bf16.mxu0 0
      %1952 = vmatpush1.bf16.msra.mxu0 0
      %1953 = vmatprep.subr.bf16.mxu0 0
      %1954 = vmatpush1.bf16.msra.mxu0 0
      %1955 = vmatprep.subr.bf16.mxu0 0
      %1956 = vmatpush1.bf16.msra.mxu0 0
      %1957 = vmatprep.subr.bf16.mxu0 0
      %1958 = vmatpush1.bf16.msra.mxu0 0
      %1959 = vmatprep.subr.bf16.mxu0 0
      %1960 = vmatpush1.bf16.msra.mxu0 0
      %1961 = vmatprep.subr.bf16.mxu0 0
      %1962 = vmatpush1.bf16.msra.mxu0 0
      %1963 = vmatprep.subr.bf16.mxu0 0
      %1964 = vmatpush1.bf16.msra.mxu0 0
      %1965 = vmatprep.subr.bf16.mxu0 0
      %1966 = vmatpush1.bf16.msra.mxu0 0
      %1967 = vmatprep.mubr.bf16.mxu0 0
      %1968 = vmatmul.mubr.bf16.gmra.mrb[0].mxu0 %v804
      %v1969 = vpop.f32.mrb[0].mxu0
      %v1970 = vadd.f32 %v1921, %v1969
      %v1971 = vpop.f32.mrb[0].mxu0
      %v1972 = vpop.f32.mrb[0].mxu0
      %v1973 = vpop.f32.mrb[0].mxu0
      %1974 = vdwg.mxu0
      %s1975 = scalar_lea.vmem %s693, 176
      %v1976 = vld [vmem:[%s1975] sm:$0xf]
      %v1977 = vld [vmem:[%s1975 + $0x4] sm:$0xf]
      %v1978 = vld [vmem:[%s1975 + $0x8] sm:$0xf]
      %v1979 = vld [vmem:[%s1975 + $0xc] sm:$0xf]
      %s1980 = scalar_lea.vmem %s697, 11
      %v1981 = vld [vmem:[%s1980] sm:$0x1]
      %v1983 = vlaneseq
      %v1984 = vshrl.u32 %v1983, 7
      %v1985 = vsub.s32 0, %v1984
      %v1986 = vrot.slane %v1981, %v1985
      %v1992 = vunpack.c.l.b16 %v1976
      %v1993 = vunpack.c.l.b16 %v1977
      %v1994 = vunpack.c.l.b16 %v1978
      %v1995 = vunpack.c.l.b16 %v1979
      %v1996 = vpack.c.b16 %v1993, %v1992
      %v1997 = vpack.c.b16 %v1995, %v1994
      %2000 = vmatprep.subr.bf16.mxu0 0
      %2001 = vmatpush1.bf16.msra.mxu0 %v1996
      %2002 = vmatprep.subr.bf16.mxu0 0
      %2003 = vmatpush1.bf16.msra.mxu0 %v1997
      %2004 = vmatprep.subr.bf16.mxu0 0
      %2005 = vmatpush1.bf16.msra.mxu0 0
      %2006 = vmatprep.subr.bf16.mxu0 0
      %2007 = vmatpush1.bf16.msra.mxu0 0
      %2008 = vmatprep.subr.bf16.mxu0 0
      %2009 = vmatpush1.bf16.msra.mxu0 0
      %2010 = vmatprep.subr.bf16.mxu0 0
      %2011 = vmatpush1.bf16.msra.mxu0 0
      %2012 = vmatprep.subr.bf16.mxu0 0
      %2013 = vmatpush1.bf16.msra.mxu0 0
      %2014 = vmatprep.subr.bf16.mxu0 0
      %2015 = vmatpush1.bf16.msra.mxu0 0
      %2016 = vmatprep.subr.bf16.mxu0 0
      %2017 = vmatpush1.bf16.msra.mxu0 0
      %2018 = vmatprep.subr.bf16.mxu0 0
      %2019 = vmatpush1.bf16.msra.mxu0 0
      %2020 = vmatprep.subr.bf16.mxu0 0
      %2021 = vmatpush1.bf16.msra.mxu0 0
      %2022 = vmatprep.subr.bf16.mxu0 0
      %2023 = vmatpush1.bf16.msra.mxu0 0
      %2024 = vmatprep.subr.bf16.mxu0 0
      %2025 = vmatpush1.bf16.msra.mxu0 0
      %2026 = vmatprep.subr.bf16.mxu0 0
      %2027 = vmatpush1.bf16.msra.mxu0 0
      %2028 = vmatprep.subr.bf16.mxu0 0
      %2029 = vmatpush1.bf16.msra.mxu0 0
      %2030 = vmatprep.subr.bf16.mxu0 0
      %2031 = vmatpush1.bf16.msra.mxu0 0
      %2032 = vmatprep.mubr.bf16.mxu0 0
      %2033 = vmatmul.mubr.bf16.gmra.mrb[0].mxu0 %v804
      %v2034 = vpop.f32.mrb[0].mxu0
      %v2035 = vadd.f32 %v1986, %v2034
      %v2036 = vpop.f32.mrb[0].mxu0
      %v2037 = vpop.f32.mrb[0].mxu0
      %v2038 = vpop.f32.mrb[0].mxu0
      %2039 = vdwg.mxu0
      %v2040 = vmul.f32 %v1905, 0.35355338
      %v2041 = vpack.c.bf16 %v2040, %v2040
      %v2042 = vpack.c.bf16 %v1970, %v1970
      %v2044 = vsel %vm985, %v2041, 0
      %v2047 = vsel %vm985, %v2042, 0
      %2049 = vmatprep.subr.bf16.mxu0 0
      %2050 = vmatpush1.bf16.xpose.msra.mxu0 %v2047
      %2051 = vmatprep.subr.bf16.mxu0 0
      %2052 = vmatpush1.bf16.xpose.msra.mxu0 0
      %2053 = vmatprep.subr.bf16.mxu0 0
      %2054 = vmatpush1.bf16.xpose.msra.mxu0 0
      %2055 = vmatprep.subr.bf16.mxu0 0
      %2056 = vmatpush1.bf16.xpose.msra.mxu0 0
      %2057 = vmatprep.subr.bf16.mxu0 0
      %2058 = vmatpush1.bf16.xpose.msra.mxu0 0
      %2059 = vmatprep.subr.bf16.mxu0 0
      %2060 = vmatpush1.bf16.xpose.msra.mxu0 0
      %2061 = vmatprep.subr.bf16.mxu0 0
      %2062 = vmatpush1.bf16.xpose.msra.mxu0 0
      %2063 = vmatprep.subr.bf16.mxu0 0
      %2064 = vmatpush1.bf16.xpose.msra.mxu0 0
      %2065 = vmatprep.subr.bf16.mxu0 0
      %2066 = vmatpush1.bf16.xpose.msra.mxu0 0
      %2067 = vmatprep.subr.bf16.mxu0 0
      %2068 = vmatpush1.bf16.xpose.msra.mxu0 0
      %2069 = vmatprep.subr.bf16.mxu0 0
      %2070 = vmatpush1.bf16.xpose.msra.mxu0 0
      %2071 = vmatprep.subr.bf16.mxu0 0
      %2072 = vmatpush1.bf16.xpose.msra.mxu0 0
      %2073 = vmatprep.subr.bf16.mxu0 0
      %2074 = vmatpush1.bf16.xpose.msra.mxu0 0
      %2075 = vmatprep.subr.bf16.mxu0 0
      %2076 = vmatpush1.bf16.xpose.msra.mxu0 0
      %2077 = vmatprep.subr.bf16.mxu0 0
      %2078 = vmatpush1.bf16.xpose.msra.mxu0 0
      %2079 = vmatprep.subr.bf16.mxu0 0
      %2080 = vmatpush1.bf16.xpose.msra.mxu0 0
      %2081 = vmatprep.mubr.bf16.mxu0 0
      %2082 = vmatmul.mubr.bf16.gmra.mrb[0].mxu0 %v2044
      %v2083 = vpop.f32.mrb[0].mxu0
      %v2084 = vadd.f32 %v983, %v2083
      %v2085 = vpop.f32.mrb[0].mxu0
      %v2086 = vpop.f32.mrb[0].mxu0
      %v2087 = vpop.f32.mrb[0].mxu0
      %2088 = vdwg.mxu0
      %v2089 = vsel %vm985, %v2084, -inf
      %2090 = vmax.xlane.f32.xlu0 %v2089
      %v2091 = vpop.xlane.xlu0 %2090
      %v2092 = vsub.f32 %v2084, %v2091
      %v2093 = vmul.f32 %v2092, 1.442695
      %v2094 = vpow.pop %v2093
      %v2095 = vsel %vm985, %v2094, 0.0
      %2096 = vadd.xlane.f32.xlu0 %v2095
      %v2097 = vpop.xlane.xlu0 %2096
      %v2098 = vrcp.pop %v2097
      %v2099 = vmul.f32 %v2094, %v2098
      %v2100 = vpack.c.bf16 %v2099, %v2099
      %v2101 = vpack.c.bf16 %v2035, %v2035
      %v2103 = vsel %vm985, %v2100, 0
      %v2106 = vsel %vm1048, %v2101, 0
      %2108 = vmatprep.subr.bf16.mxu0 0
      %2109 = vmatpush1.bf16.msra.mxu0 %v2106
      %2110 = vmatprep.subr.bf16.mxu0 0
      %2111 = vmatpush1.bf16.msra.mxu0 0
      %2112 = vmatprep.subr.bf16.mxu0 0
      %2113 = vmatpush1.bf16.msra.mxu0 0
      %2114 = vmatprep.subr.bf16.mxu0 0
      %2115 = vmatpush1.bf16.msra.mxu0 0
      %2116 = vmatprep.subr.bf16.mxu0 0
      %2117 = vmatpush1.bf16.msra.mxu0 0
      %2118 = vmatprep.subr.bf16.mxu0 0
      %2119 = vmatpush1.bf16.msra.mxu0 0
      %2120 = vmatprep.subr.bf16.mxu0 0
      %2121 = vmatpush1.bf16.msra.mxu0 0
      %2122 = vmatprep.subr.bf16.mxu0 0
      %2123 = vmatpush1.bf16.msra.mxu0 0
      %2124 = vmatprep.subr.bf16.mxu0 0
      %2125 = vmatpush1.bf16.msra.mxu0 0
      %2126 = vmatprep.subr.bf16.mxu0 0
      %2127 = vmatpush1.bf16.msra.mxu0 0
      %2128 = vmatprep.subr.bf16.mxu0 0
      %2129 = vmatpush1.bf16.msra.mxu0 0
      %2130 = vmatprep.subr.bf16.mxu0 0
      %2131 = vmatpush1.bf16.msra.mxu0 0
      %2132 = vmatprep.subr.bf16.mxu0 0
      %2133 = vmatpush1.bf16.msra.mxu0 0
      %2134 = vmatprep.subr.bf16.mxu0 0
      %2135 = vmatpush1.bf16.msra.mxu0 0
      %2136 = vmatprep.subr.bf16.mxu0 0
      %2137 = vmatpush1.bf16.msra.mxu0 0
      %2138 = vmatprep.subr.bf16.mxu0 0
      %2139 = vmatpush1.bf16.msra.mxu0 0
      %2140 = vmatprep.mubr.bf16.mxu0 0
      %2141 = vmatmul.mubr.bf16.gmra.mrb[0].mxu0 %v2103
      %v2142 = vpop.f32.mrb[0].mxu0
      %v2143 = vadd.f32 0.0, %v2142
      %v2144 = vpop.f32.mrb[0].mxu0
      %v2145 = vpop.f32.mrb[0].mxu0
      %v2146 = vpop.f32.mrb[0].mxu0
      %2147 = vdwg.mxu0
      %v2148 = vpack.c.bf16 %v2143, %v2143
      %s2149 = scalar_lea.vmem %s702, 12
      %v2150 = vld [vmem:[%s2149] sm:$0xf]
      %v2152 = vsel %vm985, %v2148, 0
      %v2155 = vsel %vm1048, %v2150, 0
      %2157 = vmatprep.subr.bf16.mxu0 0
      %2158 = vmatpush1.bf16.msra.mxu0 %v2155
      %2159 = vmatprep.subr.bf16.mxu0 0
      %2160 = vmatpush1.bf16.msra.mxu0 0
      %2161 = vmatprep.subr.bf16.mxu0 0
      %2162 = vmatpush1.bf16.msra.mxu0 0
      %2163 = vmatprep.subr.bf16.mxu0 0
      %2164 = vmatpush1.bf16.msra.mxu0 0
      %2165 = vmatprep.subr.bf16.mxu0 0
      %2166 = vmatpush1.bf16.msra.mxu0 0
      %2167 = vmatprep.subr.bf16.mxu0 0
      %2168 = vmatpush1.bf16.msra.mxu0 0
      %2169 = vmatprep.subr.bf16.mxu0 0
      %2170 = vmatpush1.bf16.msra.mxu0 0
      %2171 = vmatprep.subr.bf16.mxu0 0
      %2172 = vmatpush1.bf16.msra.mxu0 0
      %2173 = vmatprep.subr.bf16.mxu0 0
      %2174 = vmatpush1.bf16.msra.mxu0 0
      %2175 = vmatprep.subr.bf16.mxu0 0
      %2176 = vmatpush1.bf16.msra.mxu0 0
      %2177 = vmatprep.subr.bf16.mxu0 0
      %2178 = vmatpush1.bf16.msra.mxu0 0
      %2179 = vmatprep.subr.bf16.mxu0 0
      %2180 = vmatpush1.bf16.msra.mxu0 0
      %2181 = vmatprep.subr.bf16.mxu0 0
      %2182 = vmatpush1.bf16.msra.mxu0 0
      %2183 = vmatprep.subr.bf16.mxu0 0
      %2184 = vmatpush1.bf16.msra.mxu0 0
      %2185 = vmatprep.subr.bf16.mxu0 0
      %2186 = vmatpush1.bf16.msra.mxu0 0
      %2187 = vmatprep.subr.bf16.mxu0 0
      %2188 = vmatpush1.bf16.msra.mxu0 0
      %2189 = vmatprep.mubr.bf16.mxu0 0
      %2190 = vmatmul.mubr.bf16.gmra.mrb[0].mxu0 %v2152
      %v2191 = vpop.f32.mrb[0].mxu0
      %v2192 = vadd.f32 0.0, %v2191
      %v2193 = vpop.f32.mrb[0].mxu0
      %v2194 = vpop.f32.mrb[0].mxu0
      %v2195 = vpop.f32.mrb[0].mxu0
      %2196 = vdwg.mxu0
      %v2197 = vadd.f32 %v1844, %v2192
      %v2198 = vld [vmem:[%s705] sm:$0x1]
      %v2200 = vlaneseq
      %v2201 = vshrl.u32 %v2200, 7
      %v2202 = vsub.s32 0, %v2201
      %v2203 = vrot.slane %v2198, %v2202
      %v2205 = vadd.f32 %v2197, %v2203
      %v2206 = vadd.f32 %v2205, %v776
      %v2207 = vld [vmem:[%s708] sm:$0x1]
      %v2208 = vld [vmem:[%s711] sm:$0x1]
      %v2209 = vsel %vm802, %v2206, 0.0
      %2210 = vadd.xlane.f32.xlu0 %v2209
      %v2211 = vpop.xlane.xlu0 %2210
      %v2212 = vrcp.pop 32.0
      %v2213 = vmul.f32 %v2211, %v2212
      %v2214 = vsub.f32 %v2206, %v2213
      %v2215 = vmul.f32 %v2214, %v2214
      %v2216 = vsel %vm802, %v2215, 0.0
      %2217 = vadd.xlane.f32.xlu0 %v2216
      %v2218 = vpop.xlane.xlu0 %2217
      %v2219 = vmul.f32 %v2218, %v2212
      %v2220 = vadd.f32 %v2219, 1e-12
      %v2221 = vrsqrt.pop %v2220
      %v2222 = vmul.f32 %v2214, %v2221
      %v2224 = vlaneseq
      %v2225 = vshrl.u32 %v2224, 7
      %v2226 = vsub.s32 0, %v2225
      %v2227 = vrot.slane %v2207, %v2226
      %v2229 = vmul.f32 %v2222, %v2227
      %v2231 = vlaneseq
      %v2232 = vshrl.u32 %v2231, 7
      %v2233 = vsub.s32 0, %v2232
      %v2234 = vrot.slane %v2208, %v2233
      %v2236 = vadd.f32 %v2229, %v2234
      %v2237 = vpack.c.bf16 %v2236, %v2236
      %v2238 = vld [vmem:[%s716] sm:$0xf]
      %v2239 = vld [vmem:[%s716 + $0x4] sm:$0xf]
      %v2240 = vld [vmem:[%s716 + $0x8] sm:$0xf]
      %v2241 = vld [vmem:[%s716 + $0xc] sm:$0xf]
      %v2242 = vld [vmem:[%s719] sm:$0x1]
      %v2244 = vlaneseq
      %v2245 = vshrl.u32 %v2244, 7
      %v2246 = vsub.s32 0, %v2245
      %v2247 = vrot.slane %v2242, %v2246
      %v2253 = vunpack.c.l.b16 %v2238
      %v2254 = vunpack.c.l.b16 %v2239
      %v2255 = vunpack.c.l.b16 %v2240
      %v2256 = vunpack.c.l.b16 %v2241
      %v2257 = vpack.c.b16 %v2254, %v2253
      %v2258 = vpack.c.b16 %v2256, %v2255
      %v2262 = vsel %vm802, %v2237, 0
      %2264 = vmatprep.subr.bf16.mxu0 0
      %2265 = vmatpush1.bf16.msra.mxu0 %v2257
      %2266 = vmatprep.subr.bf16.mxu0 0
      %2267 = vmatpush1.bf16.msra.mxu0 %v2258
      %2268 = vmatprep.subr.bf16.mxu0 0
      %2269 = vmatpush1.bf16.msra.mxu0 0
      %2270 = vmatprep.subr.bf16.mxu0 0
      %2271 = vmatpush1.bf16.msra.mxu0 0
      %2272 = vmatprep.subr.bf16.mxu0 0
      %2273 = vmatpush1.bf16.msra.mxu0 0
      %2274 = vmatprep.subr.bf16.mxu0 0
      %2275 = vmatpush1.bf16.msra.mxu0 0
      %2276 = vmatprep.subr.bf16.mxu0 0
      %2277 = vmatpush1.bf16.msra.mxu0 0
      %2278 = vmatprep.subr.bf16.mxu0 0
      %2279 = vmatpush1.bf16.msra.mxu0 0
      %2280 = vmatprep.subr.bf16.mxu0 0
      %2281 = vmatpush1.bf16.msra.mxu0 0
      %2282 = vmatprep.subr.bf16.mxu0 0
      %2283 = vmatpush1.bf16.msra.mxu0 0
      %2284 = vmatprep.subr.bf16.mxu0 0
      %2285 = vmatpush1.bf16.msra.mxu0 0
      %2286 = vmatprep.subr.bf16.mxu0 0
      %2287 = vmatpush1.bf16.msra.mxu0 0
      %2288 = vmatprep.subr.bf16.mxu0 0
      %2289 = vmatpush1.bf16.msra.mxu0 0
      %2290 = vmatprep.subr.bf16.mxu0 0
      %2291 = vmatpush1.bf16.msra.mxu0 0
      %2292 = vmatprep.subr.bf16.mxu0 0
      %2293 = vmatpush1.bf16.msra.mxu0 0
      %2294 = vmatprep.subr.bf16.mxu0 0
      %2295 = vmatpush1.bf16.msra.mxu0 0
      %2296 = vmatprep.mubr.bf16.mxu0 0
      %2297 = vmatmul.mubr.bf16.gmra.mrb[0].mxu0 %v2262
      %v2298 = vpop.f32.mrb[0].mxu0
      %v2299 = vadd.f32 %v2247, %v2298
      %v2300 = vpop.f32.mrb[0].mxu0
      %v2301 = vpop.f32.mrb[0].mxu0
      %v2302 = vpop.f32.mrb[0].mxu0
      %2303 = vdwg.mxu0
      %v2304 = vmul.f32 %v2299, 0.5
      %v2305 = vmul.f32 %v2299, 0.044715
      %v2306 = vmul.f32 %v2305, %v2299
      %v2307 = vmul.f32 %v2306, %v2299
      %v2308 = vadd.f32 %v2299, %v2307
      %v2309 = vmul.f32 %v2308, 0.7978846
      %v2310 = vtanh.pop %v2309
      %v2311 = vadd.f32 %v2310, 1.0
      %v2312 = vmul.f32 %v2304, %v2311
      %v2313 = vpack.c.bf16 %v2312, %v2312
      %v2314 = vld [vmem:[%s724] sm:$0xf]
      %v2315 = vld [vmem:[%s724 + $0x4] sm:$0xf]
      %v2316 = vld [vmem:[%s724 + $0x8] sm:$0xf]
      %v2317 = vld [vmem:[%s724 + $0xc] sm:$0xf]
      %v2318 = vld [vmem:[%s724 + $0x10] sm:$0xf]
      %v2319 = vld [vmem:[%s724 + $0x14] sm:$0xf]
      %v2320 = vld [vmem:[%s724 + $0x18] sm:$0xf]
      %v2321 = vld [vmem:[%s724 + $0x1c] sm:$0xf]
      %v2322 = vld [vmem:[%s727] sm:$0x1]
      %v2324 = vlaneseq
      %v2325 = vshrl.u32 %v2324, 7
      %v2326 = vsub.s32 0, %v2325
      %v2327 = vrot.slane %v2322, %v2326
      %v2337 = vunpack.c.l.b16 %v2314
      %v2338 = vunpack.c.l.b16 %v2315
      %v2339 = vunpack.c.l.b16 %v2316
      %v2340 = vunpack.c.l.b16 %v2317
      %v2341 = vunpack.c.l.b16 %v2318
      %v2342 = vunpack.c.l.b16 %v2319
      %v2343 = vunpack.c.l.b16 %v2320
      %v2344 = vunpack.c.l.b16 %v2321
      %v2345 = vpack.c.b16 %v2338, %v2337
      %v2346 = vpack.c.b16 %v2340, %v2339
      %v2347 = vpack.c.b16 %v2342, %v2341
      %v2348 = vpack.c.b16 %v2344, %v2343
      %vm2353 = vcmask 523264
      %v2355 = vsel %vm2353, %v2313, 0
      %2357 = vmatprep.subr.bf16.mxu0 0
      %2358 = vmatpush1.bf16.msra.mxu0 %v2345
      %2359 = vmatprep.subr.bf16.mxu0 0
      %2360 = vmatpush1.bf16.msra.mxu0 %v2346
      %2361 = vmatprep.subr.bf16.mxu0 0
      %2362 = vmatpush1.bf16.msra.mxu0 %v2347
      %2363 = vmatprep.subr.bf16.mxu0 0
      %2364 = vmatpush1.bf16.msra.mxu0 %v2348
      %2365 = vmatprep.subr.bf16.mxu0 0
      %2366 = vmatpush1.bf16.msra.mxu0 0
      %2367 = vmatprep.subr.bf16.mxu0 0
      %2368 = vmatpush1.bf16.msra.mxu0 0
      %2369 = vmatprep.subr.bf16.mxu0 0
      %2370 = vmatpush1.bf16.msra.mxu0 0
      %2371 = vmatprep.subr.bf16.mxu0 0
      %2372 = vmatpush1.bf16.msra.mxu0 0
      %2373 = vmatprep.subr.bf16.mxu0 0
      %2374 = vmatpush1.bf16.msra.mxu0 0
      %2375 = vmatprep.subr.bf16.mxu0 0
      %2376 = vmatpush1.bf16.msra.mxu0 0
      %2377 = vmatprep.subr.bf16.mxu0 0
      %2378 = vmatpush1.bf16.msra.mxu0 0
      %2379 = vmatprep.subr.bf16.mxu0 0
      %2380 = vmatpush1.bf16.msra.mxu0 0
      %2381 = vmatprep.subr.bf16.mxu0 0
      %2382 = vmatpush1.bf16.msra.mxu0 0
      %2383 = vmatprep.subr.bf16.mxu0 0
      %2384 = vmatpush1.bf16.msra.mxu0 0
      %2385 = vmatprep.subr.bf16.mxu0 0
      %2386 = vmatpush1.bf16.msra.mxu0 0
      %2387 = vmatprep.subr.bf16.mxu0 0
      %2388 = vmatpush1.bf16.msra.mxu0 0
      %2389 = vmatprep.mubr.bf16.mxu0 0
      %2390 = vmatmul.mubr.bf16.gmra.mrb[0].mxu0 %v2355
      %v2391 = vpop.f32.mrb[0].mxu0
      %v2392 = vadd.f32 %v2327, %v2391
      %v2393 = vpop.f32.mrb[0].mxu0
      %v2394 = vpop.f32.mrb[0].mxu0
      %v2395 = vpop.f32.mrb[0].mxu0
      %2396 = vdwg.mxu0
      %v2397 = vadd.f32 %v2392, %v2236
      %v2398 = vld [vmem:[%s730] sm:$0x1]
      %v2399 = vld [vmem:[%s733] sm:$0x1]
      %v2400 = vsel %vm802, %v2397, 0.0
      %2401 = vadd.xlane.f32.xlu0 %v2400
      %v2402 = vpop.xlane.xlu0 %2401
      %v2403 = vmul.f32 %v2402, %v2212
      %v2404 = vsub.f32 %v2397, %v2403
      %v2405 = vmul.f32 %v2404, %v2404
      %v2406 = vsel %vm802, %v2405, 0.0
      %2407 = vadd.xlane.f32.xlu0 %v2406
      %v2408 = vpop.xlane.xlu0 %2407
      %v2409 = vmul.f32 %v2408, %v2212
      %v2410 = vadd.f32 %v2409, 1e-12
      %v2411 = vrsqrt.pop %v2410
      %v2412 = vmul.f32 %v2404, %v2411
      %v2414 = vlaneseq
      %v2415 = vshrl.u32 %v2414, 7
      %v2416 = vsub.s32 0, %v2415
      %v2417 = vrot.slane %v2398, %v2416
      %v2419 = vmul.f32 %v2412, %v2417
      %v2421 = vlaneseq
      %v2422 = vshrl.u32 %v2421, 7
      %v2423 = vsub.s32 0, %v2422
      %v2424 = vrot.slane %v2399, %v2423
      %v2426 = vadd.f32 %v2419, %v2424
      %2427 = vst.msk [vmem:[%s737] sm:$0xff] %vm802, %v2426
      %p2428 = scmp.lt.s32.totalorder %s31, 1
      %s2429 = scalar_select %p2428, %s31, 1
      %s2430 = smul.addr %s2429, 8
      %s2431 = scalar_lea.vmem %s16, %s2430
      // Predicated region
      $region89: #{bert_forward.1} parent=83 // pred_check
        %p2432 = pneg %p463
      $region90: #{bert_forward.1} parent=83 // pred_check_branch
        %2434 = sbr.rel (%p2432) target = $region92
      $region91: #{bert_forward.1} parent=83 // pred_region
        _
      $region92: #{bert_forward.1} parent=83 // pred_fallthru
        _
    $region84: #{bert_forward.1} parent=5 // pred_fallthru
      _
    %p2435 = scmp.le.s32.totalorder 2, %s22
    // Predicated region
    $region93: #{bert_forward.1} parent=5 // pred_check
      %p2436 = pneg %p2435
    $region94: #{bert_forward.1} parent=5 // pred_check_branch
      %2438 = sbr.rel (%p2436) target = $region96
    $region95: #{bert_forward.1} parent=5 // pred_region
      %s2439 = ssub.s32 %s22, 2
      // Predicated region
      $region97: #{bert_forward.1} parent=95 // pred_check
        %p2440 = pneg %p469
      $region98: #{bert_forward.1} parent=95 // pred_check_branch
        %2442 = sbr.rel (%p2440) target = $region100
      $region99: #{bert_forward.1} parent=95 // pred_region
        %p2443 = scmp.lt.s32.totalorder %s33, 1
        %s2444 = scalar_select %p2443, %s33, 1
        %s2445 = smul.addr %s2444, 8
        %s2446 = scalar_lea.vmem %s16, %s2445
      $region100: #{bert_forward.1} parent=95 // pred_fallthru
        _
    $region96: #{bert_forward.1} parent=5 // pred_fallthru
      _
  $region6: #{bert_forward.1} parent=0 // loop_footer
    %s26 = sadd.s32 1, %s22
  $region7: #{bert_forward.1} parent=0 // loop_footer_branch
    %21 = sbr.rel target = $region3
  $region8: #{bert_forward.1} parent=0 // loop_exit
    _

</llo_original>
